<compile_context>
chip_gen: v7x
topology: tpu7x:2x2x1
jax: 0.10.0
libtpu: 0.0.40
codegen_flags: <defaults>
</compile_context>

<pallas_src>
import numpy as np
import jax
import jax.numpy as jnp
from jax.experimental import pallas as pl
from jax.experimental.pallas import tpu as pltpu

LANE = 128


def _round_up(x, m):
    return (x + m - 1) // m * m


# ---------------------------------------------------------------------------
# Static matrix builders (computed once per shape in numpy)
# ---------------------------------------------------------------------------
def _avg_pool_matrix(in_size: int, k: int) -> np.ndarray:
    """M (out, in) s.t. M @ v == avg_pool1d(v, kernel=k, stride=k)."""
    out = (in_size - k) // k + 1
    m = np.zeros((out, in_size), dtype=np.float32)
    for p in range(out):
        m[p, p * k:(p + 1) * k] = 1.0 / k
    return m


def _bilinear_matrix(out_size: int, in_size: int) -> np.ndarray:
    """M (out, in) implementing PyTorch bilinear interp (align_corners=False)."""
    m = np.zeros((out_size, in_size), dtype=np.float32)
    scale = in_size / out_size
    for i in range(out_size):
        src = max((i + 0.5) * scale - 0.5, 0.0)
        i0 = min(int(np.floor(src)), in_size - 1)
        i1 = i0 + 1 if i0 < in_size - 1 else i0
        lam = src - i0
        m[i, i0] += 1.0 - lam
        m[i, i1] += lam
    return m


# ---------------------------------------------------------------------------
# Pallas kernel
# ---------------------------------------------------------------------------
def _make_kernel(num_paths: int):
    """Ref layout:
       [ x, (A_p, B_p, Wp_p, shift_p, Wf_p) * num_paths, Wf_x, bias, out ]
    """
    def kernel(*refs):
        x_ref = refs[0]
        wfx_ref = refs[1 + 5 * num_paths]
        bias_ref = refs[2 + 5 * num_paths]
        o_ref = refs[-1]

        x = x_ref[0]                                                    # (HW, C) bf16
        # identity slice of cat([x, paths...]) through the final 1x1 conv
        acc = jnp.dot(x, wfx_ref[...], preferred_element_type=jnp.float32)  # (HW, C) f32
        acc = acc + bias_ref[...]

        for p in range(num_paths):
            b = 1 + 5 * p
            A = refs[b][...]          # (pp2, HW) bf16  avg-pool matrix
            B = refs[b + 1][...]      # (HW, pp2) bf16  bilinear upsample matrix
            Wp = refs[b + 2][...]     # (C, Cp)   bf16  1x1 conv weight, BN scale folded
            sh = refs[b + 3][...]     # (1, Cp)   f32   folded BN shift
            Wf = refs[b + 4][...]     # (Cp, C)   bf16  slice of final 1x1 conv weight

            pooled = jnp.dot(A, x, preferred_element_type=jnp.float32)          # (pp2, C)
            feat = jnp.maximum(
                jnp.dot(pooled.astype(jnp.bfloat16), Wp,
                        preferred_element_type=jnp.float32) + sh, 0.0)          # (pp2, Cp)
            # fold final-conv slice BEFORE the upsample (linear => identical)
            g = jnp.dot(feat.astype(jnp.bfloat16), Wf,
                        preferred_element_type=jnp.float32)                     # (pp2, C)
            acc = acc + jnp.dot(B, g.astype(jnp.bfloat16),
                                preferred_element_type=jnp.float32)             # (HW, C)

        o_ref[0] = acc.astype(o_ref.dtype)

    return kernel


# ---------------------------------------------------------------------------
# Parameter init (deterministic, synthetic, PyTorch-like / unpadded)
# ---------------------------------------------------------------------------
def init_params(key, in_channels: int, pool_sizes):
    n_paths = len(pool_sizes)
    cp = in_channels // n_paths
    keys = jax.random.split(key, 5 * n_paths + 2)

    wf_full = 0.1 * jax.random.normal(keys[-2], (2 * in_channels, in_channels), jnp.float32)
    bias = 0.1 * jax.random.normal(keys[-1], (in_channels,), jnp.float32)

    paths = []
    for p in range(n_paths):
        kw, kg, kb, km, kv = keys[5 * p: 5 * p + 5]
        paths.append(dict(
            w=0.1 * jax.random.normal(kw, (in_channels, cp), jnp.float32),   # 1x1 conv, no bias
            gamma=1.0 + 0.1 * jax.random.normal(kg, (cp,), jnp.float32),
            beta=0.1 * jax.random.normal(kb, (cp,), jnp.float32),
            mean=0.1 * jax.random.normal(km, (cp,), jnp.float32),
            var=jax.random.uniform(kv, (cp,), jnp.float32, 0.5, 1.5),
        ))
    return dict(paths=paths, wf=wf_full, bias=bias)


# ---------------------------------------------------------------------------
# Fold / pad / quantize operands for the kernel
# ---------------------------------------------------------------------------
def prepare_operands(params, in_channels: int, pool_sizes, H: int, W: int):
    n_paths = len(pool_sizes)
    cp = in_channels // n_paths
    c_pad = max(LANE, _round_up(in_channels, LANE))
    cp_pad = max(LANE, _round_up(cp, LANE))
    eps = 1e-5

    wf = params["wf"]
    wf_x = jnp.zeros((c_pad, c_pad), jnp.float32).at[:in_channels, :in_channels].set(
        wf[:in_channels])
    bias = jnp.zeros((1, c_pad), jnp.float32).at[0, :in_channels].set(params["bias"])

    path_ops = []
    for p, ps in enumerate(pool_sizes):
        k = H // ps                                       # int(h / pool_size)
        ph = _avg_pool_matrix(H, k)
        pw = _avg_pool_matrix(W, k)
        oh, ow = ph.shape[0], pw.shape[0]
        A = np.kron(ph, pw)                               # (oh*ow, H*W)
        B = np.kron(_bilinear_matrix(H, oh), _bilinear_matrix(W, ow))   # (H*W, oh*ow)

        pr = params["paths"][p]
        inv = pr["gamma"] / jnp.sqrt(pr["var"] + eps)     # folded BN (inference form)
        shift = pr["beta"] - pr["mean"] * inv
        wp_fold = pr["w"] * inv[None, :]                  # BN scale folded into conv weight
        wf_p = wf[in_channels + p * cp: in_channels + (p + 1) * cp]     # (cp, C)

        wp_pad = jnp.zeros((c_pad, cp_pad), jnp.float32).at[:in_channels, :cp].set(wp_fold)
        sh_pad = jnp.zeros((1, cp_pad), jnp.float32).at[0, :cp].set(shift)
        wfp_pad = jnp.zeros((cp_pad, c_pad), jnp.float32).at[:cp, :in_channels].set(wf_p)

        path_ops.append((
            jnp.asarray(A, jnp.bfloat16),
            jnp.asarray(B, jnp.bfloat16),
            wp_pad.astype(jnp.bfloat16),
            sh_pad,                                        # stays f32
            wfp_pad.astype(jnp.bfloat16),
        ))

    return dict(path_ops=path_ops, wf_x=wf_x.astype(jnp.bfloat16), bias=bias,
                C_pad=c_pad, Cp_pad=cp_pad)


# ---------------------------------------------------------------------------
# Wrapper calling pallas_call
# ---------------------------------------------------------------------------
def pyramid_pooling_forward(x_nchw, ops, pool_sizes):
    N, C, H, W = x_nchw.shape
    HW = H * W
    c_pad, cp_pad = ops["C_pad"], ops["Cp_pad"]
    n_paths = len(pool_sizes)

    # NCHW -> spatial-flattened NHWC, channel-padded to a lane-dense width, bf16
    x = jnp.transpose(x_nchw, (0, 2, 3, 1)).reshape(N, HW, C)
    x = jnp.pad(x, ((0, 0), (0, 0), (0, c_pad - C))).astype(jnp.bfloat16)

    inputs = [x]
    in_specs = [pl.BlockSpec((1, HW, c_pad), lambda n: (n, 0, 0))]

    flops = 2 * HW * c_pad * c_pad                       # identity path
    for p in range(n_paths):
        A, B, Wp, sh, Wf = ops["path_ops"][p]
        for op in (A, B, Wp, sh, Wf):
            inputs.append(op)
            in_specs.append(pl.BlockSpec(op.shape, lambda n: (0, 0)))
        pp2 = A.shape[0]
        flops += (2 * pp2 * HW * c_pad            # pool
                  + 2 * pp2 * c_pad * cp_pad      # 1x1 conv
                  + 2 * pp2 * cp_pad * c_pad      # Wf fold (pre-upsample)
                  + 2 * HW * pp2 * c_pad)         # upsample + accumulate

    inputs += [ops["wf_x"], ops["bias"]]
    in_specs += [pl.BlockSpec(ops["wf_x"].shape, lambda n: (0, 0)),
                 pl.BlockSpec(ops["bias"].shape, lambda n: (0, 0))]

    # VMEM budget: double-buffered x/out blocks + (conservatively double-buffered)
    # grid-invariant operands + headroom; capped at 64 MiB for v7x.
    invariant_bytes = sum(int(np.prod(a.shape)) * a.dtype.itemsize for a in inputs[1:])
    x_block_bytes = HW * c_pad * 2
    out_block_bytes = HW * c_pad * 4
    vmem_need = 2 * (x_block_bytes + out_block_bytes) + 2 * invariant_bytes + (8 << 20)
    vmem_limit = int(min(64 << 20, max(32 << 20, vmem_need)))

    cost = pl.CostEstimate(
        flops=N * flops,
        transcendentals=0,
        bytes_accessed=N * (x_block_bytes + out_block_bytes) + invariant_bytes,
    )

    out_flat = pl.pallas_call(
        _make_kernel(n_paths),
        out_shape=jax.ShapeDtypeStruct((N, HW, c_pad), jnp.float32),
        grid=(N,),
        in_specs=in_specs,
        out_specs=pl.BlockSpec((1, HW, c_pad), lambda n: (n, 0, 0)),
        compiler_params=pltpu.CompilerParams(
            dimension_semantics=("parallel",),          # batch is independent -> v7x dual-TC
            vmem_limit_bytes=vmem_limit),
        cost_estimate=cost,
    )(*inputs)

    # strip channel padding, back to NCHW
    return out_flat[:, :, :C].reshape(N, H, W, C).transpose(0, 3, 1, 2)


# ---------------------------------------------------------------------------
# Reference 1: same math / same bf16 quantization, plain JAX (validates the
# Pallas mechanics tightly).
# ---------------------------------------------------------------------------
def reference_same_math(x_nchw, ops, pool_sizes):
    N, C, H, W = x_nchw.shape
    HW = H * W
    c_pad = ops["C_pad"]
    f32 = jnp.float32
    x = jnp.transpose(x_nchw, (0, 2, 3, 1)).reshape(N, HW, C)
    x = jnp.pad(x, ((0, 0), (0, 0), (0, c_pad - C))).astype(jnp.bfloat16)

    acc = jnp.einsum('nsc,cd->nsd', x, ops["wf_x"], preferred_element_type=f32) + ops["bias"]
    for A, B, Wp, sh, Wf in ops["path_ops"]:
        pooled = jnp.einsum('ps,nsc->npc', A, x, preferred_element_type=f32)
        feat = jnp.maximum(
            jnp.einsum('npc,cd->npd', pooled.astype(jnp.bfloat16), Wp,
                       preferred_element_type=f32) + sh, 0.0)
        g = jnp.einsum('npd,dc->npc', feat.astype(jnp.bfloat16), Wf,
                       preferred_element_type=f32)
        acc = acc + jnp.einsum('sp,npc->nsc', B, g.astype(jnp.bfloat16),
                               preferred_element_type=f32)
    return acc[:, :, :C].reshape(N, H, W, C).transpose(0, 3, 1, 2)


# ---------------------------------------------------------------------------
# Reference 2: independent full-f32 formulation of the module (mean pooling,
# separable bilinear), unpadded; loose tolerance covers the bf16 operand cast.
# ---------------------------------------------------------------------------
def reference_fp32(x_nchw, params, pool_sizes):
    N, C, H, W = x_nchw.shape
    n_paths = len(pool_sizes)
    cp = C // n_paths
    eps = 1e-5
    x = jnp.transpose(x_nchw, (0, 2, 3, 1))                       # NHWC
    wf = params["wf"]
    acc = jnp.einsum('nhwc,co->nhwo', x, wf[:C]) + params["bias"]
    for p, ps in enumerate(pool_sizes):
        k = H // ps
        oh = (H - k) // k + 1
        ow = (W - k) // k + 1
        pooled = x[:, :oh * k, :ow * k, :].reshape(N, oh, k, ow, k, C).mean(axis=(2, 4))
        pr = params["paths"][p]
        conv = jnp.einsum('npqc,cd->npqd', pooled, pr["w"])
        inv = pr["gamma"] / jnp.sqrt(pr["var"] + eps)
        feat = jnp.maximum((conv - pr["mean"]) * inv + pr["beta"], 0.0)
        uh = jnp.asarray(_bilinear_matrix(H, oh))
        uw = jnp.asarray(_bilinear_matrix(W, ow))
        up = jnp.einsum('hp,wq,npqd->nhwd', uh, uw, feat)
        acc = acc + jnp.einsum('nhwd,do->nhwo', up, wf[C + p * cp: C + (p + 1) * cp])
    return jnp.transpose(acc, (0, 3, 1, 2))


if __name__ == "__main__":
    in_channels = 4
    pool_sizes = (1, 2, 4, 8)
    N, H, W = 2, 16, 16

    key = jax.random.PRNGKey(0)
    kx, kp = jax.random.split(key)
    x = jax.random.normal(kx, (N, in_channels, H, W), jnp.float32)
    params = init_params(kp, in_channels, pool_sizes)
    ops = prepare_operands(params, in_channels, pool_sizes, H, W)

    out = pyramid_pooling_forward(x, ops, pool_sizes)
    out = jax.block_until_ready(out)
    assert out.shape == (N, in_channels, H, W), out.shape

    # tight check: identical math + identical bf16 quantization, plain JAX
    ref_q = reference_same_math(x, ops, pool_sizes)
    np.testing.assert_allclose(np.asarray(out), np.asarray(ref_q), atol=2e-3, rtol=2e-3)

    # loose check: independent full-f32 formulation (tolerance covers bf16 operands)
    ref_f = reference_fp32(x, params, pool_sizes)
    np.testing.assert_allclose(np.asarray(out), np.asarray(ref_f), atol=3e-2, rtol=3e-2)

    print("KERNEL_OK")
</pallas_src>

<mosaic_0001>
module attributes {stable_mosaic.version = 11 : i64} {
  func.func @kernel(%arg0: i32, %arg1: memref<1x256x128xbf16, #tpu.memory_space<vmem>>, %arg2: memref<1x256xbf16, #tpu.memory_space<vmem>>, %arg3: memref<256x1xbf16, #tpu.memory_space<vmem>>, %arg4: memref<128x128xbf16, #tpu.memory_space<vmem>>, %arg5: memref<1x128xf32, #tpu.memory_space<vmem>>, %arg6: memref<128x128xbf16, #tpu.memory_space<vmem>>, %arg7: memref<4x256xbf16, #tpu.memory_space<vmem>>, %arg8: memref<256x4xbf16, #tpu.memory_space<vmem>>, %arg9: memref<128x128xbf16, #tpu.memory_space<vmem>>, %arg10: memref<1x128xf32, #tpu.memory_space<vmem>>, %arg11: memref<128x128xbf16, #tpu.memory_space<vmem>>, %arg12: memref<16x256xbf16, #tpu.memory_space<vmem>>, %arg13: memref<256x16xbf16, #tpu.memory_space<vmem>>, %arg14: memref<128x128xbf16, #tpu.memory_space<vmem>>, %arg15: memref<1x128xf32, #tpu.memory_space<vmem>>, %arg16: memref<128x128xbf16, #tpu.memory_space<vmem>>, %arg17: memref<64x256xbf16, #tpu.memory_space<vmem>>, %arg18: memref<256x64xbf16, #tpu.memory_space<vmem>>, %arg19: memref<128x128xbf16, #tpu.memory_space<vmem>>, %arg20: memref<1x128xf32, #tpu.memory_space<vmem>>, %arg21: memref<128x128xbf16, #tpu.memory_space<vmem>>, %arg22: memref<128x128xbf16, #tpu.memory_space<vmem>>, %arg23: memref<1x128xf32, #tpu.memory_space<vmem>>, %arg24: memref<1x256x128xf32, #tpu.memory_space<vmem>>) attributes {dimension_semantics = [#tpu.dimension_semantics<parallel>], iteration_bounds = array<i64: 2>, scalar_prefetch = 0 : i64, scratch_operands = 0 : i64, tpu.core_type = #tpu.core_type<tc>, window_params = [{transform_indices = @transform_0, window_bounds = array<i64: 1, 256, 128>}, {pipeline_mode = #tpu.pipeline_mode<synchronous>, transform_indices = @transform_1, window_bounds = array<i64: 1, 256>}, {pipeline_mode = #tpu.pipeline_mode<synchronous>, transform_indices = @transform_2, window_bounds = array<i64: 256, 1>}, {pipeline_mode = #tpu.pipeline_mode<synchronous>, transform_indices = @transform_3, window_bounds = array<i64: 128, 128>}, {pipeline_mode = #tpu.pipeline_mode<synchronous>, transform_indices = @transform_4, window_bounds = array<i64: 1, 128>}, {pipeline_mode = #tpu.pipeline_mode<synchronous>, transform_indices = @transform_5, window_bounds = array<i64: 128, 128>}, {pipeline_mode = #tpu.pipeline_mode<synchronous>, transform_indices = @transform_6, window_bounds = array<i64: 4, 256>}, {pipeline_mode = #tpu.pipeline_mode<synchronous>, transform_indices = @transform_7, window_bounds = array<i64: 256, 4>}, {pipeline_mode = #tpu.pipeline_mode<synchronous>, transform_indices = @transform_8, window_bounds = array<i64: 128, 128>}, {pipeline_mode = #tpu.pipeline_mode<synchronous>, transform_indices = @transform_9, window_bounds = array<i64: 1, 128>}, {pipeline_mode = #tpu.pipeline_mode<synchronous>, transform_indices = @transform_10, window_bounds = array<i64: 128, 128>}, {pipeline_mode = #tpu.pipeline_mode<synchronous>, transform_indices = @transform_11, window_bounds = array<i64: 16, 256>}, {pipeline_mode = #tpu.pipeline_mode<synchronous>, transform_indices = @transform_12, window_bounds = array<i64: 256, 16>}, {pipeline_mode = #tpu.pipeline_mode<synchronous>, transform_indices = @transform_13, window_bounds = array<i64: 128, 128>}, {pipeline_mode = #tpu.pipeline_mode<synchronous>, transform_indices = @transform_14, window_bounds = array<i64: 1, 128>}, {pipeline_mode = #tpu.pipeline_mode<synchronous>, transform_indices = @transform_15, window_bounds = array<i64: 128, 128>}, {pipeline_mode = #tpu.pipeline_mode<synchronous>, transform_indices = @transform_16, window_bounds = array<i64: 64, 256>}, {pipeline_mode = #tpu.pipeline_mode<synchronous>, transform_indices = @transform_17, window_bounds = array<i64: 256, 64>}, {pipeline_mode = #tpu.pipeline_mode<synchronous>, transform_indices = @transform_18, window_bounds = array<i64: 128, 128>}, {pipeline_mode = #tpu.pipeline_mode<synchronous>, transform_indices = @transform_19, window_bounds = array<i64: 1, 128>}, {pipeline_mode = #tpu.pipeline_mode<synchronous>, transform_indices = @transform_20, window_bounds = array<i64: 128, 128>}, {pipeline_mode = #tpu.pipeline_mode<synchronous>, transform_indices = @transform_21, window_bounds = array<i64: 128, 128>}, {pipeline_mode = #tpu.pipeline_mode<synchronous>, transform_indices = @transform_22, window_bounds = array<i64: 1, 128>}, {transform_indices = @transform_23, window_bounds = array<i64: 1, 256, 128>}]} {
    %c0 = arith.constant 0 : index
    %c0_0 = arith.constant 0 : index
    %c0_1 = arith.constant 0 : index
    %0 = vector.load %arg1[%c0, %c0_0, %c0_1] : memref<1x256x128xbf16, #tpu.memory_space<vmem>>, vector<1x256x128xbf16>
    %1 = vector.shape_cast %0 : vector<1x256x128xbf16> to vector<256x128xbf16>
    %c0_2 = arith.constant 0 : index
    %c0_3 = arith.constant 0 : index
    %2 = vector.load %arg22[%c0_2, %c0_3] : memref<128x128xbf16, #tpu.memory_space<vmem>>, vector<128x128xbf16>
    %cst = arith.constant dense<0.000000e+00> : vector<256x128xf32>
    %3 = tpu.matmul %1, %2, %cst {dimension_numbers = #tpu.dot_dimension_numbers<[1], [0], [0], [1], [0, 0, 1, 1], [], []>} : vector<256x128xbf16>, vector<128x128xbf16>, vector<256x128xf32> -> vector<256x128xf32>
    %c0_4 = arith.constant 0 : index
    %c0_5 = arith.constant 0 : index
    %4 = vector.load %arg23[%c0_4, %c0_5] : memref<1x128xf32, #tpu.memory_space<vmem>>, vector<1x128xf32>
    %5 = vector.broadcast %4 : vector<1x128xf32> to vector<256x128xf32>
    %6 = arith.addf %3, %5 : vector<256x128xf32>
    %c0_6 = arith.constant 0 : index
    %c0_7 = arith.constant 0 : index
    %7 = vector.load %arg2[%c0_6, %c0_7] : memref<1x256xbf16, #tpu.memory_space<vmem>>, vector<1x256xbf16>
    %c0_8 = arith.constant 0 : index
    %c0_9 = arith.constant 0 : index
    %8 = vector.load %arg3[%c0_8, %c0_9] : memref<256x1xbf16, #tpu.memory_space<vmem>>, vector<256x1xbf16>
    %c0_10 = arith.constant 0 : index
    %c0_11 = arith.constant 0 : index
    %9 = vector.load %arg4[%c0_10, %c0_11] : memref<128x128xbf16, #tpu.memory_space<vmem>>, vector<128x128xbf16>
    %c0_12 = arith.constant 0 : index
    %c0_13 = arith.constant 0 : index
    %10 = vector.load %arg5[%c0_12, %c0_13] : memref<1x128xf32, #tpu.memory_space<vmem>>, vector<1x128xf32>
    %c0_14 = arith.constant 0 : index
    %c0_15 = arith.constant 0 : index
    %11 = vector.load %arg6[%c0_14, %c0_15] : memref<128x128xbf16, #tpu.memory_space<vmem>>, vector<128x128xbf16>
    %cst_16 = arith.constant dense<0.000000e+00> : vector<1x128xf32>
    %12 = tpu.matmul %7, %1, %cst_16 {dimension_numbers = #tpu.dot_dimension_numbers<[1], [0], [0], [1], [0, 0, 1, 1], [], []>} : vector<1x256xbf16>, vector<256x128xbf16>, vector<1x128xf32> -> vector<1x128xf32>
    %13 = arith.truncf %12 : vector<1x128xf32> to vector<1x128xbf16>
    %cst_17 = arith.constant dense<0.000000e+00> : vector<1x128xf32>
    %14 = tpu.matmul %13, %9, %cst_17 {dimension_numbers = #tpu.dot_dimension_numbers<[1], [0], [0], [1], [0, 0, 1, 1], [], []>} : vector<1x128xbf16>, vector<128x128xbf16>, vector<1x128xf32> -> vector<1x128xf32>
    %15 = arith.addf %14, %10 : vector<1x128xf32>
    %cst_18 = arith.constant 0.000000e+00 : f32
    %16 = vector.broadcast %cst_18 : f32 to vector<1x128xf32>
    %17 = arith.maximumf %15, %16 : vector<1x128xf32>
    %18 = arith.truncf %17 : vector<1x128xf32> to vector<1x128xbf16>
    %cst_19 = arith.constant dense<0.000000e+00> : vector<1x128xf32>
    %19 = tpu.matmul %18, %11, %cst_19 {dimension_numbers = #tpu.dot_dimension_numbers<[1], [0], [0], [1], [0, 0, 1, 1], [], []>} : vector<1x128xbf16>, vector<128x128xbf16>, vector<1x128xf32> -> vector<1x128xf32>
    %20 = arith.truncf %19 : vector<1x128xf32> to vector<1x128xbf16>
    %cst_20 = arith.constant dense<0.000000e+00> : vector<256x128xf32>
    %21 = tpu.matmul %8, %20, %cst_20 {dimension_numbers = #tpu.dot_dimension_numbers<[1], [0], [0], [1], [0, 0, 1, 1], [], []>} : vector<256x1xbf16>, vector<1x128xbf16>, vector<256x128xf32> -> vector<256x128xf32>
    %22 = arith.addf %6, %21 : vector<256x128xf32>
    %c0_21 = arith.constant 0 : index
    %c0_22 = arith.constant 0 : index
    %23 = vector.load %arg7[%c0_21, %c0_22] : memref<4x256xbf16, #tpu.memory_space<vmem>>, vector<4x256xbf16>
    %c0_23 = arith.constant 0 : index
    %c0_24 = arith.constant 0 : index
    %24 = vector.load %arg8[%c0_23, %c0_24] : memref<256x4xbf16, #tpu.memory_space<vmem>>, vector<256x4xbf16>
    %c0_25 = arith.constant 0 : index
    %c0_26 = arith.constant 0 : index
    %25 = vector.load %arg9[%c0_25, %c0_26] : memref<128x128xbf16, #tpu.memory_space<vmem>>, vector<128x128xbf16>
    %c0_27 = arith.constant 0 : index
    %c0_28 = arith.constant 0 : index
    %26 = vector.load %arg10[%c0_27, %c0_28] : memref<1x128xf32, #tpu.memory_space<vmem>>, vector<1x128xf32>
    %c0_29 = arith.constant 0 : index
    %c0_30 = arith.constant 0 : index
    %27 = vector.load %arg11[%c0_29, %c0_30] : memref<128x128xbf16, #tpu.memory_space<vmem>>, vector<128x128xbf16>
    %cst_31 = arith.constant dense<0.000000e+00> : vector<4x128xf32>
    %28 = tpu.matmul %23, %1, %cst_31 {dimension_numbers = #tpu.dot_dimension_numbers<[1], [0], [0], [1], [0, 0, 1, 1], [], []>} : vector<4x256xbf16>, vector<256x128xbf16>, vector<4x128xf32> -> vector<4x128xf32>
    %29 = arith.truncf %28 : vector<4x128xf32> to vector<4x128xbf16>
    %cst_32 = arith.constant dense<0.000000e+00> : vector<4x128xf32>
    %30 = tpu.matmul %29, %25, %cst_32 {dimension_numbers = #tpu.dot_dimension_numbers<[1], [0], [0], [1], [0, 0, 1, 1], [], []>} : vector<4x128xbf16>, vector<128x128xbf16>, vector<4x128xf32> -> vector<4x128xf32>
    %31 = vector.broadcast %26 : vector<1x128xf32> to vector<4x128xf32>
    %32 = arith.addf %30, %31 : vector<4x128xf32>
    %cst_33 = arith.constant 0.000000e+00 : f32
    %33 = vector.broadcast %cst_33 : f32 to vector<4x128xf32>
    %34 = arith.maximumf %32, %33 : vector<4x128xf32>
    %35 = arith.truncf %34 : vector<4x128xf32> to vector<4x128xbf16>
    %cst_34 = arith.constant dense<0.000000e+00> : vector<4x128xf32>
    %36 = tpu.matmul %35, %27, %cst_34 {dimension_numbers = #tpu.dot_dimension_numbers<[1], [0], [0], [1], [0, 0, 1, 1], [], []>} : vector<4x128xbf16>, vector<128x128xbf16>, vector<4x128xf32> -> vector<4x128xf32>
    %37 = arith.truncf %36 : vector<4x128xf32> to vector<4x128xbf16>
    %cst_35 = arith.constant dense<0.000000e+00> : vector<256x128xf32>
    %38 = tpu.matmul %24, %37, %cst_35 {dimension_numbers = #tpu.dot_dimension_numbers<[1], [0], [0], [1], [0, 0, 1, 1], [], []>} : vector<256x4xbf16>, vector<4x128xbf16>, vector<256x128xf32> -> vector<256x128xf32>
    %39 = arith.addf %22, %38 : vector<256x128xf32>
    %c0_36 = arith.constant 0 : index
    %c0_37 = arith.constant 0 : index
    %40 = vector.load %arg12[%c0_36, %c0_37] : memref<16x256xbf16, #tpu.memory_space<vmem>>, vector<16x256xbf16>
    %c0_38 = arith.constant 0 : index
    %c0_39 = arith.constant 0 : index
    %41 = vector.load %arg13[%c0_38, %c0_39] : memref<256x16xbf16, #tpu.memory_space<vmem>>, vector<256x16xbf16>
    %c0_40 = arith.constant 0 : index
    %c0_41 = arith.constant 0 : index
    %42 = vector.load %arg14[%c0_40, %c0_41] : memref<128x128xbf16, #tpu.memory_space<vmem>>, vector<128x128xbf16>
    %c0_42 = arith.constant 0 : index
    %c0_43 = arith.constant 0 : index
    %43 = vector.load %arg15[%c0_42, %c0_43] : memref<1x128xf32, #tpu.memory_space<vmem>>, vector<1x128xf32>
    %c0_44 = arith.constant 0 : index
    %c0_45 = arith.constant 0 : index
    %44 = vector.load %arg16[%c0_44, %c0_45] : memref<128x128xbf16, #tpu.memory_space<vmem>>, vector<128x128xbf16>
    %cst_46 = arith.constant dense<0.000000e+00> : vector<16x128xf32>
    %45 = tpu.matmul %40, %1, %cst_46 {dimension_numbers = #tpu.dot_dimension_numbers<[1], [0], [0], [1], [0, 0, 1, 1], [], []>} : vector<16x256xbf16>, vector<256x128xbf16>, vector<16x128xf32> -> vector<16x128xf32>
    %46 = arith.truncf %45 : vector<16x128xf32> to vector<16x128xbf16>
    %cst_47 = arith.constant dense<0.000000e+00> : vector<16x128xf32>
    %47 = tpu.matmul %46, %42, %cst_47 {dimension_numbers = #tpu.dot_dimension_numbers<[1], [0], [0], [1], [0, 0, 1, 1], [], []>} : vector<16x128xbf16>, vector<128x128xbf16>, vector<16x128xf32> -> vector<16x128xf32>
    %48 = vector.broadcast %43 : vector<1x128xf32> to vector<16x128xf32>
    %49 = arith.addf %47, %48 : vector<16x128xf32>
    %cst_48 = arith.constant 0.000000e+00 : f32
    %50 = vector.broadcast %cst_48 : f32 to vector<16x128xf32>
    %51 = arith.maximumf %49, %50 : vector<16x128xf32>
    %52 = arith.truncf %51 : vector<16x128xf32> to vector<16x128xbf16>
    %cst_49 = arith.constant dense<0.000000e+00> : vector<16x128xf32>
    %53 = tpu.matmul %52, %44, %cst_49 {dimension_numbers = #tpu.dot_dimension_numbers<[1], [0], [0], [1], [0, 0, 1, 1], [], []>} : vector<16x128xbf16>, vector<128x128xbf16>, vector<16x128xf32> -> vector<16x128xf32>
    %54 = arith.truncf %53 : vector<16x128xf32> to vector<16x128xbf16>
    %cst_50 = arith.constant dense<0.000000e+00> : vector<256x128xf32>
    %55 = tpu.matmul %41, %54, %cst_50 {dimension_numbers = #tpu.dot_dimension_numbers<[1], [0], [0], [1], [0, 0, 1, 1], [], []>} : vector<256x16xbf16>, vector<16x128xbf16>, vector<256x128xf32> -> vector<256x128xf32>
    %56 = arith.addf %39, %55 : vector<256x128xf32>
    %c0_51 = arith.constant 0 : index
    %c0_52 = arith.constant 0 : index
    %57 = vector.load %arg17[%c0_51, %c0_52] : memref<64x256xbf16, #tpu.memory_space<vmem>>, vector<64x256xbf16>
    %c0_53 = arith.constant 0 : index
    %c0_54 = arith.constant 0 : index
    %58 = vector.load %arg18[%c0_53, %c0_54] : memref<256x64xbf16, #tpu.memory_space<vmem>>, vector<256x64xbf16>
    %c0_55 = arith.constant 0 : index
    %c0_56 = arith.constant 0 : index
    %59 = vector.load %arg19[%c0_55, %c0_56] : memref<128x128xbf16, #tpu.memory_space<vmem>>, vector<128x128xbf16>
    %c0_57 = arith.constant 0 : index
    %c0_58 = arith.constant 0 : index
    %60 = vector.load %arg20[%c0_57, %c0_58] : memref<1x128xf32, #tpu.memory_space<vmem>>, vector<1x128xf32>
    %c0_59 = arith.constant 0 : index
    %c0_60 = arith.constant 0 : index
    %61 = vector.load %arg21[%c0_59, %c0_60] : memref<128x128xbf16, #tpu.memory_space<vmem>>, vector<128x128xbf16>
    %cst_61 = arith.constant dense<0.000000e+00> : vector<64x128xf32>
    %62 = tpu.matmul %57, %1, %cst_61 {dimension_numbers = #tpu.dot_dimension_numbers<[1], [0], [0], [1], [0, 0, 1, 1], [], []>} : vector<64x256xbf16>, vector<256x128xbf16>, vector<64x128xf32> -> vector<64x128xf32>
    %63 = arith.truncf %62 : vector<64x128xf32> to vector<64x128xbf16>
    %cst_62 = arith.constant dense<0.000000e+00> : vector<64x128xf32>
    %64 = tpu.matmul %63, %59, %cst_62 {dimension_numbers = #tpu.dot_dimension_numbers<[1], [0], [0], [1], [0, 0, 1, 1], [], []>} : vector<64x128xbf16>, vector<128x128xbf16>, vector<64x128xf32> -> vector<64x128xf32>
    %65 = vector.broadcast %60 : vector<1x128xf32> to vector<64x128xf32>
    %66 = arith.addf %64, %65 : vector<64x128xf32>
    %cst_63 = arith.constant 0.000000e+00 : f32
    %67 = vector.broadcast %cst_63 : f32 to vector<64x128xf32>
    %68 = arith.maximumf %66, %67 : vector<64x128xf32>
    %69 = arith.truncf %68 : vector<64x128xf32> to vector<64x128xbf16>
    %cst_64 = arith.constant dense<0.000000e+00> : vector<64x128xf32>
    %70 = tpu.matmul %69, %61, %cst_64 {dimension_numbers = #tpu.dot_dimension_numbers<[1], [0], [0], [1], [0, 0, 1, 1], [], []>} : vector<64x128xbf16>, vector<128x128xbf16>, vector<64x128xf32> -> vector<64x128xf32>
    %71 = arith.truncf %70 : vector<64x128xf32> to vector<64x128xbf16>
    %cst_65 = arith.constant dense<0.000000e+00> : vector<256x128xf32>
    %72 = tpu.matmul %58, %71, %cst_65 {dimension_numbers = #tpu.dot_dimension_numbers<[1], [0], [0], [1], [0, 0, 1, 1], [], []>} : vector<256x64xbf16>, vector<64x128xbf16>, vector<256x128xf32> -> vector<256x128xf32>
    %73 = arith.addf %56, %72 : vector<256x128xf32>
    %c0_66 = arith.constant 0 : index
    %c0_67 = arith.constant 0 : index
    %c0_68 = arith.constant 0 : index
    %74 = vector.load %arg24[%c0_66, %c0_67, %c0_68] : memref<1x256x128xf32, #tpu.memory_space<vmem>>, vector<1x256x128xf32>
    %75 = vector.shape_cast %74 : vector<1x256x128xf32> to vector<256x128xf32>
    %76 = vector.shape_cast %73 : vector<256x128xf32> to vector<1x256x128xf32>
    tpu.vector_store %arg24[%c0_66, %c0_67, %c0_68], %76 {strides = array<i32>} : memref<1x256x128xf32, #tpu.memory_space<vmem>>, vector<1x256x128xf32>,
    return
  }
  func.func @transform_0(%arg0: i32) -> (i32, i32, i32) {
    %c0_i32 = arith.constant 0 : i32
    %c0_i32_0 = arith.constant 0 : i32
    %c0_i32_1 = arith.constant 0 : i32
    return %arg0, %c0_i32, %c0_i32_0 : i32, i32, i32
  }
  func.func @transform_1(%arg0: i32) -> (i32, i32) {
    %c0_i32 = arith.constant 0 : i32
    %c0_i32_0 = arith.constant 0 : i32
    %c0_i32_1 = arith.constant 0 : i32
    return %c0_i32, %c0_i32_0 : i32, i32
  }
  func.func @transform_2(%arg0: i32) -> (i32, i32) {
    %c0_i32 = arith.constant 0 : i32
    %c0_i32_0 = arith.constant 0 : i32
    %c0_i32_1 = arith.constant 0 : i32
    return %c0_i32, %c0_i32_0 : i32, i32
  }
  func.func @transform_3(%arg0: i32) -> (i32, i32) {
    %c0_i32 = arith.constant 0 : i32
    %c0_i32_0 = arith.constant 0 : i32
    %c0_i32_1 = arith.constant 0 : i32
    return %c0_i32, %c0_i32_0 : i32, i32
  }
  func.func @transform_4(%arg0: i32) -> (i32, i32) {
    %c0_i32 = arith.constant 0 : i32
    %c0_i32_0 = arith.constant 0 : i32
    %c0_i32_1 = arith.constant 0 : i32
    return %c0_i32, %c0_i32_0 : i32, i32
  }
  func.func @transform_5(%arg0: i32) -> (i32, i32) {
    %c0_i32 = arith.constant 0 : i32
    %c0_i32_0 = arith.constant 0 : i32
    %c0_i32_1 = arith.constant 0 : i32
    return %c0_i32, %c0_i32_0 : i32, i32
  }
  func.func @transform_6(%arg0: i32) -> (i32, i32) {
    %c0_i32 = arith.constant 0 : i32
    %c0_i32_0 = arith.constant 0 : i32
    %c0_i32_1 = arith.constant 0 : i32
    return %c0_i32, %c0_i32_0 : i32, i32
  }
  func.func @transform_7(%arg0: i32) -> (i32, i32) {
    %c0_i32 = arith.constant 0 : i32
    %c0_i32_0 = arith.constant 0 : i32
    %c0_i32_1 = arith.constant 0 : i32
    return %c0_i32, %c0_i32_0 : i32, i32
  }
  func.func @transform_8(%arg0: i32) -> (i32, i32) {
    %c0_i32 = arith.constant 0 : i32
    %c0_i32_0 = arith.constant 0 : i32
    %c0_i32_1 = arith.constant 0 : i32
    return %c0_i32, %c0_i32_0 : i32, i32
  }
  func.func @transform_9(%arg0: i32) -> (i32, i32) {
    %c0_i32 = arith.constant 0 : i32
    %c0_i32_0 = arith.constant 0 : i32
    %c0_i32_1 = arith.constant 0 : i32
    return %c0_i32, %c0_i32_0 : i32, i32
  }
  func.func @transform_10(%arg0: i32) -> (i32, i32) {
    %c0_i32 = arith.constant 0 : i32
    %c0_i32_0 = arith.constant 0 : i32
    %c0_i32_1 = arith.constant 0 : i32
    return %c0_i32, %c0_i32_0 : i32, i32
  }
  func.func @transform_11(%arg0: i32) -> (i32, i32) {
    %c0_i32 = arith.constant 0 : i32
    %c0_i32_0 = arith.constant 0 : i32
    %c0_i32_1 = arith.constant 0 : i32
    return %c0_i32, %c0_i32_0 : i32, i32
  }
  func.func @transform_12(%arg0: i32) -> (i32, i32) {
    %c0_i32 = arith.constant 0 : i32
    %c0_i32_0 = arith.constant 0 : i32
    %c0_i32_1 = arith.constant 0 : i32
    return %c0_i32, %c0_i32_0 : i32, i32
  }
  func.func @transform_13(%arg0: i32) -> (i32, i32) {
    %c0_i32 = arith.constant 0 : i32
    %c0_i32_0 = arith.constant 0 : i32
    %c0_i32_1 = arith.constant 0 : i32
    return %c0_i32, %c0_i32_0 : i32, i32
  }
  func.func @transform_14(%arg0: i32) -> (i32, i32) {
    %c0_i32 = arith.constant 0 : i32
    %c0_i32_0 = arith.constant 0 : i32
    %c0_i32_1 = arith.constant 0 : i32
    return %c0_i32, %c0_i32_0 : i32, i32
  }
  func.func @transform_15(%arg0: i32) -> (i32, i32) {
    %c0_i32 = arith.constant 0 : i32
    %c0_i32_0 = arith.constant 0 : i32
    %c0_i32_1 = arith.constant 0 : i32
    return %c0_i32, %c0_i32_0 : i32, i32
  }
  func.func @transform_16(%arg0: i32) -> (i32, i32) {
    %c0_i32 = arith.constant 0 : i32
    %c0_i32_0 = arith.constant 0 : i32
    %c0_i32_1 = arith.constant 0 : i32
    return %c0_i32, %c0_i32_0 : i32, i32
  }
  func.func @transform_17(%arg0: i32) -> (i32, i32) {
    %c0_i32 = arith.constant 0 : i32
    %c0_i32_0 = arith.constant 0 : i32
    %c0_i32_1 = arith.constant 0 : i32
    return %c0_i32, %c0_i32_0 : i32, i32
  }
  func.func @transform_18(%arg0: i32) -> (i32, i32) {
    %c0_i32 = arith.constant 0 : i32
    %c0_i32_0 = arith.constant 0 : i32
    %c0_i32_1 = arith.constant 0 : i32
    return %c0_i32, %c0_i32_0 : i32, i32
  }
  func.func @transform_19(%arg0: i32) -> (i32, i32) {
    %c0_i32 = arith.constant 0 : i32
    %c0_i32_0 = arith.constant 0 : i32
    %c0_i32_1 = arith.constant 0 : i32
    return %c0_i32, %c0_i32_0 : i32, i32
  }
  func.func @transform_20(%arg0: i32) -> (i32, i32) {
    %c0_i32 = arith.constant 0 : i32
    %c0_i32_0 = arith.constant 0 : i32
    %c0_i32_1 = arith.constant 0 : i32
    return %c0_i32, %c0_i32_0 : i32, i32
  }
  func.func @transform_21(%arg0: i32) -> (i32, i32) {
    %c0_i32 = arith.constant 0 : i32
    %c0_i32_0 = arith.constant 0 : i32
    %c0_i32_1 = arith.constant 0 : i32
    return %c0_i32, %c0_i32_0 : i32, i32
  }
  func.func @transform_22(%arg0: i32) -> (i32, i32) {
    %c0_i32 = arith.constant 0 : i32
    %c0_i32_0 = arith.constant 0 : i32
    %c0_i32_1 = arith.constant 0 : i32
    return %c0_i32, %c0_i32_0 : i32, i32
  }
  func.func @transform_23(%arg0: i32) -> (i32, i32, i32) {
    %c0_i32 = arith.constant 0 : i32
    %c0_i32_0 = arith.constant 0 : i32
    %c0_i32_1 = arith.constant 0 : i32
    return %arg0, %c0_i32, %c0_i32_0 : i32, i32, i32
  }
}

</mosaic_0001>

<llo_original>
// kernel: tpu_custom_call.1
$region0: #{tpu_custom_call.1}
  #allocation0 [shape = 'u32[]', space=smem, size = 0x4, offset = 0x4, fixed_abs, tag = 'smem constant byte address 0x4 - core index']
  #allocation1 [shape = 'u32[144,128]{1,0:T(1,128)}', space=vmem, size = 0x12000, scoped, tag = 'internal scratch']
  %s0 = inlined_call_operand.vmem [shape: bf16[2,256,128], index: 0, kind: input, shape index: {}]
  %s1 = inlined_call_operand.vmem [shape: bf16[1,256], index: 1, kind: input, shape index: {}]
  %s2 = inlined_call_operand.vmem [shape: bf16[256,1], index: 2, kind: input, shape index: {}]
  %s3 = inlined_call_operand.vmem [shape: bf16[128,128], index: 3, kind: input, shape index: {}]
  %s4 = inlined_call_operand.vmem [shape: f32[1,128], index: 4, kind: input, shape index: {}]
  %s5 = inlined_call_operand.vmem [shape: bf16[128,128], index: 5, kind: input, shape index: {}]
  %s6 = inlined_call_operand.hbm [shape: bf16[4,256], index: 6, kind: input, shape index: {}]
  %s7 = inlined_call_operand.vmem [shape: bf16[256,4], index: 7, kind: input, shape index: {}]
  %s8 = inlined_call_operand.vmem [shape: bf16[128,128], index: 8, kind: input, shape index: {}]
  %s9 = inlined_call_operand.hbm [shape: f32[1,128], index: 9, kind: input, shape index: {}]
  %s10 = inlined_call_operand.vmem [shape: bf16[128,128], index: 10, kind: input, shape index: {}]
  %s11 = inlined_call_operand.hbm [shape: bf16[16,256], index: 11, kind: input, shape index: {}]
  %s12 = inlined_call_operand.vmem [shape: bf16[256,16], index: 12, kind: input, shape index: {}]
  %s13 = inlined_call_operand.vmem [shape: bf16[128,128], index: 13, kind: input, shape index: {}]
  %s14 = inlined_call_operand.vmem [shape: f32[1,128], index: 14, kind: input, shape index: {}]
  %s15 = inlined_call_operand.hbm [shape: bf16[128,128], index: 15, kind: input, shape index: {}]
  %s16 = inlined_call_operand.hbm [shape: bf16[64,256], index: 16, kind: input, shape index: {}]
  %s17 = inlined_call_operand.vmem [shape: bf16[256,64], index: 17, kind: input, shape index: {}]
  %s18 = inlined_call_operand.hbm [shape: bf16[128,128], index: 18, kind: input, shape index: {}]
  %s19 = inlined_call_operand.vmem [shape: f32[1,128], index: 19, kind: input, shape index: {}]
  %s20 = inlined_call_operand.hbm [shape: bf16[128,128], index: 20, kind: input, shape index: {}]
  %s21 = inlined_call_operand.hbm [shape: bf16[128,128], index: 21, kind: input, shape index: {}]
  %s22 = inlined_call_operand.vmem [shape: f32[1,128], index: 22, kind: input, shape index: {}]
  %s23 = inlined_call_operand.hbm [shape: f32[2,256,128], index: 23, kind: output, shape index: {}]
  %s24 = sld [smem:[#allocation0]]
  $region157: #{tpu_custom_call.1} parent=0
    _
  %s26 = ssub.s32 1, %s24
  %s27 = scalar_select 0, %s26, %s24
  $region1: #{tpu_custom_call.1} parent=0
    #allocation2 [shape = 'u8[2048]{0}', space=vmem, size = 0x800, scoped, tag = 'input window, operand 6, single buffered']
    #allocation3 [shape = 's32[2]{0}', space=sflag, size = 0x8, scoped, tag = 'scoped memory for tpu_custom_call.1']
    #allocation4 [shape = 's32[2]{0}', space=sflag, size = 0x8, scoped, tag = 'scoped memory for tpu_custom_call.1']
    #allocation5 [shape = 'u8[512]{0}', space=vmem, size = 0x400, scoped, tag = 'input window, operand 9, single buffered']
    #allocation6 [shape = 's32[1]{0}', space=sflag, size = 0x4, scoped, tag = 'scoped memory for tpu_custom_call.1']
    #allocation7 [shape = 'u8[8192]{0}', space=vmem, size = 0x2000, scoped, tag = 'input window, operand 11, single buffered']
    #allocation8 [shape = 'u8[32768]{0}', space=vmem, size = 0x8000, scoped, tag = 'input window, operand 15, single buffered']
    #allocation9 [shape = 's32[1]{0}', space=sflag, size = 0x4, scoped, tag = 'scoped memory for tpu_custom_call.1']
    #allocation10 [shape = 'u8[32768]{0}', space=vmem, size = 0x8000, scoped, tag = 'input window, operand 16, single buffered']
    #allocation11 [shape = 'u8[32768]{0}', space=vmem, size = 0x8000, scoped, tag = 'input window, operand 18, single buffered']
    #allocation12 [shape = 's32[1]{0}', space=sflag, size = 0x4, scoped, tag = 'scoped memory for tpu_custom_call.1']
    #allocation13 [shape = 'u8[32768]{0}', space=vmem, size = 0x8000, scoped, tag = 'input window, operand 20, single buffered']
    #allocation14 [shape = 'u8[32768]{0}', space=vmem, size = 0x8000, scoped, tag = 'input window, operand 21, single buffered']
    #allocation15 [shape = 's32[1]{0}', space=sflag, size = 0x4, scoped, tag = 'scoped memory for tpu_custom_call.1']
    #allocation16 [shape = 'u8[262144]{0}', space=vmem, size = 0x40000, scoped, tag = 'output window, operand 0']
    %28 = vsyncpa [#allocation3], 0
    %29 = vsyncpa [#allocation6], 0
    %30 = vsyncpa [#allocation9], 0
    %31 = vsyncpa [#allocation12], 0
    %32 = vsyncpa [#allocation15], 0
    %33 = vsyncpa [#allocation4], 0
    %s34 = scalar_lea.sflag [#allocation4], 1
    %35 = vsyncpa %s34, 0
    loop: start=0, step=1, limit=4
    $region2: #{tpu_custom_call.1} parent=1 // loop_pre_header
      _
    $region3: #{tpu_custom_call.1} parent=1 // loop_header
      %s37 = sphi 0, %s41
      %p38 = scmp.ge.s32.totalorder %s37, 4
      %s47 = sphi 0, %s49
      %s50 = sphi 0, %s47
      %s51 = sphi 0, %s50
      %s67 = sphi 0, %s51
      %s71 = sphi 0, %s71
      %s73 = sphi 0, %s71
      %s74 = sphi 0, %s73
      %s88 = sphi 0, %s74
      %s92 = sphi 0, %s92
      %s94 = sphi 0, %s92
      %s95 = sphi 0, %s94
      %s109 = sphi 0, %s95
      %s113 = sphi 0, %s113
      %s115 = sphi 0, %s113
      %s116 = sphi 0, %s115
      %s130 = sphi 0, %s116
      %s134 = sphi 0, %s134
      %s136 = sphi 0, %s134
      %s137 = sphi 0, %s136
      %s151 = sphi 0, %s137
      %s155 = sphi 0, %s155
      %s157 = sphi 0, %s155
      %s158 = sphi 0, %s157
      %s172 = sphi 0, %s158
      %s176 = sphi 0, %s176
      %s178 = sphi 0, %s176
      %s179 = sphi 0, %s178
      %s193 = sphi 0, %s179
      %s197 = sphi 0, %s197
      %s199 = sphi 0, %s197
      %s200 = sphi 0, %s199
      %s214 = sphi 0, %s200
      %s218 = sphi 0, %s218
      %s220 = sphi 0, %s218
      %s221 = sphi 0, %s220
      %s235 = sphi 0, %s221
      %s239 = sphi 0, %s239
      %s241 = sphi 0, %s239
      %s242 = sphi 0, %s241
      %s256 = sphi 0, %s242
      %s260 = sphi 0, %s260
      %s262 = sphi 0, %s260
      %s263 = sphi 0, %s262
      %s277 = sphi 0, %s263
      %s281 = sphi 0, %s281
      %s283 = sphi 0, %s281
      %s284 = sphi 0, %s283
      %s298 = sphi 0, %s284
      %s302 = sphi 0, %s302
      %s304 = sphi 0, %s302
      %s305 = sphi 0, %s304
      %s319 = sphi 0, %s305
      %s323 = sphi 0, %s323
      %s325 = sphi 0, %s323
      %s326 = sphi 0, %s325
      %s340 = sphi 0, %s326
      %s344 = sphi 0, %s344
      %s346 = sphi 0, %s344
      %s347 = sphi 0, %s346
      %s361 = sphi 0, %s347
      %s365 = sphi 0, %s365
      %s367 = sphi 0, %s365
      %s368 = sphi 0, %s367
      %s382 = sphi 0, %s368
      %s386 = sphi 0, %s386
      %s388 = sphi 0, %s386
      %s389 = sphi 0, %s388
      %s403 = sphi 0, %s389
      %s407 = sphi 0, %s407
      %s409 = sphi 0, %s407
      %s410 = sphi 0, %s409
      %s424 = sphi 0, %s410
      %s428 = sphi 0, %s428
      %s430 = sphi 0, %s428
      %s431 = sphi 0, %s430
      %s445 = sphi 0, %s431
      %s449 = sphi 0, %s449
      %s451 = sphi 0, %s449
      %s452 = sphi 0, %s451
      %s466 = sphi 0, %s452
      %s470 = sphi 0, %s470
      %s472 = sphi 0, %s470
      %s473 = sphi 0, %s472
      %s487 = sphi 0, %s473
      %s491 = sphi 0, %s491
      %s493 = sphi 0, %s491
      %s494 = sphi 0, %s493
      %s508 = sphi 0, %s494
      %s512 = sphi 0, %s512
      %s514 = sphi 0, %s512
      %s515 = sphi 0, %s514
      %s529 = sphi 0, %s515
      %s535 = sphi 0, %s537
      %s538 = sphi 0, %s535
      %s539 = sphi 0, %s538
      %s555 = sphi 0, %s539
    $region4: #{tpu_custom_call.1} parent=1 // loop_header_branch
      %40 = sbr.rel (%p38) target = $region8
    $region5: #{tpu_custom_call.1} parent=1 // loop_body
      %s42 = ssub.s32 %s37, 1
      %s43 = ssub.s32 %s37, 2
      %s44 = sadd.s32 %s37, 1
      %s45 = ssub.s32 %s37, %s44
      %p46 = scmp.eq.s32.totalorder %s45, 0
      %s48 = sadd.s32 %s47, 1
      %s49 = scalar_select %p46, %s47, %s48
      %p52 = pneg %p46
      %p53 = scmp.eq.s32.totalorder %s37, 1
      %p54 = por %p52, %p53
      %p55 = scmp.ne.s32.totalorder %s47, %s50
      %p56 = scmp.eq.s32.totalorder %s37, 0
      %p57 = por %p55, %p56
      %p58 = scmp.ne.s32.totalorder %s47, %s50
      %p59 = scmp.eq.s32.totalorder %s42, 1
      %p60 = por %p58, %p59
      %p61 = scmp.ne.s32.totalorder %s50, %s51
      %p62 = scmp.eq.s32.totalorder %s42, 0
      %p63 = por %p61, %p62
      %p64 = scmp.ne.s32.totalorder %s50, %s51
      %p65 = scmp.eq.s32.totalorder %s43, 1
      %p66 = por %p64, %p65
      %p68 = scmp.ne.s32.totalorder %s51, %s67
      %p69 = scmp.eq.s32.totalorder %s43, 0
      %p70 = por %p68, %p69
      %s72 = sadd.s32 %s71, 1
      %p75 = scmp.eq.s32.totalorder %s37, 1
      %p76 = scmp.ne.s32.totalorder %s71, %s73
      %p77 = scmp.eq.s32.totalorder %s37, 0
      %p78 = por %p76, %p77
      %p79 = scmp.ne.s32.totalorder %s71, %s73
      %p80 = scmp.eq.s32.totalorder %s42, 1
      %p81 = por %p79, %p80
      %p82 = scmp.ne.s32.totalorder %s73, %s74
      %p83 = scmp.eq.s32.totalorder %s42, 0
      %p84 = por %p82, %p83
      %p85 = scmp.ne.s32.totalorder %s73, %s74
      %p86 = scmp.eq.s32.totalorder %s43, 1
      %p87 = por %p85, %p86
      %p89 = scmp.ne.s32.totalorder %s74, %s88
      %p90 = scmp.eq.s32.totalorder %s43, 0
      %p91 = por %p89, %p90
      %s93 = sadd.s32 %s92, 1
      %p96 = scmp.eq.s32.totalorder %s37, 1
      %p97 = scmp.ne.s32.totalorder %s92, %s94
      %p98 = scmp.eq.s32.totalorder %s37, 0
      %p99 = por %p97, %p98
      %p100 = scmp.ne.s32.totalorder %s92, %s94
      %p101 = scmp.eq.s32.totalorder %s42, 1
      %p102 = por %p100, %p101
      %p103 = scmp.ne.s32.totalorder %s94, %s95
      %p104 = scmp.eq.s32.totalorder %s42, 0
      %p105 = por %p103, %p104
      %p106 = scmp.ne.s32.totalorder %s94, %s95
      %p107 = scmp.eq.s32.totalorder %s43, 1
      %p108 = por %p106, %p107
      %p110 = scmp.ne.s32.totalorder %s95, %s109
      %p111 = scmp.eq.s32.totalorder %s43, 0
      %p112 = por %p110, %p111
      %s114 = sadd.s32 %s113, 1
      %p117 = scmp.eq.s32.totalorder %s37, 1
      %p118 = scmp.ne.s32.totalorder %s113, %s115
      %p119 = scmp.eq.s32.totalorder %s37, 0
      %p120 = por %p118, %p119
      %p121 = scmp.ne.s32.totalorder %s113, %s115
      %p122 = scmp.eq.s32.totalorder %s42, 1
      %p123 = por %p121, %p122
      %p124 = scmp.ne.s32.totalorder %s115, %s116
      %p125 = scmp.eq.s32.totalorder %s42, 0
      %p126 = por %p124, %p125
      %p127 = scmp.ne.s32.totalorder %s115, %s116
      %p128 = scmp.eq.s32.totalorder %s43, 1
      %p129 = por %p127, %p128
      %p131 = scmp.ne.s32.totalorder %s116, %s130
      %p132 = scmp.eq.s32.totalorder %s43, 0
      %p133 = por %p131, %p132
      %s135 = sadd.s32 %s134, 1
      %p138 = scmp.eq.s32.totalorder %s37, 1
      %p139 = scmp.ne.s32.totalorder %s134, %s136
      %p140 = scmp.eq.s32.totalorder %s37, 0
      %p141 = por %p139, %p140
      %p142 = scmp.ne.s32.totalorder %s134, %s136
      %p143 = scmp.eq.s32.totalorder %s42, 1
      %p144 = por %p142, %p143
      %p145 = scmp.ne.s32.totalorder %s136, %s137
      %p146 = scmp.eq.s32.totalorder %s42, 0
      %p147 = por %p145, %p146
      %p148 = scmp.ne.s32.totalorder %s136, %s137
      %p149 = scmp.eq.s32.totalorder %s43, 1
      %p150 = por %p148, %p149
      %p152 = scmp.ne.s32.totalorder %s137, %s151
      %p153 = scmp.eq.s32.totalorder %s43, 0
      %p154 = por %p152, %p153
      %s156 = sadd.s32 %s155, 1
      %p159 = scmp.eq.s32.totalorder %s37, 1
      %p160 = scmp.ne.s32.totalorder %s155, %s157
      %p161 = scmp.eq.s32.totalorder %s37, 0
      %p162 = por %p160, %p161
      %p163 = scmp.ne.s32.totalorder %s155, %s157
      %p164 = scmp.eq.s32.totalorder %s42, 1
      %p165 = por %p163, %p164
      %p166 = scmp.ne.s32.totalorder %s157, %s158
      %p167 = scmp.eq.s32.totalorder %s42, 0
      %p168 = por %p166, %p167
      %p169 = scmp.ne.s32.totalorder %s157, %s158
      %p170 = scmp.eq.s32.totalorder %s43, 1
      %p171 = por %p169, %p170
      %p173 = scmp.ne.s32.totalorder %s158, %s172
      %p174 = scmp.eq.s32.totalorder %s43, 0
      %p175 = por %p173, %p174
      %s177 = sadd.s32 %s176, 1
      %p180 = scmp.eq.s32.totalorder %s37, 1
      %p181 = scmp.ne.s32.totalorder %s176, %s178
      %p182 = scmp.eq.s32.totalorder %s37, 0
      %p183 = por %p181, %p182
      %p184 = scmp.ne.s32.totalorder %s176, %s178
      %p185 = scmp.eq.s32.totalorder %s42, 1
      %p186 = por %p184, %p185
      %p187 = scmp.ne.s32.totalorder %s178, %s179
      %p188 = scmp.eq.s32.totalorder %s42, 0
      %p189 = por %p187, %p188
      %p190 = scmp.ne.s32.totalorder %s178, %s179
      %p191 = scmp.eq.s32.totalorder %s43, 1
      %p192 = por %p190, %p191
      %p194 = scmp.ne.s32.totalorder %s179, %s193
      %p195 = scmp.eq.s32.totalorder %s43, 0
      %p196 = por %p194, %p195
      %s198 = sadd.s32 %s197, 1
      %p201 = scmp.eq.s32.totalorder %s37, 1
      %p202 = scmp.ne.s32.totalorder %s197, %s199
      %p203 = scmp.eq.s32.totalorder %s37, 0
      %p204 = por %p202, %p203
      %p205 = scmp.ne.s32.totalorder %s197, %s199
      %p206 = scmp.eq.s32.totalorder %s42, 1
      %p207 = por %p205, %p206
      %p208 = scmp.ne.s32.totalorder %s199, %s200
      %p209 = scmp.eq.s32.totalorder %s42, 0
      %p210 = por %p208, %p209
      %p211 = scmp.ne.s32.totalorder %s199, %s200
      %p212 = scmp.eq.s32.totalorder %s43, 1
      %p213 = por %p211, %p212
      %p215 = scmp.ne.s32.totalorder %s200, %s214
      %p216 = scmp.eq.s32.totalorder %s43, 0
      %p217 = por %p215, %p216
      %s219 = sadd.s32 %s218, 1
      %p222 = scmp.eq.s32.totalorder %s37, 1
      %p223 = scmp.ne.s32.totalorder %s218, %s220
      %p224 = scmp.eq.s32.totalorder %s37, 0
      %p225 = por %p223, %p224
      %p226 = scmp.ne.s32.totalorder %s218, %s220
      %p227 = scmp.eq.s32.totalorder %s42, 1
      %p228 = por %p226, %p227
      %p229 = scmp.ne.s32.totalorder %s220, %s221
      %p230 = scmp.eq.s32.totalorder %s42, 0
      %p231 = por %p229, %p230
      %p232 = scmp.ne.s32.totalorder %s220, %s221
      %p233 = scmp.eq.s32.totalorder %s43, 1
      %p234 = por %p232, %p233
      %p236 = scmp.ne.s32.totalorder %s221, %s235
      %p237 = scmp.eq.s32.totalorder %s43, 0
      %p238 = por %p236, %p237
      %s240 = sadd.s32 %s239, 1
      %p243 = scmp.eq.s32.totalorder %s37, 1
      %p244 = scmp.ne.s32.totalorder %s239, %s241
      %p245 = scmp.eq.s32.totalorder %s37, 0
      %p246 = por %p244, %p245
      %p247 = scmp.ne.s32.totalorder %s239, %s241
      %p248 = scmp.eq.s32.totalorder %s42, 1
      %p249 = por %p247, %p248
      %p250 = scmp.ne.s32.totalorder %s241, %s242
      %p251 = scmp.eq.s32.totalorder %s42, 0
      %p252 = por %p250, %p251
      %p253 = scmp.ne.s32.totalorder %s241, %s242
      %p254 = scmp.eq.s32.totalorder %s43, 1
      %p255 = por %p253, %p254
      %p257 = scmp.ne.s32.totalorder %s242, %s256
      %p258 = scmp.eq.s32.totalorder %s43, 0
      %p259 = por %p257, %p258
      %s261 = sadd.s32 %s260, 1
      %p264 = scmp.eq.s32.totalorder %s37, 1
      %p265 = scmp.ne.s32.totalorder %s260, %s262
      %p266 = scmp.eq.s32.totalorder %s37, 0
      %p267 = por %p265, %p266
      %p268 = scmp.ne.s32.totalorder %s260, %s262
      %p269 = scmp.eq.s32.totalorder %s42, 1
      %p270 = por %p268, %p269
      %p271 = scmp.ne.s32.totalorder %s262, %s263
      %p272 = scmp.eq.s32.totalorder %s42, 0
      %p273 = por %p271, %p272
      %p274 = scmp.ne.s32.totalorder %s262, %s263
      %p275 = scmp.eq.s32.totalorder %s43, 1
      %p276 = por %p274, %p275
      %p278 = scmp.ne.s32.totalorder %s263, %s277
      %p279 = scmp.eq.s32.totalorder %s43, 0
      %p280 = por %p278, %p279
      %s282 = sadd.s32 %s281, 1
      %p285 = scmp.eq.s32.totalorder %s37, 1
      %p286 = scmp.ne.s32.totalorder %s281, %s283
      %p287 = scmp.eq.s32.totalorder %s37, 0
      %p288 = por %p286, %p287
      %p289 = scmp.ne.s32.totalorder %s281, %s283
      %p290 = scmp.eq.s32.totalorder %s42, 1
      %p291 = por %p289, %p290
      %p292 = scmp.ne.s32.totalorder %s283, %s284
      %p293 = scmp.eq.s32.totalorder %s42, 0
      %p294 = por %p292, %p293
      %p295 = scmp.ne.s32.totalorder %s283, %s284
      %p296 = scmp.eq.s32.totalorder %s43, 1
      %p297 = por %p295, %p296
      %p299 = scmp.ne.s32.totalorder %s284, %s298
      %p300 = scmp.eq.s32.totalorder %s43, 0
      %p301 = por %p299, %p300
      %s303 = sadd.s32 %s302, 1
      %p306 = scmp.eq.s32.totalorder %s37, 1
      %p307 = scmp.ne.s32.totalorder %s302, %s304
      %p308 = scmp.eq.s32.totalorder %s37, 0
      %p309 = por %p307, %p308
      %p310 = scmp.ne.s32.totalorder %s302, %s304
      %p311 = scmp.eq.s32.totalorder %s42, 1
      %p312 = por %p310, %p311
      %p313 = scmp.ne.s32.totalorder %s304, %s305
      %p314 = scmp.eq.s32.totalorder %s42, 0
      %p315 = por %p313, %p314
      %p316 = scmp.ne.s32.totalorder %s304, %s305
      %p317 = scmp.eq.s32.totalorder %s43, 1
      %p318 = por %p316, %p317
      %p320 = scmp.ne.s32.totalorder %s305, %s319
      %p321 = scmp.eq.s32.totalorder %s43, 0
      %p322 = por %p320, %p321
      %s324 = sadd.s32 %s323, 1
      %p327 = scmp.eq.s32.totalorder %s37, 1
      %p328 = scmp.ne.s32.totalorder %s323, %s325
      %p329 = scmp.eq.s32.totalorder %s37, 0
      %p330 = por %p328, %p329
      %p331 = scmp.ne.s32.totalorder %s323, %s325
      %p332 = scmp.eq.s32.totalorder %s42, 1
      %p333 = por %p331, %p332
      %p334 = scmp.ne.s32.totalorder %s325, %s326
      %p335 = scmp.eq.s32.totalorder %s42, 0
      %p336 = por %p334, %p335
      %p337 = scmp.ne.s32.totalorder %s325, %s326
      %p338 = scmp.eq.s32.totalorder %s43, 1
      %p339 = por %p337, %p338
      %p341 = scmp.ne.s32.totalorder %s326, %s340
      %p342 = scmp.eq.s32.totalorder %s43, 0
      %p343 = por %p341, %p342
      %s345 = sadd.s32 %s344, 1
      %p348 = scmp.eq.s32.totalorder %s37, 1
      %p349 = scmp.ne.s32.totalorder %s344, %s346
      %p350 = scmp.eq.s32.totalorder %s37, 0
      %p351 = por %p349, %p350
      %p352 = scmp.ne.s32.totalorder %s344, %s346
      %p353 = scmp.eq.s32.totalorder %s42, 1
      %p354 = por %p352, %p353
      %p355 = scmp.ne.s32.totalorder %s346, %s347
      %p356 = scmp.eq.s32.totalorder %s42, 0
      %p357 = por %p355, %p356
      %p358 = scmp.ne.s32.totalorder %s346, %s347
      %p359 = scmp.eq.s32.totalorder %s43, 1
      %p360 = por %p358, %p359
      %p362 = scmp.ne.s32.totalorder %s347, %s361
      %p363 = scmp.eq.s32.totalorder %s43, 0
      %p364 = por %p362, %p363
      %s366 = sadd.s32 %s365, 1
      %p369 = scmp.eq.s32.totalorder %s37, 1
      %p370 = scmp.ne.s32.totalorder %s365, %s367
      %p371 = scmp.eq.s32.totalorder %s37, 0
      %p372 = por %p370, %p371
      %p373 = scmp.ne.s32.totalorder %s365, %s367
      %p374 = scmp.eq.s32.totalorder %s42, 1
      %p375 = por %p373, %p374
      %p376 = scmp.ne.s32.totalorder %s367, %s368
      %p377 = scmp.eq.s32.totalorder %s42, 0
      %p378 = por %p376, %p377
      %p379 = scmp.ne.s32.totalorder %s367, %s368
      %p380 = scmp.eq.s32.totalorder %s43, 1
      %p381 = por %p379, %p380
      %p383 = scmp.ne.s32.totalorder %s368, %s382
      %p384 = scmp.eq.s32.totalorder %s43, 0
      %p385 = por %p383, %p384
      %s387 = sadd.s32 %s386, 1
      %p390 = scmp.eq.s32.totalorder %s37, 1
      %p391 = scmp.ne.s32.totalorder %s386, %s388
      %p392 = scmp.eq.s32.totalorder %s37, 0
      %p393 = por %p391, %p392
      %p394 = scmp.ne.s32.totalorder %s386, %s388
      %p395 = scmp.eq.s32.totalorder %s42, 1
      %p396 = por %p394, %p395
      %p397 = scmp.ne.s32.totalorder %s388, %s389
      %p398 = scmp.eq.s32.totalorder %s42, 0
      %p399 = por %p397, %p398
      %p400 = scmp.ne.s32.totalorder %s388, %s389
      %p401 = scmp.eq.s32.totalorder %s43, 1
      %p402 = por %p400, %p401
      %p404 = scmp.ne.s32.totalorder %s389, %s403
      %p405 = scmp.eq.s32.totalorder %s43, 0
      %p406 = por %p404, %p405
      %s408 = sadd.s32 %s407, 1
      %p411 = scmp.eq.s32.totalorder %s37, 1
      %p412 = scmp.ne.s32.totalorder %s407, %s409
      %p413 = scmp.eq.s32.totalorder %s37, 0
      %p414 = por %p412, %p413
      %p415 = scmp.ne.s32.totalorder %s407, %s409
      %p416 = scmp.eq.s32.totalorder %s42, 1
      %p417 = por %p415, %p416
      %p418 = scmp.ne.s32.totalorder %s409, %s410
      %p419 = scmp.eq.s32.totalorder %s42, 0
      %p420 = por %p418, %p419
      %p421 = scmp.ne.s32.totalorder %s409, %s410
      %p422 = scmp.eq.s32.totalorder %s43, 1
      %p423 = por %p421, %p422
      %p425 = scmp.ne.s32.totalorder %s410, %s424
      %p426 = scmp.eq.s32.totalorder %s43, 0
      %p427 = por %p425, %p426
      %s429 = sadd.s32 %s428, 1
      %p432 = scmp.eq.s32.totalorder %s37, 1
      %p433 = scmp.ne.s32.totalorder %s428, %s430
      %p434 = scmp.eq.s32.totalorder %s37, 0
      %p435 = por %p433, %p434
      %p436 = scmp.ne.s32.totalorder %s428, %s430
      %p437 = scmp.eq.s32.totalorder %s42, 1
      %p438 = por %p436, %p437
      %p439 = scmp.ne.s32.totalorder %s430, %s431
      %p440 = scmp.eq.s32.totalorder %s42, 0
      %p441 = por %p439, %p440
      %p442 = scmp.ne.s32.totalorder %s430, %s431
      %p443 = scmp.eq.s32.totalorder %s43, 1
      %p444 = por %p442, %p443
      %p446 = scmp.ne.s32.totalorder %s431, %s445
      %p447 = scmp.eq.s32.totalorder %s43, 0
      %p448 = por %p446, %p447
      %s450 = sadd.s32 %s449, 1
      %p453 = scmp.eq.s32.totalorder %s37, 1
      %p454 = scmp.ne.s32.totalorder %s449, %s451
      %p455 = scmp.eq.s32.totalorder %s37, 0
      %p456 = por %p454, %p455
      %p457 = scmp.ne.s32.totalorder %s449, %s451
      %p458 = scmp.eq.s32.totalorder %s42, 1
      %p459 = por %p457, %p458
      %p460 = scmp.ne.s32.totalorder %s451, %s452
      %p461 = scmp.eq.s32.totalorder %s42, 0
      %p462 = por %p460, %p461
      %p463 = scmp.ne.s32.totalorder %s451, %s452
      %p464 = scmp.eq.s32.totalorder %s43, 1
      %p465 = por %p463, %p464
      %p467 = scmp.ne.s32.totalorder %s452, %s466
      %p468 = scmp.eq.s32.totalorder %s43, 0
      %p469 = por %p467, %p468
      %s471 = sadd.s32 %s470, 1
      %p474 = scmp.eq.s32.totalorder %s37, 1
      %p475 = scmp.ne.s32.totalorder %s470, %s472
      %p476 = scmp.eq.s32.totalorder %s37, 0
      %p477 = por %p475, %p476
      %p478 = scmp.ne.s32.totalorder %s470, %s472
      %p479 = scmp.eq.s32.totalorder %s42, 1
      %p480 = por %p478, %p479
      %p481 = scmp.ne.s32.totalorder %s472, %s473
      %p482 = scmp.eq.s32.totalorder %s42, 0
      %p483 = por %p481, %p482
      %p484 = scmp.ne.s32.totalorder %s472, %s473
      %p485 = scmp.eq.s32.totalorder %s43, 1
      %p486 = por %p484, %p485
      %p488 = scmp.ne.s32.totalorder %s473, %s487
      %p489 = scmp.eq.s32.totalorder %s43, 0
      %p490 = por %p488, %p489
      %s492 = sadd.s32 %s491, 1
      %p495 = scmp.eq.s32.totalorder %s37, 1
      %p496 = scmp.ne.s32.totalorder %s491, %s493
      %p497 = scmp.eq.s32.totalorder %s37, 0
      %p498 = por %p496, %p497
      %p499 = scmp.ne.s32.totalorder %s491, %s493
      %p500 = scmp.eq.s32.totalorder %s42, 1
      %p501 = por %p499, %p500
      %p502 = scmp.ne.s32.totalorder %s493, %s494
      %p503 = scmp.eq.s32.totalorder %s42, 0
      %p504 = por %p502, %p503
      %p505 = scmp.ne.s32.totalorder %s493, %s494
      %p506 = scmp.eq.s32.totalorder %s43, 1
      %p507 = por %p505, %p506
      %p509 = scmp.ne.s32.totalorder %s494, %s508
      %p510 = scmp.eq.s32.totalorder %s43, 0
      %p511 = por %p509, %p510
      %s513 = sadd.s32 %s512, 1
      %p516 = scmp.eq.s32.totalorder %s37, 1
      %p517 = scmp.ne.s32.totalorder %s512, %s514
      %p518 = scmp.eq.s32.totalorder %s37, 0
      %p519 = por %p517, %p518
      %p520 = scmp.ne.s32.totalorder %s512, %s514
      %p521 = scmp.eq.s32.totalorder %s42, 1
      %p522 = por %p520, %p521
      %p523 = scmp.ne.s32.totalorder %s514, %s515
      %p524 = scmp.eq.s32.totalorder %s42, 0
      %p525 = por %p523, %p524
      %p526 = scmp.ne.s32.totalorder %s514, %s515
      %p527 = scmp.eq.s32.totalorder %s43, 1
      %p528 = por %p526, %p527
      %p530 = scmp.ne.s32.totalorder %s515, %s529
      %p531 = scmp.eq.s32.totalorder %s43, 0
      %p532 = por %p530, %p531
      %s533 = ssub.s32 %s37, %s44
      %p534 = scmp.eq.s32.totalorder %s533, 0
      %s536 = sadd.s32 %s535, 1
      %s537 = scalar_select %p534, %s535, %s536
      %p540 = pneg %p534
      %p541 = scmp.eq.s32.totalorder %s37, 1
      %p542 = por %p540, %p541
      %p543 = scmp.ne.s32.totalorder %s535, %s538
      %p544 = scmp.eq.s32.totalorder %s37, 0
      %p545 = por %p543, %p544
      %p546 = scmp.ne.s32.totalorder %s535, %s538
      %p547 = scmp.eq.s32.totalorder %s42, 1
      %p548 = por %p546, %p547
      %p549 = scmp.ne.s32.totalorder %s538, %s539
      %p550 = scmp.eq.s32.totalorder %s42, 0
      %p551 = por %p549, %p550
      %p552 = scmp.ne.s32.totalorder %s538, %s539
      %p553 = scmp.eq.s32.totalorder %s43, 1
      %p554 = por %p552, %p553
      %p556 = scmp.ne.s32.totalorder %s539, %s555
      %p557 = scmp.eq.s32.totalorder %s43, 0
      %p558 = por %p556, %p557
      %p559 = scmp.le.s32.totalorder 1, %s37
      %p560 = scmp.lt.s32.totalorder %s37, 3
      %p561 = pnand %p559, %p560
      %p562 = pneg %p561
      // Predicated region
      $region9: #{tpu_custom_call.1} parent=5 // pred_check
        _
      $region10: #{tpu_custom_call.1} parent=5 // pred_check_branch
        %564 = sbr.rel (%p561) target = $region12
      $region11: #{tpu_custom_call.1} parent=5 // pred_region
        %s565 = ssub.s32 %s37, 1
        // Predicated region
        $region13: #{tpu_custom_call.1} parent=11 // pred_check
          %p566 = pneg %p84
        $region14: #{tpu_custom_call.1} parent=11 // pred_check_branch
          %568 = sbr.rel (%p566) target = $region16
        $region15: #{tpu_custom_call.1} parent=11 // pred_region
          _
        $region16: #{tpu_custom_call.1} parent=11 // pred_fallthru
          _
        // Predicated region
        $region17: #{tpu_custom_call.1} parent=11 // pred_check
          %p569 = pneg %p105
        $region18: #{tpu_custom_call.1} parent=11 // pred_check_branch
          %571 = sbr.rel (%p569) target = $region20
        $region19: #{tpu_custom_call.1} parent=11 // pred_region
          _
        $region20: #{tpu_custom_call.1} parent=11 // pred_fallthru
          _
        // Predicated region
        $region21: #{tpu_custom_call.1} parent=11 // pred_check
          %p572 = pneg %p126
        $region22: #{tpu_custom_call.1} parent=11 // pred_check_branch
          %574 = sbr.rel (%p572) target = $region24
        $region23: #{tpu_custom_call.1} parent=11 // pred_region
          _
        $region24: #{tpu_custom_call.1} parent=11 // pred_fallthru
          _
        // Predicated region
        $region25: #{tpu_custom_call.1} parent=11 // pred_check
          %p575 = pneg %p147
        $region26: #{tpu_custom_call.1} parent=11 // pred_check_branch
          %577 = sbr.rel (%p575) target = $region28
        $region27: #{tpu_custom_call.1} parent=11 // pred_region
          _
        $region28: #{tpu_custom_call.1} parent=11 // pred_fallthru
          _
        // Predicated region
        $region29: #{tpu_custom_call.1} parent=11 // pred_check
          %p578 = pneg %p168
        $region30: #{tpu_custom_call.1} parent=11 // pred_check_branch
          %580 = sbr.rel (%p578) target = $region32
        $region31: #{tpu_custom_call.1} parent=11 // pred_region
          _
        $region32: #{tpu_custom_call.1} parent=11 // pred_fallthru
          _
        // Predicated region
        $region33: #{tpu_custom_call.1} parent=11 // pred_check
          %p581 = pneg %p189
        $region34: #{tpu_custom_call.1} parent=11 // pred_check_branch
          %583 = sbr.rel (%p581) target = $region36
        $region35: #{tpu_custom_call.1} parent=11 // pred_region
          %s585 = ssub.s32 64, 64
          %586 = vsyncadd [#allocation3], %s585
          %s588 = sshll.u32 [#allocation2], 4
          %s589 = int_to_ptr.vmem [resolvable:$true] %s588
          %591 = dma.hbm_to_vmem [thread:$0]  %s6, 64, %s589, [#allocation3]
        $region36: #{tpu_custom_call.1} parent=11 // pred_fallthru
          _
        // Predicated region
        $region37: #{tpu_custom_call.1} parent=11 // pred_check
          %p592 = pneg %p210
        $region38: #{tpu_custom_call.1} parent=11 // pred_check_branch
          %594 = sbr.rel (%p592) target = $region40
        $region39: #{tpu_custom_call.1} parent=11 // pred_region
          _
        $region40: #{tpu_custom_call.1} parent=11 // pred_fallthru
          _
        // Predicated region
        $region41: #{tpu_custom_call.1} parent=11 // pred_check
          %p595 = pneg %p231
        $region42: #{tpu_custom_call.1} parent=11 // pred_check_branch
          %597 = sbr.rel (%p595) target = $region44
        $region43: #{tpu_custom_call.1} parent=11 // pred_region
          _
        $region44: #{tpu_custom_call.1} parent=11 // pred_fallthru
          _
        // Predicated region
        $region45: #{tpu_custom_call.1} parent=11 // pred_check
          %p598 = pneg %p252
        $region46: #{tpu_custom_call.1} parent=11 // pred_check_branch
          %600 = sbr.rel (%p598) target = $region48
        $region47: #{tpu_custom_call.1} parent=11 // pred_region
          %s602 = ssub.s32 16, 16
          %603 = vsyncadd [#allocation6], %s602
          %s605 = sshll.u32 [#allocation5], 4
          %s606 = int_to_ptr.vmem [resolvable:$true] %s605
          %608 = dma.hbm_to_vmem [thread:$0]  %s9, 16, %s606, [#allocation6]
        $region48: #{tpu_custom_call.1} parent=11 // pred_fallthru
          _
        // Predicated region
        $region49: #{tpu_custom_call.1} parent=11 // pred_check
          %p609 = pneg %p273
        $region50: #{tpu_custom_call.1} parent=11 // pred_check_branch
          %611 = sbr.rel (%p609) target = $region52
        $region51: #{tpu_custom_call.1} parent=11 // pred_region
          _
        $region52: #{tpu_custom_call.1} parent=11 // pred_fallthru
          _
        // Predicated region
        $region53: #{tpu_custom_call.1} parent=11 // pred_check
          %p612 = pneg %p294
        $region54: #{tpu_custom_call.1} parent=11 // pred_check_branch
          %614 = sbr.rel (%p612) target = $region56
        $region55: #{tpu_custom_call.1} parent=11 // pred_region
          %s616 = ssub.s32 256, 256
          %617 = vsyncadd [#allocation6], %s616
          %s618 = sshll.u32 [#allocation7], 4
          %s619 = int_to_ptr.vmem [resolvable:$true] %s618
          %624 = dma.hbm_to_vmem [thread:$0]  %s11, 256, %s619, [#allocation6], 128, 128, 8
        $region56: #{tpu_custom_call.1} parent=11 // pred_fallthru
          _
        // Predicated region
        $region57: #{tpu_custom_call.1} parent=11 // pred_check
          %p625 = pneg %p315
        $region58: #{tpu_custom_call.1} parent=11 // pred_check_branch
          %627 = sbr.rel (%p625) target = $region60
        $region59: #{tpu_custom_call.1} parent=11 // pred_region
          _
        $region60: #{tpu_custom_call.1} parent=11 // pred_fallthru
          _
        // Predicated region
        $region61: #{tpu_custom_call.1} parent=11 // pred_check
          %p628 = pneg %p336
        $region62: #{tpu_custom_call.1} parent=11 // pred_check_branch
          %630 = sbr.rel (%p628) target = $region64
        $region63: #{tpu_custom_call.1} parent=11 // pred_region
          _
        $region64: #{tpu_custom_call.1} parent=11 // pred_fallthru
          _
        // Predicated region
        $region65: #{tpu_custom_call.1} parent=11 // pred_check
          %p631 = pneg %p357
        $region66: #{tpu_custom_call.1} parent=11 // pred_check_branch
          %633 = sbr.rel (%p631) target = $region68
        $region67: #{tpu_custom_call.1} parent=11 // pred_region
          _
        $region68: #{tpu_custom_call.1} parent=11 // pred_fallthru
          _
        // Predicated region
        $region69: #{tpu_custom_call.1} parent=11 // pred_check
          %p634 = pneg %p378
        $region70: #{tpu_custom_call.1} parent=11 // pred_check_branch
          %636 = sbr.rel (%p634) target = $region72
        $region71: #{tpu_custom_call.1} parent=11 // pred_region
          %s638 = ssub.s32 1024, 1024
          %639 = vsyncadd [#allocation9], %s638
          %s640 = sshll.u32 [#allocation8], 4
          %s641 = int_to_ptr.vmem [resolvable:$true] %s640
          %646 = dma.hbm_to_vmem [thread:$0]  %s15, 1024, %s641, [#allocation9], 64, 64, 4
        $region72: #{tpu_custom_call.1} parent=11 // pred_fallthru
          _
        // Predicated region
        $region73: #{tpu_custom_call.1} parent=11 // pred_check
          %p647 = pneg %p399
        $region74: #{tpu_custom_call.1} parent=11 // pred_check_branch
          %649 = sbr.rel (%p647) target = $region76
        $region75: #{tpu_custom_call.1} parent=11 // pred_region
          %s651 = ssub.s32 1024, 1024
          %652 = vsyncadd [#allocation9], %s651
          %s653 = sshll.u32 [#allocation10], 4
          %s654 = int_to_ptr.vmem [resolvable:$true] %s653
          %659 = dma.hbm_to_vmem [thread:$0]  %s16, 1024, %s654, [#allocation9], 128, 128, 8
        $region76: #{tpu_custom_call.1} parent=11 // pred_fallthru
          _
        // Predicated region
        $region77: #{tpu_custom_call.1} parent=11 // pred_check
          %p660 = pneg %p420
        $region78: #{tpu_custom_call.1} parent=11 // pred_check_branch
          %662 = sbr.rel (%p660) target = $region80
        $region79: #{tpu_custom_call.1} parent=11 // pred_region
          _
        $region80: #{tpu_custom_call.1} parent=11 // pred_fallthru
          _
        // Predicated region
        $region81: #{tpu_custom_call.1} parent=11 // pred_check
          %p663 = pneg %p441
        $region82: #{tpu_custom_call.1} parent=11 // pred_check_branch
          %665 = sbr.rel (%p663) target = $region84
        $region83: #{tpu_custom_call.1} parent=11 // pred_region
          %s667 = ssub.s32 1024, 1024
          %668 = vsyncadd [#allocation12], %s667
          %s669 = sshll.u32 [#allocation11], 4
          %s670 = int_to_ptr.vmem [resolvable:$true] %s669
          %675 = dma.hbm_to_vmem [thread:$0]  %s18, 1024, %s670, [#allocation12], 64, 64, 4
        $region84: #{tpu_custom_call.1} parent=11 // pred_fallthru
          _
        // Predicated region
        $region85: #{tpu_custom_call.1} parent=11 // pred_check
          %p676 = pneg %p462
        $region86: #{tpu_custom_call.1} parent=11 // pred_check_branch
          %678 = sbr.rel (%p676) target = $region88
        $region87: #{tpu_custom_call.1} parent=11 // pred_region
          _
        $region88: #{tpu_custom_call.1} parent=11 // pred_fallthru
          _
        // Predicated region
        $region89: #{tpu_custom_call.1} parent=11 // pred_check
          %p679 = pneg %p483
        $region90: #{tpu_custom_call.1} parent=11 // pred_check_branch
          %681 = sbr.rel (%p679) target = $region92
        $region91: #{tpu_custom_call.1} parent=11 // pred_region
          %s683 = ssub.s32 1024, 1024
          %684 = vsyncadd [#allocation12], %s683
          %s685 = sshll.u32 [#allocation13], 4
          %s686 = int_to_ptr.vmem [resolvable:$true] %s685
          %691 = dma.hbm_to_vmem [thread:$0]  %s20, 1024, %s686, [#allocation12], 64, 64, 4
        $region92: #{tpu_custom_call.1} parent=11 // pred_fallthru
          _
        // Predicated region
        $region93: #{tpu_custom_call.1} parent=11 // pred_check
          %p692 = pneg %p504
        $region94: #{tpu_custom_call.1} parent=11 // pred_check_branch
          %694 = sbr.rel (%p692) target = $region96
        $region95: #{tpu_custom_call.1} parent=11 // pred_region
          %s696 = ssub.s32 1024, 1024
          %697 = vsyncadd [#allocation15], %s696
          %s698 = sshll.u32 [#allocation14], 4
          %s699 = int_to_ptr.vmem [resolvable:$true] %s698
          %704 = dma.hbm_to_vmem [thread:$0]  %s21, 1024, %s699, [#allocation15], 64, 64, 4
        $region96: #{tpu_custom_call.1} parent=11 // pred_fallthru
          _
        // Predicated region
        $region97: #{tpu_custom_call.1} parent=11 // pred_check
          %p705 = pneg %p525
        $region98: #{tpu_custom_call.1} parent=11 // pred_check_branch
          %707 = sbr.rel (%p705) target = $region100
        $region99: #{tpu_custom_call.1} parent=11 // pred_region
          _
        $region100: #{tpu_custom_call.1} parent=11 // pred_fallthru
          _
      $region12: #{tpu_custom_call.1} parent=5 // pred_fallthru
        _
      %p708 = scmp.lt.s32.totalorder %s37, 2
      // Predicated region
      $region101: #{tpu_custom_call.1} parent=5 // pred_check
        %p709 = pneg %p708
      $region102: #{tpu_custom_call.1} parent=5 // pred_check_branch
        %711 = sbr.rel (%p709) target = $region104
      $region103: #{tpu_custom_call.1} parent=5 // pred_region
        // Predicated region
        $region105: #{tpu_custom_call.1} parent=103 // pred_check
          %p712 = pneg %p57
        $region106: #{tpu_custom_call.1} parent=103 // pred_check_branch
          %714 = sbr.rel (%p712) target = $region108
        $region107: #{tpu_custom_call.1} parent=103 // pred_region
          %p715 = scmp.lt.s32.totalorder %s37, 1
          %s716 = scalar_select %p715, %s37, 1
          %s717 = smul.addr %s716, 32
          %s718 = smul.addr %s717, 4
          %s719 = scalar_lea.vmem %s0, %s718
        $region108: #{tpu_custom_call.1} parent=103 // pred_fallthru
          _
      $region104: #{tpu_custom_call.1} parent=5 // pred_fallthru
        _
      %p720 = scmp.le.s32.totalorder 1, %s37
      %p721 = scmp.lt.s32.totalorder %s37, 3
      %p722 = pnand %p720, %p721
      %p723 = pneg %p722
      // Predicated region
      $region109: #{tpu_custom_call.1} parent=5 // pred_check
        _
      $region110: #{tpu_custom_call.1} parent=5 // pred_check_branch
        %725 = sbr.rel (%p722) target = $region112
      $region111: #{tpu_custom_call.1} parent=5 // pred_region
        %s726 = ssub.s32 %s37, 1
        // Predicated region
        $region113: #{tpu_custom_call.1} parent=111 // pred_check
          %p727 = pneg %p189
        $region114: #{tpu_custom_call.1} parent=111 // pred_check_branch
          %729 = sbr.rel (%p727) target = $region116
        $region115: #{tpu_custom_call.1} parent=111 // pred_region
          %730 = dma.done [#allocation3], 64
        $region116: #{tpu_custom_call.1} parent=111 // pred_fallthru
          _
        // Predicated region
        $region117: #{tpu_custom_call.1} parent=111 // pred_check
          %p731 = pneg %p252
        $region118: #{tpu_custom_call.1} parent=111 // pred_check_branch
          %733 = sbr.rel (%p731) target = $region120
        $region119: #{tpu_custom_call.1} parent=111 // pred_region
          %734 = dma.done [#allocation6], 16
        $region120: #{tpu_custom_call.1} parent=111 // pred_fallthru
          _
        // Predicated region
        $region121: #{tpu_custom_call.1} parent=111 // pred_check
          %p735 = pneg %p294
        $region122: #{tpu_custom_call.1} parent=111 // pred_check_branch
          %737 = sbr.rel (%p735) target = $region124
        $region123: #{tpu_custom_call.1} parent=111 // pred_region
          %738 = dma.done [#allocation6], 256
        $region124: #{tpu_custom_call.1} parent=111 // pred_fallthru
          _
        // Predicated region
        $region125: #{tpu_custom_call.1} parent=111 // pred_check
          %p739 = pneg %p378
        $region126: #{tpu_custom_call.1} parent=111 // pred_check_branch
          %741 = sbr.rel (%p739) target = $region128
        $region127: #{tpu_custom_call.1} parent=111 // pred_region
          %742 = dma.done [#allocation9], 1024
        $region128: #{tpu_custom_call.1} parent=111 // pred_fallthru
          _
        // Predicated region
        $region129: #{tpu_custom_call.1} parent=111 // pred_check
          %p743 = pneg %p399
        $region130: #{tpu_custom_call.1} parent=111 // pred_check_branch
          %745 = sbr.rel (%p743) target = $region132
        $region131: #{tpu_custom_call.1} parent=111 // pred_region
          %746 = dma.done [#allocation9], 1024
        $region132: #{tpu_custom_call.1} parent=111 // pred_fallthru
          _
        // Predicated region
        $region133: #{tpu_custom_call.1} parent=111 // pred_check
          %p747 = pneg %p441
        $region134: #{tpu_custom_call.1} parent=111 // pred_check_branch
          %749 = sbr.rel (%p747) target = $region136
        $region135: #{tpu_custom_call.1} parent=111 // pred_region
          %750 = dma.done [#allocation12], 1024
        $region136: #{tpu_custom_call.1} parent=111 // pred_fallthru
          _
        // Predicated region
        $region137: #{tpu_custom_call.1} parent=111 // pred_check
          %p751 = pneg %p483
        $region138: #{tpu_custom_call.1} parent=111 // pred_check_branch
          %753 = sbr.rel (%p751) target = $region140
        $region139: #{tpu_custom_call.1} parent=111 // pred_region
          %754 = dma.done [#allocation12], 1024
        $region140: #{tpu_custom_call.1} parent=111 // pred_fallthru
          _
        // Predicated region
        $region141: #{tpu_custom_call.1} parent=111 // pred_check
          %p755 = pneg %p504
        $region142: #{tpu_custom_call.1} parent=111 // pred_check_branch
          %757 = sbr.rel (%p755) target = $region144
        $region143: #{tpu_custom_call.1} parent=111 // pred_region
          %758 = dma.done [#allocation15], 1024
        $region144: #{tpu_custom_call.1} parent=111 // pred_fallthru
          _
        %p759 = scmp.lt.s32.totalorder %s42, 1
        %s760 = scalar_select %p759, %s42, 1
        %s761 = smul.addr %s760, 32
        %s762 = smul.addr %s761, 4
        %s763 = scalar_lea.vmem %s0, %s762
        %p764 = pneg %p63
        %p765 = pneg %p60
        %p766 = pneg %p84
        %p767 = pneg %p81
        %p768 = pneg %p105
        %p769 = pneg %p102
        %p770 = pneg %p126
        %p771 = pneg %p123
        %p772 = pneg %p147
        %p773 = pneg %p144
        %p774 = pneg %p168
        %p775 = pneg %p165
        %p776 = pneg %p189
        %p777 = pneg %p186
        %p778 = pneg %p210
        %p779 = pneg %p207
        %p780 = pneg %p231
        %p781 = pneg %p228
        %p782 = pneg %p252
        %p783 = pneg %p249
        %p784 = pneg %p273
        %p785 = pneg %p270
        %p786 = pneg %p294
        %p787 = pneg %p291
        %p788 = pneg %p315
        %p789 = pneg %p312
        %p790 = pneg %p336
        %p791 = pneg %p333
        %p792 = pneg %p357
        %p793 = pneg %p354
        %p794 = pneg %p378
        %p795 = pneg %p375
        %p796 = pneg %p399
        %p797 = pneg %p396
        %p798 = pneg %p420
        %p799 = pneg %p417
        %p800 = pneg %p441
        %p801 = pneg %p438
        %p802 = pneg %p462
        %p803 = pneg %p459
        %p804 = pneg %p483
        %p805 = pneg %p480
        %p806 = pneg %p504
        %p807 = pneg %p501
        %p808 = pneg %p525
        %p809 = pneg %p522
        %p810 = pneg %p551
        %p811 = pneg %p548
        %s812 = sand.u32 %s538, 1
        %s813 = scalar_lea.sflag [#allocation4], %s812
        %s814 = sand.u32 %s538, 1
        %s815 = smul.addr %s814, 256
        %s816 = scalar_lea.vmem [#allocation16], %s815
        %p817 = scmp.lt.s32.totalorder %s42, 1
        %s818 = scalar_select %p817, %s42, 1
        %s819 = smul.addr %s818, 32
        %s820 = smul.addr %s819, 4
        %s821 = scalar_lea.vmem %s0, %s820
        %v823 = vld [vmem:[%s821] sm:$0xf]
        %v824 = vld [vmem:[%s821 + $0x4] sm:$0xf]
        %v825 = vld [vmem:[%s821 + $0x8] sm:$0xf]
        %v826 = vld [vmem:[%s821 + $0xc] sm:$0xf]
        %v827 = vld [vmem:[%s821 + $0x10] sm:$0xf]
        %v828 = vld [vmem:[%s821 + $0x14] sm:$0xf]
        %v829 = vld [vmem:[%s821 + $0x18] sm:$0xf]
        %v830 = vld [vmem:[%s821 + $0x1c] sm:$0xf]
        %v831 = vld [vmem:[%s821 + $0x20] sm:$0xf]
        %v832 = vld [vmem:[%s821 + $0x24] sm:$0xf]
        %v833 = vld [vmem:[%s821 + $0x28] sm:$0xf]
        %v834 = vld [vmem:[%s821 + $0x2c] sm:$0xf]
        %v835 = vld [vmem:[%s821 + $0x30] sm:$0xf]
        %v836 = vld [vmem:[%s821 + $0x34] sm:$0xf]
        %v837 = vld [vmem:[%s821 + $0x38] sm:$0xf]
        %v838 = vld [vmem:[%s821 + $0x3c] sm:$0xf]
        %v839 = vld [vmem:[%s821 + $0x40] sm:$0xf]
        %v840 = vld [vmem:[%s821 + $0x44] sm:$0xf]
        %v841 = vld [vmem:[%s821 + $0x48] sm:$0xf]
        %v842 = vld [vmem:[%s821 + $0x4c] sm:$0xf]
        %v843 = vld [vmem:[%s821 + $0x50] sm:$0xf]
        %v844 = vld [vmem:[%s821 + $0x54] sm:$0xf]
        %v845 = vld [vmem:[%s821 + $0x58] sm:$0xf]
        %v846 = vld [vmem:[%s821 + $0x5c] sm:$0xf]
        %v847 = vld [vmem:[%s821 + $0x60] sm:$0xf]
        %v848 = vld [vmem:[%s821 + $0x64] sm:$0xf]
        %v849 = vld [vmem:[%s821 + $0x68] sm:$0xf]
        %v850 = vld [vmem:[%s821 + $0x6c] sm:$0xf]
        %v851 = vld [vmem:[%s821 + $0x70] sm:$0xf]
        %v852 = vld [vmem:[%s821 + $0x74] sm:$0xf]
        %v853 = vld [vmem:[%s821 + $0x78] sm:$0xf]
        %v854 = vld [vmem:[%s821 + $0x7c] sm:$0xf]
        %v855 = vld [vmem:[#allocation14] sm:$0xf]
        %v856 = vld [vmem:[#allocation14 + $0x4] sm:$0xf]
        %v857 = vld [vmem:[#allocation14 + $0x8] sm:$0xf]
        %v858 = vld [vmem:[#allocation14 + $0xc] sm:$0xf]
        %v859 = vld [vmem:[#allocation14 + $0x10] sm:$0xf]
        %v860 = vld [vmem:[#allocation14 + $0x14] sm:$0xf]
        %v861 = vld [vmem:[#allocation14 + $0x18] sm:$0xf]
        %v862 = vld [vmem:[#allocation14 + $0x1c] sm:$0xf]
        %v863 = vld [vmem:[#allocation14 + $0x20] sm:$0xf]
        %v864 = vld [vmem:[#allocation14 + $0x24] sm:$0xf]
        %v865 = vld [vmem:[#allocation14 + $0x28] sm:$0xf]
        %v866 = vld [vmem:[#allocation14 + $0x2c] sm:$0xf]
        %v867 = vld [vmem:[#allocation14 + $0x30] sm:$0xf]
        %v868 = vld [vmem:[#allocation14 + $0x34] sm:$0xf]
        %v869 = vld [vmem:[#allocation14 + $0x38] sm:$0xf]
        %v870 = vld [vmem:[#allocation14 + $0x3c] sm:$0xf]
        %v871 = vld [vmem:[%s22] sm:$0x1]
        %v873 = vlaneseq
        %v874 = vshrl.u32 %v873, 7
        %v875 = vsub.s32 0, %v874
        %v876 = vrot.slane %v871, %v875
        %v910 = vunpack.c.l.b16 %v823
        %v911 = vunpack.c.l.b16 %v824
        %v912 = vunpack.c.l.b16 %v825
        %v913 = vunpack.c.l.b16 %v826
        %v914 = vunpack.c.l.b16 %v827
        %v915 = vunpack.c.l.b16 %v828
        %v916 = vunpack.c.l.b16 %v829
        %v917 = vunpack.c.l.b16 %v830
        %v918 = vunpack.c.l.b16 %v831
        %v919 = vunpack.c.l.b16 %v832
        %v920 = vunpack.c.l.b16 %v833
        %v921 = vunpack.c.l.b16 %v834
        %v922 = vunpack.c.l.b16 %v835
        %v923 = vunpack.c.l.b16 %v836
        %v924 = vunpack.c.l.b16 %v837
        %v925 = vunpack.c.l.b16 %v838
        %v926 = vunpack.c.l.b16 %v839
        %v927 = vunpack.c.l.b16 %v840
        %v928 = vunpack.c.l.b16 %v841
        %v929 = vunpack.c.l.b16 %v842
        %v930 = vunpack.c.l.b16 %v843
        %v931 = vunpack.c.l.b16 %v844
        %v932 = vunpack.c.l.b16 %v845
        %v933 = vunpack.c.l.b16 %v846
        %v934 = vunpack.c.l.b16 %v847
        %v935 = vunpack.c.l.b16 %v848
        %v936 = vunpack.c.l.b16 %v849
        %v937 = vunpack.c.l.b16 %v850
        %v938 = vunpack.c.l.b16 %v851
        %v939 = vunpack.c.l.b16 %v852
        %v940 = vunpack.c.l.b16 %v853
        %v941 = vunpack.c.l.b16 %v854
        %v942 = vpack.c.b16 %v911, %v910
        %v943 = vpack.c.b16 %v913, %v912
        %v944 = vpack.c.b16 %v915, %v914
        %v945 = vpack.c.b16 %v917, %v916
        %v946 = vpack.c.b16 %v919, %v918
        %v947 = vpack.c.b16 %v921, %v920
        %v948 = vpack.c.b16 %v923, %v922
        %v949 = vpack.c.b16 %v925, %v924
        %v950 = vpack.c.b16 %v927, %v926
        %v951 = vpack.c.b16 %v929, %v928
        %v952 = vpack.c.b16 %v931, %v930
        %v953 = vpack.c.b16 %v933, %v932
        %v954 = vpack.c.b16 %v935, %v934
        %v955 = vpack.c.b16 %v937, %v936
        %v956 = vpack.c.b16 %v939, %v938
        %v957 = vpack.c.b16 %v941, %v940
        %v990 = vunpack.c.l.b16 %v855
        %v991 = vunpack.c.l.b16 %v856
        %v992 = vunpack.c.l.b16 %v857
        %v993 = vunpack.c.l.b16 %v858
        %v994 = vunpack.c.l.b16 %v859
        %v995 = vunpack.c.l.b16 %v860
        %v996 = vunpack.c.l.b16 %v861
        %v997 = vunpack.c.l.b16 %v862
        %v998 = vunpack.c.l.b16 %v863
        %v999 = vunpack.c.l.b16 %v864
        %v1000 = vunpack.c.l.b16 %v865
        %v1001 = vunpack.c.l.b16 %v866
        %v1002 = vunpack.c.l.b16 %v867
        %v1003 = vunpack.c.l.b16 %v868
        %v1004 = vunpack.c.l.b16 %v869
        %v1005 = vunpack.c.l.b16 %v870
        %v1006 = vpack.c.b16 %v991, %v990
        %v1007 = vpack.c.b16 %v993, %v992
        %v1008 = vpack.c.b16 %v995, %v994
        %v1009 = vpack.c.b16 %v997, %v996
        %v1010 = vpack.c.b16 %v999, %v998
        %v1011 = vpack.c.b16 %v1001, %v1000
        %v1012 = vpack.c.b16 %v1003, %v1002
        %v1013 = vpack.c.b16 %v1005, %v1004
        %1022 = vmatprep.subr.bf16.mxu0 0
        %1023 = vmatpush1.bf16.msra.mxu0 %v1006
        %1024 = vmatprep.subr.bf16.mxu0 0
        %1025 = vmatpush1.bf16.msra.mxu0 %v1007
        %1026 = vmatprep.subr.bf16.mxu0 0
        %1027 = vmatpush1.bf16.msra.mxu0 %v1008
        %1028 = vmatprep.subr.bf16.mxu0 0
        %1029 = vmatpush1.bf16.msra.mxu0 %v1009
        %1030 = vmatprep.subr.bf16.mxu0 0
        %1031 = vmatpush1.bf16.msra.mxu0 %v1010
        %1032 = vmatprep.subr.bf16.mxu0 0
        %1033 = vmatpush1.bf16.msra.mxu0 %v1011
        %1034 = vmatprep.subr.bf16.mxu0 0
        %1035 = vmatpush1.bf16.msra.mxu0 %v1012
        %1036 = vmatprep.subr.bf16.mxu0 0
        %1037 = vmatpush1.bf16.msra.mxu0 %v1013
        %1038 = vmatprep.subr.bf16.mxu0 0
        %1039 = vmatpush1.bf16.msra.mxu0 0
        %1040 = vmatprep.subr.bf16.mxu0 0
        %1041 = vmatpush1.bf16.msra.mxu0 0
        %1042 = vmatprep.subr.bf16.mxu0 0
        %1043 = vmatpush1.bf16.msra.mxu0 0
        %1044 = vmatprep.subr.bf16.mxu0 0
        %1045 = vmatpush1.bf16.msra.mxu0 0
        %1046 = vmatprep.subr.bf16.mxu0 0
        %1047 = vmatpush1.bf16.msra.mxu0 0
        %1048 = vmatprep.subr.bf16.mxu0 0
        %1049 = vmatpush1.bf16.msra.mxu0 0
        %1050 = vmatprep.subr.bf16.mxu0 0
        %1051 = vmatpush1.bf16.msra.mxu0 0
        %1052 = vmatprep.subr.bf16.mxu0 0
        %1053 = vmatpush1.bf16.msra.mxu0 0
        %1054 = vmatprep.mubr.bf16.mxu0 0
        %1055 = vmatmul.mubr.bf16.gmra.mrb[0].mxu0 %v942
        %v1056 = vpop.f32.mrb[0].mxu0
        %v1057 = vadd.f32 %v876, %v1056
        %v1058 = vpop.f32.mrb[0].mxu0
        %v1059 = vpop.f32.mrb[0].mxu0
        %v1060 = vadd.f32 %v876, %v1059
        %v1061 = vpop.f32.mrb[0].mxu0
        %1062 = vmatprep.mubr.bf16.mxu0 0
        %1063 = vmatmul.mubr.bf16.gmra.mrb[0].mxu0 %v943
        %v1064 = vpop.f32.mrb[0].mxu0
        %v1065 = vadd.f32 %v876, %v1064
        %v1066 = vpop.f32.mrb[0].mxu0
        %v1067 = vpop.f32.mrb[0].mxu0
        %v1068 = vadd.f32 %v876, %v1067
        %v1069 = vpop.f32.mrb[0].mxu0
        %1070 = vmatprep.mubr.bf16.mxu0 0
        %1071 = vmatmul.mubr.bf16.gmra.mrb[0].mxu0 %v944
        %v1072 = vpop.f32.mrb[0].mxu0
        %v1073 = vadd.f32 %v876, %v1072
        %v1074 = vpop.f32.mrb[0].mxu0
        %v1075 = vpop.f32.mrb[0].mxu0
        %v1076 = vadd.f32 %v876, %v1075
        %v1077 = vpop.f32.mrb[0].mxu0
        %1078 = vmatprep.mubr.bf16.mxu0 0
        %1079 = vmatmul.mubr.bf16.gmra.mrb[0].mxu0 %v945
        %v1080 = vpop.f32.mrb[0].mxu0
        %v1081 = vadd.f32 %v876, %v1080
        %v1082 = vpop.f32.mrb[0].mxu0
        %v1083 = vpop.f32.mrb[0].mxu0
        %v1084 = vadd.f32 %v876, %v1083
        %v1085 = vpop.f32.mrb[0].mxu0
        %1086 = vmatprep.mubr.bf16.mxu0 0
        %1087 = vmatmul.mubr.bf16.gmra.mrb[0].mxu0 %v946
        %v1088 = vpop.f32.mrb[0].mxu0
        %v1089 = vadd.f32 %v876, %v1088
        %v1090 = vpop.f32.mrb[0].mxu0
        %v1091 = vpop.f32.mrb[0].mxu0
        %v1092 = vadd.f32 %v876, %v1091
        %v1093 = vpop.f32.mrb[0].mxu0
        %1094 = vmatprep.mubr.bf16.mxu0 0
        %1095 = vmatmul.mubr.bf16.gmra.mrb[0].mxu0 %v947
        %v1096 = vpop.f32.mrb[0].mxu0
        %v1097 = vadd.f32 %v876, %v1096
        %v1098 = vpop.f32.mrb[0].mxu0
        %v1099 = vpop.f32.mrb[0].mxu0
        %v1100 = vadd.f32 %v876, %v1099
        %v1101 = vpop.f32.mrb[0].mxu0
        %1102 = vmatprep.mubr.bf16.mxu0 0
        %1103 = vmatmul.mubr.bf16.gmra.mrb[0].mxu0 %v948
        %v1104 = vpop.f32.mrb[0].mxu0
        %v1105 = vadd.f32 %v876, %v1104
        %v1106 = vpop.f32.mrb[0].mxu0
        %v1107 = vpop.f32.mrb[0].mxu0
        %v1108 = vadd.f32 %v876, %v1107
        %v1109 = vpop.f32.mrb[0].mxu0
        %1110 = vmatprep.mubr.bf16.mxu0 0
        %1111 = vmatmul.mubr.bf16.gmra.mrb[0].mxu0 %v949
        %v1112 = vpop.f32.mrb[0].mxu0
        %v1113 = vadd.f32 %v876, %v1112
        %v1114 = vpop.f32.mrb[0].mxu0
        %v1115 = vpop.f32.mrb[0].mxu0
        %v1116 = vadd.f32 %v876, %v1115
        %v1117 = vpop.f32.mrb[0].mxu0
        %1118 = vmatprep.mubr.bf16.mxu0 0
        %1119 = vmatmul.mubr.bf16.gmra.mrb[0].mxu0 %v950
        %v1120 = vpop.f32.mrb[0].mxu0
        %v1121 = vadd.f32 %v876, %v1120
        %v1122 = vpop.f32.mrb[0].mxu0
        %v1123 = vpop.f32.mrb[0].mxu0
        %v1124 = vadd.f32 %v876, %v1123
        %v1125 = vpop.f32.mrb[0].mxu0
        %1126 = vmatprep.mubr.bf16.mxu0 0
        %1127 = vmatmul.mubr.bf16.gmra.mrb[0].mxu0 %v951
        %v1128 = vpop.f32.mrb[0].mxu0
        %v1129 = vadd.f32 %v876, %v1128
        %v1130 = vpop.f32.mrb[0].mxu0
        %v1131 = vpop.f32.mrb[0].mxu0
        %v1132 = vadd.f32 %v876, %v1131
        %v1133 = vpop.f32.mrb[0].mxu0
        %1134 = vmatprep.mubr.bf16.mxu0 0
        %1135 = vmatmul.mubr.bf16.gmra.mrb[0].mxu0 %v952
        %v1136 = vpop.f32.mrb[0].mxu0
        %v1137 = vadd.f32 %v876, %v1136
        %v1138 = vpop.f32.mrb[0].mxu0
        %v1139 = vpop.f32.mrb[0].mxu0
        %v1140 = vadd.f32 %v876, %v1139
        %v1141 = vpop.f32.mrb[0].mxu0
        %1142 = vmatprep.mubr.bf16.mxu0 0
        %1143 = vmatmul.mubr.bf16.gmra.mrb[0].mxu0 %v953
        %v1144 = vpop.f32.mrb[0].mxu0
        %v1145 = vadd.f32 %v876, %v1144
        %v1146 = vpop.f32.mrb[0].mxu0
        %v1147 = vpop.f32.mrb[0].mxu0
        %v1148 = vadd.f32 %v876, %v1147
        %v1149 = vpop.f32.mrb[0].mxu0
        %1150 = vmatprep.mubr.bf16.mxu0 0
        %1151 = vmatmul.mubr.bf16.gmra.mrb[0].mxu0 %v954
        %v1152 = vpop.f32.mrb[0].mxu0
        %v1153 = vadd.f32 %v876, %v1152
        %v1154 = vpop.f32.mrb[0].mxu0
        %v1155 = vpop.f32.mrb[0].mxu0
        %v1156 = vadd.f32 %v876, %v1155
        %v1157 = vpop.f32.mrb[0].mxu0
        %1158 = vmatprep.mubr.bf16.mxu0 0
        %1159 = vmatmul.mubr.bf16.gmra.mrb[0].mxu0 %v955
        %v1160 = vpop.f32.mrb[0].mxu0
        %v1161 = vadd.f32 %v876, %v1160
        %v1162 = vpop.f32.mrb[0].mxu0
        %v1163 = vpop.f32.mrb[0].mxu0
        %v1164 = vadd.f32 %v876, %v1163
        %v1165 = vpop.f32.mrb[0].mxu0
        %1166 = vmatprep.mubr.bf16.mxu0 0
        %1167 = vmatmul.mubr.bf16.gmra.mrb[0].mxu0 %v956
        %v1168 = vpop.f32.mrb[0].mxu0
        %v1169 = vadd.f32 %v876, %v1168
        %v1170 = vpop.f32.mrb[0].mxu0
        %v1171 = vpop.f32.mrb[0].mxu0
        %v1172 = vadd.f32 %v876, %v1171
        %v1173 = vpop.f32.mrb[0].mxu0
        %1174 = vmatprep.mubr.bf16.mxu0 0
        %1175 = vmatmul.mubr.bf16.gmra.mrb[0].mxu0 %v957
        %v1176 = vpop.f32.mrb[0].mxu0
        %v1177 = vadd.f32 %v876, %v1176
        %v1178 = vpop.f32.mrb[0].mxu0
        %v1179 = vpop.f32.mrb[0].mxu0
        %v1180 = vadd.f32 %v876, %v1179
        %v1181 = vpop.f32.mrb[0].mxu0
        %1182 = vdwg.mxu0
        %v1183 = vld [vmem:[%s1] sm:$0x3]
        %v1184 = vld [vmem:[%s2] sm:$0xf]
        %v1185 = vld [vmem:[%s2 + $0x4] sm:$0xf]
        %v1186 = vld [vmem:[%s2 + $0x8] sm:$0xf]
        %v1187 = vld [vmem:[%s2 + $0xc] sm:$0xf]
        %v1188 = vld [vmem:[%s2 + $0x10] sm:$0xf]
        %v1189 = vld [vmem:[%s2 + $0x14] sm:$0xf]
        %v1190 = vld [vmem:[%s2 + $0x18] sm:$0xf]
        %v1191 = vld [vmem:[%s2 + $0x1c] sm:$0xf]
        %v1192 = vld [vmem:[%s2 + $0x20] sm:$0xf]
        %v1193 = vld [vmem:[%s2 + $0x24] sm:$0xf]
        %v1194 = vld [vmem:[%s2 + $0x28] sm:$0xf]
        %v1195 = vld [vmem:[%s2 + $0x2c] sm:$0xf]
        %v1196 = vld [vmem:[%s2 + $0x30] sm:$0xf]
        %v1197 = vld [vmem:[%s2 + $0x34] sm:$0xf]
        %v1198 = vld [vmem:[%s2 + $0x38] sm:$0xf]
        %v1199 = vld [vmem:[%s2 + $0x3c] sm:$0xf]
        %v1200 = vld [vmem:[%s2 + $0x40] sm:$0xf]
        %v1201 = vld [vmem:[%s2 + $0x44] sm:$0xf]
        %v1202 = vld [vmem:[%s2 + $0x48] sm:$0xf]
        %v1203 = vld [vmem:[%s2 + $0x4c] sm:$0xf]
        %v1204 = vld [vmem:[%s2 + $0x50] sm:$0xf]
        %v1205 = vld [vmem:[%s2 + $0x54] sm:$0xf]
        %v1206 = vld [vmem:[%s2 + $0x58] sm:$0xf]
        %v1207 = vld [vmem:[%s2 + $0x5c] sm:$0xf]
        %v1208 = vld [vmem:[%s2 + $0x60] sm:$0xf]
        %v1209 = vld [vmem:[%s2 + $0x64] sm:$0xf]
        %v1210 = vld [vmem:[%s2 + $0x68] sm:$0xf]
        %v1211 = vld [vmem:[%s2 + $0x6c] sm:$0xf]
        %v1212 = vld [vmem:[%s2 + $0x70] sm:$0xf]
        %v1213 = vld [vmem:[%s2 + $0x74] sm:$0xf]
        %v1214 = vld [vmem:[%s2 + $0x78] sm:$0xf]
        %v1215 = vld [vmem:[%s2 + $0x7c] sm:$0xf]
        %v1216 = vld [vmem:[%s3] sm:$0xf]
        %v1217 = vld [vmem:[%s3 + $0x4] sm:$0xf]
        %v1218 = vld [vmem:[%s3 + $0x8] sm:$0xf]
        %v1219 = vld [vmem:[%s3 + $0xc] sm:$0xf]
        %v1220 = vld [vmem:[%s3 + $0x10] sm:$0xf]
        %v1221 = vld [vmem:[%s3 + $0x14] sm:$0xf]
        %v1222 = vld [vmem:[%s3 + $0x18] sm:$0xf]
        %v1223 = vld [vmem:[%s3 + $0x1c] sm:$0xf]
        %v1224 = vld [vmem:[%s3 + $0x20] sm:$0xf]
        %v1225 = vld [vmem:[%s3 + $0x24] sm:$0xf]
        %v1226 = vld [vmem:[%s3 + $0x28] sm:$0xf]
        %v1227 = vld [vmem:[%s3 + $0x2c] sm:$0xf]
        %v1228 = vld [vmem:[%s3 + $0x30] sm:$0xf]
        %v1229 = vld [vmem:[%s3 + $0x34] sm:$0xf]
        %v1230 = vld [vmem:[%s3 + $0x38] sm:$0xf]
        %v1231 = vld [vmem:[%s3 + $0x3c] sm:$0xf]
        %v1232 = vld [vmem:[%s4] sm:$0x1]
        %v1233 = vld [vmem:[%s5] sm:$0xf]
        %v1234 = vld [vmem:[%s5 + $0x4] sm:$0xf]
        %v1235 = vld [vmem:[%s5 + $0x8] sm:$0xf]
        %v1236 = vld [vmem:[%s5 + $0xc] sm:$0xf]
        %v1237 = vld [vmem:[%s5 + $0x10] sm:$0xf]
        %v1238 = vld [vmem:[%s5 + $0x14] sm:$0xf]
        %v1239 = vld [vmem:[%s5 + $0x18] sm:$0xf]
        %v1240 = vld [vmem:[%s5 + $0x1c] sm:$0xf]
        %v1241 = vld [vmem:[%s5 + $0x20] sm:$0xf]
        %v1242 = vld [vmem:[%s5 + $0x24] sm:$0xf]
        %v1243 = vld [vmem:[%s5 + $0x28] sm:$0xf]
        %v1244 = vld [vmem:[%s5 + $0x2c] sm:$0xf]
        %v1245 = vld [vmem:[%s5 + $0x30] sm:$0xf]
        %v1246 = vld [vmem:[%s5 + $0x34] sm:$0xf]
        %v1247 = vld [vmem:[%s5 + $0x38] sm:$0xf]
        %v1248 = vld [vmem:[%s5 + $0x3c] sm:$0xf]
        %v1251 = vunpack.c.l.s4 1966171168
        %v1252 = vunpack.c.0.s8 %v1251
        %v1253 = vlaneseq
        %v1254 = vshrl.u32 %v1253, 7
        %v1255 = vsub.s32 %v1252, %v1254
        %v1256 = vrot.slane %v1183, %v1255
        %v1257 = vcombine.high %v1256, %v1256
        %v1259 = vunpack.c.l.s4 1966171168
        %v1260 = vunpack.c.0.s8 %v1259
        %v1261 = vlaneseq
        %v1262 = vshrl.u32 %v1261, 7
        %v1263 = vsub.s32 %v1260, %v1262
        %v1264 = vrot.slane %v1256, %v1263
        %v1266 = vunpack.c.l.s4 1966171168
        %v1267 = vunpack.c.0.s8 %v1266
        %v1268 = vlaneseq
        %v1269 = vshrl.u32 %v1268, 7
        %v1270 = vsub.s32 %v1267, %v1269
        %v1271 = vrot.slane %v1257, %v1270
        %1274 = vmatprep.subr.bf16.mxu0 0
        %1275 = vmatpush1.bf16.msra.mxu0 %v942
        %1276 = vmatprep.subr.bf16.mxu0 0
        %1277 = vmatpush1.bf16.msra.mxu0 %v943
        %1278 = vmatprep.subr.bf16.mxu0 0
        %1279 = vmatpush1.bf16.msra.mxu0 %v944
        %1280 = vmatprep.subr.bf16.mxu0 0
        %1281 = vmatpush1.bf16.msra.mxu0 %v945
        %1282 = vmatprep.subr.bf16.mxu0 0
        %1283 = vmatpush1.bf16.msra.mxu0 %v946
        %1284 = vmatprep.subr.bf16.mxu0 0
        %1285 = vmatpush1.bf16.msra.mxu0 %v947
        %1286 = vmatprep.subr.bf16.mxu0 0
        %1287 = vmatpush1.bf16.msra.mxu0 %v948
        %1288 = vmatprep.subr.bf16.mxu0 0
        %1289 = vmatpush1.bf16.msra.mxu0 %v949
        %1290 = vmatprep.subr.bf16.mxu0 0
        %1291 = vmatpush1.bf16.msra.mxu0 %v950
        %1292 = vmatprep.subr.bf16.mxu0 0
        %1293 = vmatpush1.bf16.msra.mxu0 %v951
        %1294 = vmatprep.subr.bf16.mxu0 0
        %1295 = vmatpush1.bf16.msra.mxu0 %v952
        %1296 = vmatprep.subr.bf16.mxu0 0
        %1297 = vmatpush1.bf16.msra.mxu0 %v953
        %1298 = vmatprep.subr.bf16.mxu0 0
        %1299 = vmatpush1.bf16.msra.mxu0 %v954
        %1300 = vmatprep.subr.bf16.mxu0 0
        %1301 = vmatpush1.bf16.msra.mxu0 %v955
        %1302 = vmatprep.subr.bf16.mxu0 0
        %1303 = vmatpush1.bf16.msra.mxu0 %v956
        %1304 = vmatprep.subr.bf16.mxu0 0
        %1305 = vmatpush1.bf16.msra.mxu0 %v957
        %1306 = vmatprep.mubr.bf16.mxu0 %v1271
        %1307 = vmatmul.mubr.bf16.gmra.mrb[0].mxu0 %v1264
        %v1308 = vpop.f32.mrb[0].mxu0
        %v1309 = vadd.f32 0.0, %v1308
        %v1310 = vpop.f32.mrb[0].mxu0
        %v1311 = vpop.f32.mrb[0].mxu0
        %v1312 = vpop.f32.mrb[0].mxu0
        %1313 = vdwg.mxu0
        %v1314 = vpack.c.bf16 %v1309, %v1309
        %v1331 = vunpack.c.l.b16 %v1216
        %v1332 = vunpack.c.l.b16 %v1217
        %v1333 = vunpack.c.l.b16 %v1218
        %v1334 = vunpack.c.l.b16 %v1219
        %v1335 = vunpack.c.l.b16 %v1220
        %v1336 = vunpack.c.l.b16 %v1221
        %v1337 = vunpack.c.l.b16 %v1222
        %v1338 = vunpack.c.l.b16 %v1223
        %v1339 = vunpack.c.l.b16 %v1224
        %v1340 = vunpack.c.l.b16 %v1225
        %v1341 = vunpack.c.l.b16 %v1226
        %v1342 = vunpack.c.l.b16 %v1227
        %v1343 = vunpack.c.l.b16 %v1228
        %v1344 = vunpack.c.l.b16 %v1229
        %v1345 = vunpack.c.l.b16 %v1230
        %v1346 = vunpack.c.l.b16 %v1231
        %v1347 = vpack.c.b16 %v1332, %v1331
        %v1348 = vpack.c.b16 %v1334, %v1333
        %v1349 = vpack.c.b16 %v1336, %v1335
        %v1350 = vpack.c.b16 %v1338, %v1337
        %v1351 = vpack.c.b16 %v1340, %v1339
        %v1352 = vpack.c.b16 %v1342, %v1341
        %v1353 = vpack.c.b16 %v1344, %v1343
        %v1354 = vpack.c.b16 %v1346, %v1345
        %1363 = vmatprep.subr.bf16.mxu0 0
        %1364 = vmatpush1.bf16.msra.mxu0 %v1347
        %1365 = vmatprep.subr.bf16.mxu0 0
        %1366 = vmatpush1.bf16.msra.mxu0 %v1348
        %1367 = vmatprep.subr.bf16.mxu0 0
        %1368 = vmatpush1.bf16.msra.mxu0 %v1349
        %1369 = vmatprep.subr.bf16.mxu0 0
        %1370 = vmatpush1.bf16.msra.mxu0 %v1350
        %1371 = vmatprep.subr.bf16.mxu0 0
        %1372 = vmatpush1.bf16.msra.mxu0 %v1351
        %1373 = vmatprep.subr.bf16.mxu0 0
        %1374 = vmatpush1.bf16.msra.mxu0 %v1352
        %1375 = vmatprep.subr.bf16.mxu0 0
        %1376 = vmatpush1.bf16.msra.mxu0 %v1353
        %1377 = vmatprep.subr.bf16.mxu0 0
        %1378 = vmatpush1.bf16.msra.mxu0 %v1354
        %1379 = vmatprep.subr.bf16.mxu0 0
        %1380 = vmatpush1.bf16.msra.mxu0 0
        %1381 = vmatprep.subr.bf16.mxu0 0
        %1382 = vmatpush1.bf16.msra.mxu0 0
        %1383 = vmatprep.subr.bf16.mxu0 0
        %1384 = vmatpush1.bf16.msra.mxu0 0
        %1385 = vmatprep.subr.bf16.mxu0 0
        %1386 = vmatpush1.bf16.msra.mxu0 0
        %1387 = vmatprep.subr.bf16.mxu0 0
        %1388 = vmatpush1.bf16.msra.mxu0 0
        %1389 = vmatprep.subr.bf16.mxu0 0
        %1390 = vmatpush1.bf16.msra.mxu0 0
        %1391 = vmatprep.subr.bf16.mxu0 0
        %1392 = vmatpush1.bf16.msra.mxu0 0
        %1393 = vmatprep.subr.bf16.mxu0 0
        %1394 = vmatpush1.bf16.msra.mxu0 0
        %1395 = vmatprep.mubr.bf16.mxu0 0
        %1396 = vmatmul.mubr.bf16.gmra.mrb[0].mxu0 %v1314
        %v1397 = vpop.f32.mrb[0].mxu0
        %v1398 = vadd.f32 %v1232, %v1397
        %v1399 = vpop.f32.mrb[0].mxu0
        %v1400 = vpop.f32.mrb[0].mxu0
        %v1401 = vpop.f32.mrb[0].mxu0
        %1402 = vdwg.mxu0
        %v1403 = vmax.f32 %v1398, 0.0
        %v1404 = vpack.c.bf16 %v1403, %v1403
        %v1421 = vunpack.c.l.b16 %v1233
        %v1422 = vunpack.c.l.b16 %v1234
        %v1423 = vunpack.c.l.b16 %v1235
        %v1424 = vunpack.c.l.b16 %v1236
        %v1425 = vunpack.c.l.b16 %v1237
        %v1426 = vunpack.c.l.b16 %v1238
        %v1427 = vunpack.c.l.b16 %v1239
        %v1428 = vunpack.c.l.b16 %v1240
        %v1429 = vunpack.c.l.b16 %v1241
        %v1430 = vunpack.c.l.b16 %v1242
        %v1431 = vunpack.c.l.b16 %v1243
        %v1432 = vunpack.c.l.b16 %v1244
        %v1433 = vunpack.c.l.b16 %v1245
        %v1434 = vunpack.c.l.b16 %v1246
        %v1435 = vunpack.c.l.b16 %v1247
        %v1436 = vunpack.c.l.b16 %v1248
        %v1437 = vpack.c.b16 %v1422, %v1421
        %v1438 = vpack.c.b16 %v1424, %v1423
        %v1439 = vpack.c.b16 %v1426, %v1425
        %v1440 = vpack.c.b16 %v1428, %v1427
        %v1441 = vpack.c.b16 %v1430, %v1429
        %v1442 = vpack.c.b16 %v1432, %v1431
        %v1443 = vpack.c.b16 %v1434, %v1433
        %v1444 = vpack.c.b16 %v1436, %v1435
        %1453 = vmatprep.subr.bf16.mxu0 0
        %1454 = vmatpush1.bf16.msra.mxu0 %v1437
        %1455 = vmatprep.subr.bf16.mxu0 0
        %1456 = vmatpush1.bf16.msra.mxu0 %v1438
        %1457 = vmatprep.subr.bf16.mxu0 0
        %1458 = vmatpush1.bf16.msra.mxu0 %v1439
        %1459 = vmatprep.subr.bf16.mxu0 0
        %1460 = vmatpush1.bf16.msra.mxu0 %v1440
        %1461 = vmatprep.subr.bf16.mxu0 0
        %1462 = vmatpush1.bf16.msra.mxu0 %v1441
        %1463 = vmatprep.subr.bf16.mxu0 0
        %1464 = vmatpush1.bf16.msra.mxu0 %v1442
        %1465 = vmatprep.subr.bf16.mxu0 0
        %1466 = vmatpush1.bf16.msra.mxu0 %v1443
        %1467 = vmatprep.subr.bf16.mxu0 0
        %1468 = vmatpush1.bf16.msra.mxu0 %v1444
        %1469 = vmatprep.subr.bf16.mxu0 0
        %1470 = vmatpush1.bf16.msra.mxu0 0
        %1471 = vmatprep.subr.bf16.mxu0 0
        %1472 = vmatpush1.bf16.msra.mxu0 0
        %1473 = vmatprep.subr.bf16.mxu0 0
        %1474 = vmatpush1.bf16.msra.mxu0 0
        %1475 = vmatprep.subr.bf16.mxu0 0
        %1476 = vmatpush1.bf16.msra.mxu0 0
        %1477 = vmatprep.subr.bf16.mxu0 0
        %1478 = vmatpush1.bf16.msra.mxu0 0
        %1479 = vmatprep.subr.bf16.mxu0 0
        %1480 = vmatpush1.bf16.msra.mxu0 0
        %1481 = vmatprep.subr.bf16.mxu0 0
        %1482 = vmatpush1.bf16.msra.mxu0 0
        %1483 = vmatprep.subr.bf16.mxu0 0
        %1484 = vmatpush1.bf16.msra.mxu0 0
        %1485 = vmatprep.mubr.bf16.mxu0 0
        %1486 = vmatmul.mubr.bf16.gmra.mrb[0].mxu0 %v1404
        %v1487 = vpop.f32.mrb[0].mxu0
        %v1488 = vadd.f32 0.0, %v1487
        %v1489 = vpop.f32.mrb[0].mxu0
        %v1490 = vpop.f32.mrb[0].mxu0
        %v1491 = vpop.f32.mrb[0].mxu0
        %1492 = vdwg.mxu0
        %v1493 = vpack.c.bf16 %v1488, %v1488
        %v1526 = vunpack.c.l.b16 %v1184
        %v1527 = vunpack.c.l.b16 %v1185
        %v1528 = vunpack.c.l.b16 %v1186
        %v1529 = vunpack.c.l.b16 %v1187
        %v1530 = vunpack.c.l.b16 %v1188
        %v1531 = vunpack.c.l.b16 %v1189
        %v1532 = vunpack.c.l.b16 %v1190
        %v1533 = vunpack.c.l.b16 %v1191
        %v1534 = vunpack.c.l.b16 %v1192
        %v1535 = vunpack.c.l.b16 %v1193
        %v1536 = vunpack.c.l.b16 %v1194
        %v1537 = vunpack.c.l.b16 %v1195
        %v1538 = vunpack.c.l.b16 %v1196
        %v1539 = vunpack.c.l.b16 %v1197
        %v1540 = vunpack.c.l.b16 %v1198
        %v1541 = vunpack.c.l.b16 %v1199
        %v1542 = vunpack.c.l.b16 %v1200
        %v1543 = vunpack.c.l.b16 %v1201
        %v1544 = vunpack.c.l.b16 %v1202
        %v1545 = vunpack.c.l.b16 %v1203
        %v1546 = vunpack.c.l.b16 %v1204
        %v1547 = vunpack.c.l.b16 %v1205
        %v1548 = vunpack.c.l.b16 %v1206
        %v1549 = vunpack.c.l.b16 %v1207
        %v1550 = vunpack.c.l.b16 %v1208
        %v1551 = vunpack.c.l.b16 %v1209
        %v1552 = vunpack.c.l.b16 %v1210
        %v1553 = vunpack.c.l.b16 %v1211
        %v1554 = vunpack.c.l.b16 %v1212
        %v1555 = vunpack.c.l.b16 %v1213
        %v1556 = vunpack.c.l.b16 %v1214
        %v1557 = vunpack.c.l.b16 %v1215
        %v1558 = vpack.c.b16 %v1527, %v1526
        %v1559 = vpack.c.b16 %v1529, %v1528
        %v1560 = vpack.c.b16 %v1531, %v1530
        %v1561 = vpack.c.b16 %v1533, %v1532
        %v1562 = vpack.c.b16 %v1535, %v1534
        %v1563 = vpack.c.b16 %v1537, %v1536
        %v1564 = vpack.c.b16 %v1539, %v1538
        %v1565 = vpack.c.b16 %v1541, %v1540
        %v1566 = vpack.c.b16 %v1543, %v1542
        %v1567 = vpack.c.b16 %v1545, %v1544
        %v1568 = vpack.c.b16 %v1547, %v1546
        %v1569 = vpack.c.b16 %v1549, %v1548
        %v1570 = vpack.c.b16 %v1551, %v1550
        %v1571 = vpack.c.b16 %v1553, %v1552
        %v1572 = vpack.c.b16 %v1555, %v1554
        %v1573 = vpack.c.b16 %v1557, %v1556
        %vm1574 = vcmask 7168
        %v1576 = vsel %vm1574, %v1558, 0
        %v1579 = vsel %vm1574, %v1559, 0
        %v1582 = vsel %vm1574, %v1560, 0
        %v1585 = vsel %vm1574, %v1561, 0
        %v1588 = vsel %vm1574, %v1562, 0
        %v1591 = vsel %vm1574, %v1563, 0
        %v1594 = vsel %vm1574, %v1564, 0
        %v1597 = vsel %vm1574, %v1565, 0
        %v1600 = vsel %vm1574, %v1566, 0
        %v1603 = vsel %vm1574, %v1567, 0
        %v1606 = vsel %vm1574, %v1568, 0
        %v1609 = vsel %vm1574, %v1569, 0
        %v1612 = vsel %vm1574, %v1570, 0
        %v1615 = vsel %vm1574, %v1571, 0
        %v1618 = vsel %vm1574, %v1572, 0
        %v1621 = vsel %vm1574, %v1573, 0
        %vm1623 = vcmask 1040384
        %v1624 = vsel 0, 4294967295, 65535
        %v1625 = vsel %vm1623, %v1624, 0
        %v1627 = vand.u32 %v1493, %v1625
        %1629 = vmatprep.subr.bf16.mxu0 0
        %1630 = vmatpush1.bf16.msra.mxu0 %v1627
        %1631 = vmatprep.subr.bf16.mxu0 0
        %1632 = vmatpush1.bf16.msra.mxu0 0
        %1633 = vmatprep.subr.bf16.mxu0 0
        %1634 = vmatpush1.bf16.msra.mxu0 0
        %1635 = vmatprep.subr.bf16.mxu0 0
        %1636 = vmatpush1.bf16.msra.mxu0 0
        %1637 = vmatprep.subr.bf16.mxu0 0
        %1638 = vmatpush1.bf16.msra.mxu0 0
        %1639 = vmatprep.subr.bf16.mxu0 0
        %1640 = vmatpush1.bf16.msra.mxu0 0
        %1641 = vmatprep.subr.bf16.mxu0 0
        %1642 = vmatpush1.bf16.msra.mxu0 0
        %1643 = vmatprep.subr.bf16.mxu0 0
        %1644 = vmatpush1.bf16.msra.mxu0 0
        %1645 = vmatprep.subr.bf16.mxu0 0
        %1646 = vmatpush1.bf16.msra.mxu0 0
        %1647 = vmatprep.subr.bf16.mxu0 0
        %1648 = vmatpush1.bf16.msra.mxu0 0
        %1649 = vmatprep.subr.bf16.mxu0 0
        %1650 = vmatpush1.bf16.msra.mxu0 0
        %1651 = vmatprep.subr.bf16.mxu0 0
        %1652 = vmatpush1.bf16.msra.mxu0 0
        %1653 = vmatprep.subr.bf16.mxu0 0
        %1654 = vmatpush1.bf16.msra.mxu0 0
        %1655 = vmatprep.subr.bf16.mxu0 0
        %1656 = vmatpush1.bf16.msra.mxu0 0
        %1657 = vmatprep.subr.bf16.mxu0 0
        %1658 = vmatpush1.bf16.msra.mxu0 0
        %1659 = vmatprep.subr.bf16.mxu0 0
        %1660 = vmatpush1.bf16.msra.mxu0 0
        %1661 = vmatprep.mubr.bf16.mxu0 0
        %1662 = vmatmul.mubr.bf16.gmra.mrb[0].mxu0 %v1576
        %v1663 = vpop.f32.mrb[0].mxu0
        %v1664 = vadd.f32 0.0, %v1663
        %v1665 = vpop.f32.mrb[0].mxu0
        %v1666 = vpop.f32.mrb[0].mxu0
        %v1667 = vadd.f32 0.0, %v1666
        %v1668 = vpop.f32.mrb[0].mxu0
        %1669 = vmatprep.mubr.bf16.mxu0 0
        %1670 = vmatmul.mubr.bf16.gmra.mrb[0].mxu0 %v1579
        %v1671 = vpop.f32.mrb[0].mxu0
        %v1672 = vadd.f32 0.0, %v1671
        %v1673 = vpop.f32.mrb[0].mxu0
        %v1674 = vpop.f32.mrb[0].mxu0
        %v1675 = vadd.f32 0.0, %v1674
        %v1676 = vpop.f32.mrb[0].mxu0
        %1677 = vmatprep.mubr.bf16.mxu0 0
        %1678 = vmatmul.mubr.bf16.gmra.mrb[0].mxu0 %v1582
        %v1679 = vpop.f32.mrb[0].mxu0
        %v1680 = vadd.f32 0.0, %v1679
        %v1681 = vpop.f32.mrb[0].mxu0
        %v1682 = vpop.f32.mrb[0].mxu0
        %v1683 = vadd.f32 0.0, %v1682
        %v1684 = vpop.f32.mrb[0].mxu0
        %1685 = vmatprep.mubr.bf16.mxu0 0
        %1686 = vmatmul.mubr.bf16.gmra.mrb[0].mxu0 %v1585
        %v1687 = vpop.f32.mrb[0].mxu0
        %v1688 = vadd.f32 0.0, %v1687
        %v1689 = vpop.f32.mrb[0].mxu0
        %v1690 = vpop.f32.mrb[0].mxu0
        %v1691 = vadd.f32 0.0, %v1690
        %v1692 = vpop.f32.mrb[0].mxu0
        %1693 = vmatprep.mubr.bf16.mxu0 0
        %1694 = vmatmul.mubr.bf16.gmra.mrb[0].mxu0 %v1588
        %v1695 = vpop.f32.mrb[0].mxu0
        %v1696 = vadd.f32 0.0, %v1695
        %v1697 = vpop.f32.mrb[0].mxu0
        %v1698 = vpop.f32.mrb[0].mxu0
        %v1699 = vadd.f32 0.0, %v1698
        %v1700 = vpop.f32.mrb[0].mxu0
        %1701 = vmatprep.mubr.bf16.mxu0 0
        %1702 = vmatmul.mubr.bf16.gmra.mrb[0].mxu0 %v1591
        %v1703 = vpop.f32.mrb[0].mxu0
        %v1704 = vadd.f32 0.0, %v1703
        %v1705 = vpop.f32.mrb[0].mxu0
        %v1706 = vpop.f32.mrb[0].mxu0
        %v1707 = vadd.f32 0.0, %v1706
        %v1708 = vpop.f32.mrb[0].mxu0
        %1709 = vmatprep.mubr.bf16.mxu0 0
        %1710 = vmatmul.mubr.bf16.gmra.mrb[0].mxu0 %v1594
        %v1711 = vpop.f32.mrb[0].mxu0
        %v1712 = vadd.f32 0.0, %v1711
        %v1713 = vpop.f32.mrb[0].mxu0
        %v1714 = vpop.f32.mrb[0].mxu0
        %v1715 = vadd.f32 0.0, %v1714
        %v1716 = vpop.f32.mrb[0].mxu0
        %1717 = vmatprep.mubr.bf16.mxu0 0
        %1718 = vmatmul.mubr.bf16.gmra.mrb[0].mxu0 %v1597
        %v1719 = vpop.f32.mrb[0].mxu0
        %v1720 = vadd.f32 0.0, %v1719
        %v1721 = vpop.f32.mrb[0].mxu0
        %v1722 = vpop.f32.mrb[0].mxu0
        %v1723 = vadd.f32 0.0, %v1722
        %v1724 = vpop.f32.mrb[0].mxu0
        %1725 = vmatprep.mubr.bf16.mxu0 0
        %1726 = vmatmul.mubr.bf16.gmra.mrb[0].mxu0 %v1600
        %v1727 = vpop.f32.mrb[0].mxu0
        %v1728 = vadd.f32 0.0, %v1727
        %v1729 = vpop.f32.mrb[0].mxu0
        %v1730 = vpop.f32.mrb[0].mxu0
        %v1731 = vadd.f32 0.0, %v1730
        %v1732 = vpop.f32.mrb[0].mxu0
        %1733 = vmatprep.mubr.bf16.mxu0 0
        %1734 = vmatmul.mubr.bf16.gmra.mrb[0].mxu0 %v1603
        %v1735 = vpop.f32.mrb[0].mxu0
        %v1736 = vadd.f32 0.0, %v1735
        %v1737 = vpop.f32.mrb[0].mxu0
        %v1738 = vpop.f32.mrb[0].mxu0
        %v1739 = vadd.f32 0.0, %v1738
        %v1740 = vpop.f32.mrb[0].mxu0
        %1741 = vmatprep.mubr.bf16.mxu0 0
        %1742 = vmatmul.mubr.bf16.gmra.mrb[0].mxu0 %v1606
        %v1743 = vpop.f32.mrb[0].mxu0
        %v1744 = vadd.f32 0.0, %v1743
        %v1745 = vpop.f32.mrb[0].mxu0
        %v1746 = vpop.f32.mrb[0].mxu0
        %v1747 = vadd.f32 0.0, %v1746
        %v1748 = vpop.f32.mrb[0].mxu0
        %1749 = vmatprep.mubr.bf16.mxu0 0
        %1750 = vmatmul.mubr.bf16.gmra.mrb[0].mxu0 %v1609
        %v1751 = vpop.f32.mrb[0].mxu0
        %v1752 = vadd.f32 0.0, %v1751
        %v1753 = vpop.f32.mrb[0].mxu0
        %v1754 = vpop.f32.mrb[0].mxu0
        %v1755 = vadd.f32 0.0, %v1754
        %v1756 = vpop.f32.mrb[0].mxu0
        %1757 = vmatprep.mubr.bf16.mxu0 0
        %1758 = vmatmul.mubr.bf16.gmra.mrb[0].mxu0 %v1612
        %v1759 = vpop.f32.mrb[0].mxu0
        %v1760 = vadd.f32 0.0, %v1759
        %v1761 = vpop.f32.mrb[0].mxu0
        %v1762 = vpop.f32.mrb[0].mxu0
        %v1763 = vadd.f32 0.0, %v1762
        %v1764 = vpop.f32.mrb[0].mxu0
        %1765 = vmatprep.mubr.bf16.mxu0 0
        %1766 = vmatmul.mubr.bf16.gmra.mrb[0].mxu0 %v1615
        %v1767 = vpop.f32.mrb[0].mxu0
        %v1768 = vadd.f32 0.0, %v1767
        %v1769 = vpop.f32.mrb[0].mxu0
        %v1770 = vpop.f32.mrb[0].mxu0
        %v1771 = vadd.f32 0.0, %v1770
        %v1772 = vpop.f32.mrb[0].mxu0
        %1773 = vmatprep.mubr.bf16.mxu0 0
        %1774 = vmatmul.mubr.bf16.gmra.mrb[0].mxu0 %v1618
        %v1775 = vpop.f32.mrb[0].mxu0
        %v1776 = vadd.f32 0.0, %v1775
        %v1777 = vpop.f32.mrb[0].mxu0
        %v1778 = vpop.f32.mrb[0].mxu0
        %v1779 = vadd.f32 0.0, %v1778
        %v1780 = vpop.f32.mrb[0].mxu0
        %1781 = vmatprep.mubr.bf16.mxu0 0
        %1782 = vmatmul.mubr.bf16.gmra.mrb[0].mxu0 %v1621
        %v1783 = vpop.f32.mrb[0].mxu0
        %v1784 = vadd.f32 0.0, %v1783
        %v1785 = vpop.f32.mrb[0].mxu0
        %v1786 = vpop.f32.mrb[0].mxu0
        %v1787 = vadd.f32 0.0, %v1786
        %v1788 = vpop.f32.mrb[0].mxu0
        %1789 = vdwg.mxu0
        %v1790 = vadd.f32 %v1057, %v1664
        %v1791 = vadd.f32 %v1060, %v1667
        %v1792 = vadd.f32 %v1065, %v1672
        %v1793 = vadd.f32 %v1068, %v1675
        %v1794 = vadd.f32 %v1073, %v1680
        %v1795 = vadd.f32 %v1076, %v1683
        %v1796 = vadd.f32 %v1081, %v1688
        %v1797 = vadd.f32 %v1084, %v1691
        %v1798 = vadd.f32 %v1089, %v1696
        %v1799 = vadd.f32 %v1092, %v1699
        %v1800 = vadd.f32 %v1097, %v1704
        %v1801 = vadd.f32 %v1100, %v1707
        %v1802 = vadd.f32 %v1105, %v1712
        %v1803 = vadd.f32 %v1108, %v1715
        %v1804 = vadd.f32 %v1113, %v1720
        %v1805 = vadd.f32 %v1116, %v1723
        %v1806 = vadd.f32 %v1121, %v1728
        %v1807 = vadd.f32 %v1124, %v1731
        %v1808 = vadd.f32 %v1129, %v1736
        %v1809 = vadd.f32 %v1132, %v1739
        %v1810 = vadd.f32 %v1137, %v1744
        %v1811 = vadd.f32 %v1140, %v1747
        %v1812 = vadd.f32 %v1145, %v1752
        %v1813 = vadd.f32 %v1148, %v1755
        %v1814 = vadd.f32 %v1153, %v1760
        %v1815 = vadd.f32 %v1156, %v1763
        %v1816 = vadd.f32 %v1161, %v1768
        %v1817 = vadd.f32 %v1164, %v1771
        %v1818 = vadd.f32 %v1169, %v1776
        %v1819 = vadd.f32 %v1172, %v1779
        %v1820 = vadd.f32 %v1177, %v1784
        %v1821 = vadd.f32 %v1180, %v1787
        %v1822 = vld [vmem:[#allocation2] sm:$0xf]
        %v1823 = vld [vmem:[%s7] sm:$0xf]
        %v1824 = vld [vmem:[%s7 + $0x4] sm:$0xf]
        %v1825 = vld [vmem:[%s7 + $0x8] sm:$0xf]
        %v1826 = vld [vmem:[%s7 + $0xc] sm:$0xf]
        %v1827 = vld [vmem:[%s7 + $0x10] sm:$0xf]
        %v1828 = vld [vmem:[%s7 + $0x14] sm:$0xf]
        %v1829 = vld [vmem:[%s7 + $0x18] sm:$0xf]
        %v1830 = vld [vmem:[%s7 + $0x1c] sm:$0xf]
        %v1831 = vld [vmem:[%s7 + $0x20] sm:$0xf]
        %v1832 = vld [vmem:[%s7 + $0x24] sm:$0xf]
        %v1833 = vld [vmem:[%s7 + $0x28] sm:$0xf]
        %v1834 = vld [vmem:[%s7 + $0x2c] sm:$0xf]
        %v1835 = vld [vmem:[%s7 + $0x30] sm:$0xf]
        %v1836 = vld [vmem:[%s7 + $0x34] sm:$0xf]
        %v1837 = vld [vmem:[%s7 + $0x38] sm:$0xf]
        %v1838 = vld [vmem:[%s7 + $0x3c] sm:$0xf]
        %v1839 = vld [vmem:[%s7 + $0x40] sm:$0xf]
        %v1840 = vld [vmem:[%s7 + $0x44] sm:$0xf]
        %v1841 = vld [vmem:[%s7 + $0x48] sm:$0xf]
        %v1842 = vld [vmem:[%s7 + $0x4c] sm:$0xf]
        %v1843 = vld [vmem:[%s7 + $0x50] sm:$0xf]
        %v1844 = vld [vmem:[%s7 + $0x54] sm:$0xf]
        %v1845 = vld [vmem:[%s7 + $0x58] sm:$0xf]
        %v1846 = vld [vmem:[%s7 + $0x5c] sm:$0xf]
        %v1847 = vld [vmem:[%s7 + $0x60] sm:$0xf]
        %v1848 = vld [vmem:[%s7 + $0x64] sm:$0xf]
        %v1849 = vld [vmem:[%s7 + $0x68] sm:$0xf]
        %v1850 = vld [vmem:[%s7 + $0x6c] sm:$0xf]
        %v1851 = vld [vmem:[%s7 + $0x70] sm:$0xf]
        %v1852 = vld [vmem:[%s7 + $0x74] sm:$0xf]
        %v1853 = vld [vmem:[%s7 + $0x78] sm:$0xf]
        %v1854 = vld [vmem:[%s7 + $0x7c] sm:$0xf]
        %v1855 = vld [vmem:[%s8] sm:$0xf]
        %v1856 = vld [vmem:[%s8 + $0x4] sm:$0xf]
        %v1857 = vld [vmem:[%s8 + $0x8] sm:$0xf]
        %v1858 = vld [vmem:[%s8 + $0xc] sm:$0xf]
        %v1859 = vld [vmem:[%s8 + $0x10] sm:$0xf]
        %v1860 = vld [vmem:[%s8 + $0x14] sm:$0xf]
        %v1861 = vld [vmem:[%s8 + $0x18] sm:$0xf]
        %v1862 = vld [vmem:[%s8 + $0x1c] sm:$0xf]
        %v1863 = vld [vmem:[%s8 + $0x20] sm:$0xf]
        %v1864 = vld [vmem:[%s8 + $0x24] sm:$0xf]
        %v1865 = vld [vmem:[%s8 + $0x28] sm:$0xf]
        %v1866 = vld [vmem:[%s8 + $0x2c] sm:$0xf]
        %v1867 = vld [vmem:[%s8 + $0x30] sm:$0xf]
        %v1868 = vld [vmem:[%s8 + $0x34] sm:$0xf]
        %v1869 = vld [vmem:[%s8 + $0x38] sm:$0xf]
        %v1870 = vld [vmem:[%s8 + $0x3c] sm:$0xf]
        %v1871 = vld [vmem:[#allocation5] sm:$0x1]
        %v1872 = vld [vmem:[%s10] sm:$0xf]
        %v1873 = vld [vmem:[%s10 + $0x4] sm:$0xf]
        %v1874 = vld [vmem:[%s10 + $0x8] sm:$0xf]
        %v1875 = vld [vmem:[%s10 + $0xc] sm:$0xf]
        %v1876 = vld [vmem:[%s10 + $0x10] sm:$0xf]
        %v1877 = vld [vmem:[%s10 + $0x14] sm:$0xf]
        %v1878 = vld [vmem:[%s10 + $0x18] sm:$0xf]
        %v1879 = vld [vmem:[%s10 + $0x1c] sm:$0xf]
        %v1880 = vld [vmem:[%s10 + $0x20] sm:$0xf]
        %v1881 = vld [vmem:[%s10 + $0x24] sm:$0xf]
        %v1882 = vld [vmem:[%s10 + $0x28] sm:$0xf]
        %v1883 = vld [vmem:[%s10 + $0x2c] sm:$0xf]
        %v1884 = vld [vmem:[%s10 + $0x30] sm:$0xf]
        %v1885 = vld [vmem:[%s10 + $0x34] sm:$0xf]
        %v1886 = vld [vmem:[%s10 + $0x38] sm:$0xf]
        %v1887 = vld [vmem:[%s10 + $0x3c] sm:$0xf]
        %v1890 = vunpack.c.l.s4 1983009808
        %v1891 = vunpack.c.0.s8 %v1890
        %v1892 = vlaneseq
        %v1893 = vshrl.u32 %v1892, 7
        %v1894 = vsub.s32 %v1891, %v1893
        %v1895 = vrot.slane %v1822, %v1894
        %v1896 = vcombine.high %v1895, %v1895
        %1899 = vmatprep.subr.bf16.mxu0 0
        %1900 = vmatpush1.bf16.msra.mxu0 %v942
        %1901 = vmatprep.subr.bf16.mxu0 0
        %1902 = vmatpush1.bf16.msra.mxu0 %v943
        %1903 = vmatprep.subr.bf16.mxu0 0
        %1904 = vmatpush1.bf16.msra.mxu0 %v944
        %1905 = vmatprep.subr.bf16.mxu0 0
        %1906 = vmatpush1.bf16.msra.mxu0 %v945
        %1907 = vmatprep.subr.bf16.mxu0 0
        %1908 = vmatpush1.bf16.msra.mxu0 %v946
        %1909 = vmatprep.subr.bf16.mxu0 0
        %1910 = vmatpush1.bf16.msra.mxu0 %v947
        %1911 = vmatprep.subr.bf16.mxu0 0
        %1912 = vmatpush1.bf16.msra.mxu0 %v948
        %1913 = vmatprep.subr.bf16.mxu0 0
        %1914 = vmatpush1.bf16.msra.mxu0 %v949
        %1915 = vmatprep.subr.bf16.mxu0 0
        %1916 = vmatpush1.bf16.msra.mxu0 %v950
        %1917 = vmatprep.subr.bf16.mxu0 0
        %1918 = vmatpush1.bf16.msra.mxu0 %v951
        %1919 = vmatprep.subr.bf16.mxu0 0
        %1920 = vmatpush1.bf16.msra.mxu0 %v952
        %1921 = vmatprep.subr.bf16.mxu0 0
        %1922 = vmatpush1.bf16.msra.mxu0 %v953
        %1923 = vmatprep.subr.bf16.mxu0 0
        %1924 = vmatpush1.bf16.msra.mxu0 %v954
        %1925 = vmatprep.subr.bf16.mxu0 0
        %1926 = vmatpush1.bf16.msra.mxu0 %v955
        %1927 = vmatprep.subr.bf16.mxu0 0
        %1928 = vmatpush1.bf16.msra.mxu0 %v956
        %1929 = vmatprep.subr.bf16.mxu0 0
        %1930 = vmatpush1.bf16.msra.mxu0 %v957
        %1931 = vmatprep.mubr.bf16.mxu0 %v1896
        %1932 = vmatmul.mubr.bf16.gmra.mrb[0].mxu0 %v1895
        %v1933 = vpop.f32.mrb[0].mxu0
        %v1934 = vadd.f32 0.0, %v1933
        %v1935 = vpop.f32.mrb[0].mxu0
        %v1936 = vpop.f32.mrb[0].mxu0
        %v1937 = vpop.f32.mrb[0].mxu0
        %1938 = vdwg.mxu0
        %v1939 = vpack.c.bf16 %v1934, %v1934
        %v1941 = vlaneseq
        %v1942 = vshrl.u32 %v1941, 7
        %v1943 = vsub.s32 0, %v1942
        %v1944 = vrot.slane %v1871, %v1943
        %v1962 = vunpack.c.l.b16 %v1855
        %v1963 = vunpack.c.l.b16 %v1856
        %v1964 = vunpack.c.l.b16 %v1857
        %v1965 = vunpack.c.l.b16 %v1858
        %v1966 = vunpack.c.l.b16 %v1859
        %v1967 = vunpack.c.l.b16 %v1860
        %v1968 = vunpack.c.l.b16 %v1861
        %v1969 = vunpack.c.l.b16 %v1862
        %v1970 = vunpack.c.l.b16 %v1863
        %v1971 = vunpack.c.l.b16 %v1864
        %v1972 = vunpack.c.l.b16 %v1865
        %v1973 = vunpack.c.l.b16 %v1866
        %v1974 = vunpack.c.l.b16 %v1867
        %v1975 = vunpack.c.l.b16 %v1868
        %v1976 = vunpack.c.l.b16 %v1869
        %v1977 = vunpack.c.l.b16 %v1870
        %v1978 = vpack.c.b16 %v1963, %v1962
        %v1979 = vpack.c.b16 %v1965, %v1964
        %v1980 = vpack.c.b16 %v1967, %v1966
        %v1981 = vpack.c.b16 %v1969, %v1968
        %v1982 = vpack.c.b16 %v1971, %v1970
        %v1983 = vpack.c.b16 %v1973, %v1972
        %v1984 = vpack.c.b16 %v1975, %v1974
        %v1985 = vpack.c.b16 %v1977, %v1976
        %1994 = vmatprep.subr.bf16.mxu0 0
        %1995 = vmatpush1.bf16.msra.mxu0 %v1978
        %1996 = vmatprep.subr.bf16.mxu0 0
        %1997 = vmatpush1.bf16.msra.mxu0 %v1979
        %1998 = vmatprep.subr.bf16.mxu0 0
        %1999 = vmatpush1.bf16.msra.mxu0 %v1980
        %2000 = vmatprep.subr.bf16.mxu0 0
        %2001 = vmatpush1.bf16.msra.mxu0 %v1981
        %2002 = vmatprep.subr.bf16.mxu0 0
        %2003 = vmatpush1.bf16.msra.mxu0 %v1982
        %2004 = vmatprep.subr.bf16.mxu0 0
        %2005 = vmatpush1.bf16.msra.mxu0 %v1983
        %2006 = vmatprep.subr.bf16.mxu0 0
        %2007 = vmatpush1.bf16.msra.mxu0 %v1984
        %2008 = vmatprep.subr.bf16.mxu0 0
        %2009 = vmatpush1.bf16.msra.mxu0 %v1985
        %2010 = vmatprep.subr.bf16.mxu0 0
        %2011 = vmatpush1.bf16.msra.mxu0 0
        %2012 = vmatprep.subr.bf16.mxu0 0
        %2013 = vmatpush1.bf16.msra.mxu0 0
        %2014 = vmatprep.subr.bf16.mxu0 0
        %2015 = vmatpush1.bf16.msra.mxu0 0
        %2016 = vmatprep.subr.bf16.mxu0 0
        %2017 = vmatpush1.bf16.msra.mxu0 0
        %2018 = vmatprep.subr.bf16.mxu0 0
        %2019 = vmatpush1.bf16.msra.mxu0 0
        %2020 = vmatprep.subr.bf16.mxu0 0
        %2021 = vmatpush1.bf16.msra.mxu0 0
        %2022 = vmatprep.subr.bf16.mxu0 0
        %2023 = vmatpush1.bf16.msra.mxu0 0
        %2024 = vmatprep.subr.bf16.mxu0 0
        %2025 = vmatpush1.bf16.msra.mxu0 0
        %2026 = vmatprep.mubr.bf16.mxu0 0
        %2027 = vmatmul.mubr.bf16.gmra.mrb[0].mxu0 %v1939
        %v2028 = vpop.f32.mrb[0].mxu0
        %v2029 = vadd.f32 %v1944, %v2028
        %v2030 = vpop.f32.mrb[0].mxu0
        %v2031 = vpop.f32.mrb[0].mxu0
        %v2032 = vpop.f32.mrb[0].mxu0
        %2033 = vdwg.mxu0
        %v2034 = vmax.f32 %v2029, 0.0
        %v2035 = vpack.c.bf16 %v2034, %v2034
        %v2052 = vunpack.c.l.b16 %v1872
        %v2053 = vunpack.c.l.b16 %v1873
        %v2054 = vunpack.c.l.b16 %v1874
        %v2055 = vunpack.c.l.b16 %v1875
        %v2056 = vunpack.c.l.b16 %v1876
        %v2057 = vunpack.c.l.b16 %v1877
        %v2058 = vunpack.c.l.b16 %v1878
        %v2059 = vunpack.c.l.b16 %v1879
        %v2060 = vunpack.c.l.b16 %v1880
        %v2061 = vunpack.c.l.b16 %v1881
        %v2062 = vunpack.c.l.b16 %v1882
        %v2063 = vunpack.c.l.b16 %v1883
        %v2064 = vunpack.c.l.b16 %v1884
        %v2065 = vunpack.c.l.b16 %v1885
        %v2066 = vunpack.c.l.b16 %v1886
        %v2067 = vunpack.c.l.b16 %v1887
        %v2068 = vpack.c.b16 %v2053, %v2052
        %v2069 = vpack.c.b16 %v2055, %v2054
        %v2070 = vpack.c.b16 %v2057, %v2056
        %v2071 = vpack.c.b16 %v2059, %v2058
        %v2072 = vpack.c.b16 %v2061, %v2060
        %v2073 = vpack.c.b16 %v2063, %v2062
        %v2074 = vpack.c.b16 %v2065, %v2064
        %v2075 = vpack.c.b16 %v2067, %v2066
        %2084 = vmatprep.subr.bf16.mxu0 0
        %2085 = vmatpush1.bf16.msra.mxu0 %v2068
        %2086 = vmatprep.subr.bf16.mxu0 0
        %2087 = vmatpush1.bf16.msra.mxu0 %v2069
        %2088 = vmatprep.subr.bf16.mxu0 0
        %2089 = vmatpush1.bf16.msra.mxu0 %v2070
        %2090 = vmatprep.subr.bf16.mxu0 0
        %2091 = vmatpush1.bf16.msra.mxu0 %v2071
        %2092 = vmatprep.subr.bf16.mxu0 0
        %2093 = vmatpush1.bf16.msra.mxu0 %v2072
        %2094 = vmatprep.subr.bf16.mxu0 0
        %2095 = vmatpush1.bf16.msra.mxu0 %v2073
        %2096 = vmatprep.subr.bf16.mxu0 0
        %2097 = vmatpush1.bf16.msra.mxu0 %v2074
        %2098 = vmatprep.subr.bf16.mxu0 0
        %2099 = vmatpush1.bf16.msra.mxu0 %v2075
        %2100 = vmatprep.subr.bf16.mxu0 0
        %2101 = vmatpush1.bf16.msra.mxu0 0
        %2102 = vmatprep.subr.bf16.mxu0 0
        %2103 = vmatpush1.bf16.msra.mxu0 0
        %2104 = vmatprep.subr.bf16.mxu0 0
        %2105 = vmatpush1.bf16.msra.mxu0 0
        %2106 = vmatprep.subr.bf16.mxu0 0
        %2107 = vmatpush1.bf16.msra.mxu0 0
        %2108 = vmatprep.subr.bf16.mxu0 0
        %2109 = vmatpush1.bf16.msra.mxu0 0
        %2110 = vmatprep.subr.bf16.mxu0 0
        %2111 = vmatpush1.bf16.msra.mxu0 0
        %2112 = vmatprep.subr.bf16.mxu0 0
        %2113 = vmatpush1.bf16.msra.mxu0 0
        %2114 = vmatprep.subr.bf16.mxu0 0
        %2115 = vmatpush1.bf16.msra.mxu0 0
        %2116 = vmatprep.mubr.bf16.mxu0 0
        %2117 = vmatmul.mubr.bf16.gmra.mrb[0].mxu0 %v2035
        %v2118 = vpop.f32.mrb[0].mxu0
        %v2119 = vadd.f32 0.0, %v2118
        %v2120 = vpop.f32.mrb[0].mxu0
        %v2121 = vpop.f32.mrb[0].mxu0
        %v2122 = vpop.f32.mrb[0].mxu0
        %2123 = vdwg.mxu0
        %v2124 = vpack.c.bf16 %v2119, %v2119
        %v2157 = vunpack.c.l.b16 %v1823
        %v2158 = vunpack.c.l.b16 %v1824
        %v2159 = vunpack.c.l.b16 %v1825
        %v2160 = vunpack.c.l.b16 %v1826
        %v2161 = vunpack.c.l.b16 %v1827
        %v2162 = vunpack.c.l.b16 %v1828
        %v2163 = vunpack.c.l.b16 %v1829
        %v2164 = vunpack.c.l.b16 %v1830
        %v2165 = vunpack.c.l.b16 %v1831
        %v2166 = vunpack.c.l.b16 %v1832
        %v2167 = vunpack.c.l.b16 %v1833
        %v2168 = vunpack.c.l.b16 %v1834
        %v2169 = vunpack.c.l.b16 %v1835
        %v2170 = vunpack.c.l.b16 %v1836
        %v2171 = vunpack.c.l.b16 %v1837
        %v2172 = vunpack.c.l.b16 %v1838
        %v2173 = vunpack.c.l.b16 %v1839
        %v2174 = vunpack.c.l.b16 %v1840
        %v2175 = vunpack.c.l.b16 %v1841
        %v2176 = vunpack.c.l.b16 %v1842
        %v2177 = vunpack.c.l.b16 %v1843
        %v2178 = vunpack.c.l.b16 %v1844
        %v2179 = vunpack.c.l.b16 %v1845
        %v2180 = vunpack.c.l.b16 %v1846
        %v2181 = vunpack.c.l.b16 %v1847
        %v2182 = vunpack.c.l.b16 %v1848
        %v2183 = vunpack.c.l.b16 %v1849
        %v2184 = vunpack.c.l.b16 %v1850
        %v2185 = vunpack.c.l.b16 %v1851
        %v2186 = vunpack.c.l.b16 %v1852
        %v2187 = vunpack.c.l.b16 %v1853
        %v2188 = vunpack.c.l.b16 %v1854
        %v2189 = vpack.c.b16 %v2158, %v2157
        %v2190 = vpack.c.b16 %v2160, %v2159
        %v2191 = vpack.c.b16 %v2162, %v2161
        %v2192 = vpack.c.b16 %v2164, %v2163
        %v2193 = vpack.c.b16 %v2166, %v2165
        %v2194 = vpack.c.b16 %v2168, %v2167
        %v2195 = vpack.c.b16 %v2170, %v2169
        %v2196 = vpack.c.b16 %v2172, %v2171
        %v2197 = vpack.c.b16 %v2174, %v2173
        %v2198 = vpack.c.b16 %v2176, %v2175
        %v2199 = vpack.c.b16 %v2178, %v2177
        %v2200 = vpack.c.b16 %v2180, %v2179
        %v2201 = vpack.c.b16 %v2182, %v2181
        %v2202 = vpack.c.b16 %v2184, %v2183
        %v2203 = vpack.c.b16 %v2186, %v2185
        %v2204 = vpack.c.b16 %v2188, %v2187
        %vm2205 = vcmask 31744
        %v2207 = vsel %vm2205, %v2189, 0
        %v2210 = vsel %vm2205, %v2190, 0
        %v2213 = vsel %vm2205, %v2191, 0
        %v2216 = vsel %vm2205, %v2192, 0
        %v2219 = vsel %vm2205, %v2193, 0
        %v2222 = vsel %vm2205, %v2194, 0
        %v2225 = vsel %vm2205, %v2195, 0
        %v2228 = vsel %vm2205, %v2196, 0
        %v2231 = vsel %vm2205, %v2197, 0
        %v2234 = vsel %vm2205, %v2198, 0
        %v2237 = vsel %vm2205, %v2199, 0
        %v2240 = vsel %vm2205, %v2200, 0
        %v2243 = vsel %vm2205, %v2201, 0
        %v2246 = vsel %vm2205, %v2202, 0
        %v2249 = vsel %vm2205, %v2203, 0
        %v2252 = vsel %vm2205, %v2204, 0
        %vm2254 = vcmask 1041408
        %v2256 = vsel %vm2254, %v2124, 0
        %2258 = vmatprep.subr.bf16.mxu0 0
        %2259 = vmatpush1.bf16.msra.mxu0 %v2256
        %2260 = vmatprep.subr.bf16.mxu0 0
        %2261 = vmatpush1.bf16.msra.mxu0 0
        %2262 = vmatprep.subr.bf16.mxu0 0
        %2263 = vmatpush1.bf16.msra.mxu0 0
        %2264 = vmatprep.subr.bf16.mxu0 0
        %2265 = vmatpush1.bf16.msra.mxu0 0
        %2266 = vmatprep.subr.bf16.mxu0 0
        %2267 = vmatpush1.bf16.msra.mxu0 0
        %2268 = vmatprep.subr.bf16.mxu0 0
        %2269 = vmatpush1.bf16.msra.mxu0 0
        %2270 = vmatprep.subr.bf16.mxu0 0
        %2271 = vmatpush1.bf16.msra.mxu0 0
        %2272 = vmatprep.subr.bf16.mxu0 0
        %2273 = vmatpush1.bf16.msra.mxu0 0
        %2274 = vmatprep.subr.bf16.mxu0 0
        %2275 = vmatpush1.bf16.msra.mxu0 0
        %2276 = vmatprep.subr.bf16.mxu0 0
        %2277 = vmatpush1.bf16.msra.mxu0 0
        %2278 = vmatprep.subr.bf16.mxu0 0
        %2279 = vmatpush1.bf16.msra.mxu0 0
        %2280 = vmatprep.subr.bf16.mxu0 0
        %2281 = vmatpush1.bf16.msra.mxu0 0
        %2282 = vmatprep.subr.bf16.mxu0 0
        %2283 = vmatpush1.bf16.msra.mxu0 0
        %2284 = vmatprep.subr.bf16.mxu0 0
        %2285 = vmatpush1.bf16.msra.mxu0 0
        %2286 = vmatprep.subr.bf16.mxu0 0
        %2287 = vmatpush1.bf16.msra.mxu0 0
        %2288 = vmatprep.subr.bf16.mxu0 0
        %2289 = vmatpush1.bf16.msra.mxu0 0
        %2290 = vmatprep.mubr.bf16.mxu0 0
        %2291 = vmatmul.mubr.bf16.gmra.mrb[0].mxu0 %v2207
        %v2292 = vpop.f32.mrb[0].mxu0
        %v2293 = vadd.f32 0.0, %v2292
        %v2294 = vpop.f32.mrb[0].mxu0
        %v2295 = vpop.f32.mrb[0].mxu0
        %v2296 = vadd.f32 0.0, %v2295
        %v2297 = vpop.f32.mrb[0].mxu0
        %2298 = vmatprep.mubr.bf16.mxu0 0
        %2299 = vmatmul.mubr.bf16.gmra.mrb[0].mxu0 %v2210
        %v2300 = vpop.f32.mrb[0].mxu0
        %v2301 = vadd.f32 0.0, %v2300
        %v2302 = vpop.f32.mrb[0].mxu0
        %v2303 = vpop.f32.mrb[0].mxu0
        %v2304 = vadd.f32 0.0, %v2303
        %v2305 = vpop.f32.mrb[0].mxu0
        %2306 = vmatprep.mubr.bf16.mxu0 0
        %2307 = vmatmul.mubr.bf16.gmra.mrb[0].mxu0 %v2213
        %v2308 = vpop.f32.mrb[0].mxu0
        %v2309 = vadd.f32 0.0, %v2308
        %v2310 = vpop.f32.mrb[0].mxu0
        %v2311 = vpop.f32.mrb[0].mxu0
        %v2312 = vadd.f32 0.0, %v2311
        %v2313 = vpop.f32.mrb[0].mxu0
        %2314 = vmatprep.mubr.bf16.mxu0 0
        %2315 = vmatmul.mubr.bf16.gmra.mrb[0].mxu0 %v2216
        %v2316 = vpop.f32.mrb[0].mxu0
        %v2317 = vadd.f32 0.0, %v2316
        %v2318 = vpop.f32.mrb[0].mxu0
        %v2319 = vpop.f32.mrb[0].mxu0
        %v2320 = vadd.f32 0.0, %v2319
        %v2321 = vpop.f32.mrb[0].mxu0
        %2322 = vmatprep.mubr.bf16.mxu0 0
        %2323 = vmatmul.mubr.bf16.gmra.mrb[0].mxu0 %v2219
        %v2324 = vpop.f32.mrb[0].mxu0
        %v2325 = vadd.f32 0.0, %v2324
        %v2326 = vpop.f32.mrb[0].mxu0
        %v2327 = vpop.f32.mrb[0].mxu0
        %v2328 = vadd.f32 0.0, %v2327
        %v2329 = vpop.f32.mrb[0].mxu0
        %2330 = vmatprep.mubr.bf16.mxu0 0
        %2331 = vmatmul.mubr.bf16.gmra.mrb[0].mxu0 %v2222
        %v2332 = vpop.f32.mrb[0].mxu0
        %v2333 = vadd.f32 0.0, %v2332
        %v2334 = vpop.f32.mrb[0].mxu0
        %v2335 = vpop.f32.mrb[0].mxu0
        %v2336 = vadd.f32 0.0, %v2335
        %v2337 = vpop.f32.mrb[0].mxu0
        %2338 = vmatprep.mubr.bf16.mxu0 0
        %2339 = vmatmul.mubr.bf16.gmra.mrb[0].mxu0 %v2225
        %v2340 = vpop.f32.mrb[0].mxu0
        %v2341 = vadd.f32 0.0, %v2340
        %v2342 = vpop.f32.mrb[0].mxu0
        %v2343 = vpop.f32.mrb[0].mxu0
        %v2344 = vadd.f32 0.0, %v2343
        %v2345 = vpop.f32.mrb[0].mxu0
        %2346 = vmatprep.mubr.bf16.mxu0 0
        %2347 = vmatmul.mubr.bf16.gmra.mrb[0].mxu0 %v2228
        %v2348 = vpop.f32.mrb[0].mxu0
        %v2349 = vadd.f32 0.0, %v2348
        %v2350 = vpop.f32.mrb[0].mxu0
        %v2351 = vpop.f32.mrb[0].mxu0
        %v2352 = vadd.f32 0.0, %v2351
        %v2353 = vpop.f32.mrb[0].mxu0
        %2354 = vmatprep.mubr.bf16.mxu0 0
        %2355 = vmatmul.mubr.bf16.gmra.mrb[0].mxu0 %v2231
        %v2356 = vpop.f32.mrb[0].mxu0
        %v2357 = vadd.f32 0.0, %v2356
        %v2358 = vpop.f32.mrb[0].mxu0
        %v2359 = vpop.f32.mrb[0].mxu0
        %v2360 = vadd.f32 0.0, %v2359
        %v2361 = vpop.f32.mrb[0].mxu0
        %2362 = vmatprep.mubr.bf16.mxu0 0
        %2363 = vmatmul.mubr.bf16.gmra.mrb[0].mxu0 %v2234
        %v2364 = vpop.f32.mrb[0].mxu0
        %v2365 = vadd.f32 0.0, %v2364
        %v2366 = vpop.f32.mrb[0].mxu0
        %v2367 = vpop.f32.mrb[0].mxu0
        %v2368 = vadd.f32 0.0, %v2367
        %v2369 = vpop.f32.mrb[0].mxu0
        %2370 = vmatprep.mubr.bf16.mxu0 0
        %2371 = vmatmul.mubr.bf16.gmra.mrb[0].mxu0 %v2237
        %v2372 = vpop.f32.mrb[0].mxu0
        %v2373 = vadd.f32 0.0, %v2372
        %v2374 = vpop.f32.mrb[0].mxu0
        %v2375 = vpop.f32.mrb[0].mxu0
        %v2376 = vadd.f32 0.0, %v2375
        %v2377 = vpop.f32.mrb[0].mxu0
        %2378 = vmatprep.mubr.bf16.mxu0 0
        %2379 = vmatmul.mubr.bf16.gmra.mrb[0].mxu0 %v2240
        %v2380 = vpop.f32.mrb[0].mxu0
        %v2381 = vadd.f32 0.0, %v2380
        %v2382 = vpop.f32.mrb[0].mxu0
        %v2383 = vpop.f32.mrb[0].mxu0
        %v2384 = vadd.f32 0.0, %v2383
        %v2385 = vpop.f32.mrb[0].mxu0
        %2386 = vmatprep.mubr.bf16.mxu0 0
        %2387 = vmatmul.mubr.bf16.gmra.mrb[0].mxu0 %v2243
        %v2388 = vpop.f32.mrb[0].mxu0
        %v2389 = vadd.f32 0.0, %v2388
        %v2390 = vpop.f32.mrb[0].mxu0
        %v2391 = vpop.f32.mrb[0].mxu0
        %v2392 = vadd.f32 0.0, %v2391
        %v2393 = vpop.f32.mrb[0].mxu0
        %2394 = vmatprep.mubr.bf16.mxu0 0
        %2395 = vmatmul.mubr.bf16.gmra.mrb[0].mxu0 %v2246
        %v2396 = vpop.f32.mrb[0].mxu0
        %v2397 = vadd.f32 0.0, %v2396
        %v2398 = vpop.f32.mrb[0].mxu0
        %v2399 = vpop.f32.mrb[0].mxu0
        %v2400 = vadd.f32 0.0, %v2399
        %v2401 = vpop.f32.mrb[0].mxu0
        %2402 = vmatprep.mubr.bf16.mxu0 0
        %2403 = vmatmul.mubr.bf16.gmra.mrb[0].mxu0 %v2249
        %v2404 = vpop.f32.mrb[0].mxu0
        %v2405 = vadd.f32 0.0, %v2404
        %v2406 = vpop.f32.mrb[0].mxu0
        %v2407 = vpop.f32.mrb[0].mxu0
        %v2408 = vadd.f32 0.0, %v2407
        %v2409 = vpop.f32.mrb[0].mxu0
        %2410 = vmatprep.mubr.bf16.mxu0 0
        %2411 = vmatmul.mubr.bf16.gmra.mrb[0].mxu0 %v2252
        %v2412 = vpop.f32.mrb[0].mxu0
        %v2413 = vadd.f32 0.0, %v2412
        %v2414 = vpop.f32.mrb[0].mxu0
        %v2415 = vpop.f32.mrb[0].mxu0
        %v2416 = vadd.f32 0.0, %v2415
        %v2417 = vpop.f32.mrb[0].mxu0
        %2418 = vdwg.mxu0
        %v2419 = vadd.f32 %v1790, %v2293
        %v2420 = vadd.f32 %v1791, %v2296
        %v2421 = vadd.f32 %v1792, %v2301
        %v2422 = vadd.f32 %v1793, %v2304
        %v2423 = vadd.f32 %v1794, %v2309
        %v2424 = vadd.f32 %v1795, %v2312
        %v2425 = vadd.f32 %v1796, %v2317
        %v2426 = vadd.f32 %v1797, %v2320
        %v2427 = vadd.f32 %v1798, %v2325
        %v2428 = vadd.f32 %v1799, %v2328
        %v2429 = vadd.f32 %v1800, %v2333
        %v2430 = vadd.f32 %v1801, %v2336
        %v2431 = vadd.f32 %v1802, %v2341
        %v2432 = vadd.f32 %v1803, %v2344
        %v2433 = vadd.f32 %v1804, %v2349
        %v2434 = vadd.f32 %v1805, %v2352
        %v2435 = vadd.f32 %v1806, %v2357
        %v2436 = vadd.f32 %v1807, %v2360
        %v2437 = vadd.f32 %v1808, %v2365
        %v2438 = vadd.f32 %v1809, %v2368
        %v2439 = vadd.f32 %v1810, %v2373
        %v2440 = vadd.f32 %v1811, %v2376
        %v2441 = vadd.f32 %v1812, %v2381
        %v2442 = vadd.f32 %v1813, %v2384
        %v2443 = vadd.f32 %v1814, %v2389
        %v2444 = vadd.f32 %v1815, %v2392
        %v2445 = vadd.f32 %v1816, %v2397
        %v2446 = vadd.f32 %v1817, %v2400
        %v2447 = vadd.f32 %v1818, %v2405
        %v2448 = vadd.f32 %v1819, %v2408
        %v2449 = vadd.f32 %v1820, %v2413
        %v2450 = vadd.f32 %v1821, %v2416
        %v2451 = vld [vmem:[#allocation7] sm:$0xff]
        %v2452 = vld [vmem:[#allocation7 + $0x8] sm:$0xff]
        %v2453 = vld [vmem:[%s12] sm:$0xf]
        %v2454 = vld [vmem:[%s12 + $0x4] sm:$0xf]
        %v2455 = vld [vmem:[%s12 + $0x8] sm:$0xf]
        %v2456 = vld [vmem:[%s12 + $0xc] sm:$0xf]
        %v2457 = vld [vmem:[%s12 + $0x10] sm:$0xf]
        %v2458 = vld [vmem:[%s12 + $0x14] sm:$0xf]
        %v2459 = vld [vmem:[%s12 + $0x18] sm:$0xf]
        %v2460 = vld [vmem:[%s12 + $0x1c] sm:$0xf]
        %v2461 = vld [vmem:[%s12 + $0x20] sm:$0xf]
        %v2462 = vld [vmem:[%s12 + $0x24] sm:$0xf]
        %v2463 = vld [vmem:[%s12 + $0x28] sm:$0xf]
        %v2464 = vld [vmem:[%s12 + $0x2c] sm:$0xf]
        %v2465 = vld [vmem:[%s12 + $0x30] sm:$0xf]
        %v2466 = vld [vmem:[%s12 + $0x34] sm:$0xf]
        %v2467 = vld [vmem:[%s12 + $0x38] sm:$0xf]
        %v2468 = vld [vmem:[%s12 + $0x3c] sm:$0xf]
        %v2469 = vld [vmem:[%s12 + $0x40] sm:$0xf]
        %v2470 = vld [vmem:[%s12 + $0x44] sm:$0xf]
        %v2471 = vld [vmem:[%s12 + $0x48] sm:$0xf]
        %v2472 = vld [vmem:[%s12 + $0x4c] sm:$0xf]
        %v2473 = vld [vmem:[%s12 + $0x50] sm:$0xf]
        %v2474 = vld [vmem:[%s12 + $0x54] sm:$0xf]
        %v2475 = vld [vmem:[%s12 + $0x58] sm:$0xf]
        %v2476 = vld [vmem:[%s12 + $0x5c] sm:$0xf]
        %v2477 = vld [vmem:[%s12 + $0x60] sm:$0xf]
        %v2478 = vld [vmem:[%s12 + $0x64] sm:$0xf]
        %v2479 = vld [vmem:[%s12 + $0x68] sm:$0xf]
        %v2480 = vld [vmem:[%s12 + $0x6c] sm:$0xf]
        %v2481 = vld [vmem:[%s12 + $0x70] sm:$0xf]
        %v2482 = vld [vmem:[%s12 + $0x74] sm:$0xf]
        %v2483 = vld [vmem:[%s12 + $0x78] sm:$0xf]
        %v2484 = vld [vmem:[%s12 + $0x7c] sm:$0xf]
        %v2485 = vld [vmem:[%s13] sm:$0xf]
        %v2486 = vld [vmem:[%s13 + $0x4] sm:$0xf]
        %v2487 = vld [vmem:[%s13 + $0x8] sm:$0xf]
        %v2488 = vld [vmem:[%s13 + $0xc] sm:$0xf]
        %v2489 = vld [vmem:[%s13 + $0x10] sm:$0xf]
        %v2490 = vld [vmem:[%s13 + $0x14] sm:$0xf]
        %v2491 = vld [vmem:[%s13 + $0x18] sm:$0xf]
        %v2492 = vld [vmem:[%s13 + $0x1c] sm:$0xf]
        %v2493 = vld [vmem:[%s13 + $0x20] sm:$0xf]
        %v2494 = vld [vmem:[%s13 + $0x24] sm:$0xf]
        %v2495 = vld [vmem:[%s13 + $0x28] sm:$0xf]
        %v2496 = vld [vmem:[%s13 + $0x2c] sm:$0xf]
        %v2497 = vld [vmem:[%s13 + $0x30] sm:$0xf]
        %v2498 = vld [vmem:[%s13 + $0x34] sm:$0xf]
        %v2499 = vld [vmem:[%s13 + $0x38] sm:$0xf]
        %v2500 = vld [vmem:[%s13 + $0x3c] sm:$0xf]
        %v2501 = vld [vmem:[%s14] sm:$0x1]
        %v2502 = vld [vmem:[#allocation8] sm:$0xf]
        %v2503 = vld [vmem:[#allocation8 + $0x4] sm:$0xf]
        %v2504 = vld [vmem:[#allocation8 + $0x8] sm:$0xf]
        %v2505 = vld [vmem:[#allocation8 + $0xc] sm:$0xf]
        %v2506 = vld [vmem:[#allocation8 + $0x10] sm:$0xf]
        %v2507 = vld [vmem:[#allocation8 + $0x14] sm:$0xf]
        %v2508 = vld [vmem:[#allocation8 + $0x18] sm:$0xf]
        %v2509 = vld [vmem:[#allocation8 + $0x1c] sm:$0xf]
        %v2510 = vld [vmem:[#allocation8 + $0x20] sm:$0xf]
        %v2511 = vld [vmem:[#allocation8 + $0x24] sm:$0xf]
        %v2512 = vld [vmem:[#allocation8 + $0x28] sm:$0xf]
        %v2513 = vld [vmem:[#allocation8 + $0x2c] sm:$0xf]
        %v2514 = vld [vmem:[#allocation8 + $0x30] sm:$0xf]
        %v2515 = vld [vmem:[#allocation8 + $0x34] sm:$0xf]
        %v2516 = vld [vmem:[#allocation8 + $0x38] sm:$0xf]
        %v2517 = vld [vmem:[#allocation8 + $0x3c] sm:$0xf]
        %v2520 = vunpack.c.l.b16 %v2451
        %v2521 = vunpack.c.h.b16 %v2451
        %v2522 = vunpack.c.l.b16 %v2452
        %v2523 = vunpack.c.h.b16 %v2452
        %v2524 = vpack.c.b16 %v2522, %v2520
        %v2525 = vpack.c.b16 %v2523, %v2521
        %2528 = vmatprep.subr.bf16.mxu0 0
        %2529 = vmatpush1.bf16.msra.mxu0 %v942
        %2530 = vmatprep.subr.bf16.mxu0 0
        %2531 = vmatpush1.bf16.msra.mxu0 %v943
        %2532 = vmatprep.subr.bf16.mxu0 0
        %2533 = vmatpush1.bf16.msra.mxu0 %v944
        %2534 = vmatprep.subr.bf16.mxu0 0
        %2535 = vmatpush1.bf16.msra.mxu0 %v945
        %2536 = vmatprep.subr.bf16.mxu0 0
        %2537 = vmatpush1.bf16.msra.mxu0 %v946
        %2538 = vmatprep.subr.bf16.mxu0 0
        %2539 = vmatpush1.bf16.msra.mxu0 %v947
        %2540 = vmatprep.subr.bf16.mxu0 0
        %2541 = vmatpush1.bf16.msra.mxu0 %v948
        %2542 = vmatprep.subr.bf16.mxu0 0
        %2543 = vmatpush1.bf16.msra.mxu0 %v949
        %2544 = vmatprep.subr.bf16.mxu0 0
        %2545 = vmatpush1.bf16.msra.mxu0 %v950
        %2546 = vmatprep.subr.bf16.mxu0 0
        %2547 = vmatpush1.bf16.msra.mxu0 %v951
        %2548 = vmatprep.subr.bf16.mxu0 0
        %2549 = vmatpush1.bf16.msra.mxu0 %v952
        %2550 = vmatprep.subr.bf16.mxu0 0
        %2551 = vmatpush1.bf16.msra.mxu0 %v953
        %2552 = vmatprep.subr.bf16.mxu0 0
        %2553 = vmatpush1.bf16.msra.mxu0 %v954
        %2554 = vmatprep.subr.bf16.mxu0 0
        %2555 = vmatpush1.bf16.msra.mxu0 %v955
        %2556 = vmatprep.subr.bf16.mxu0 0
        %2557 = vmatpush1.bf16.msra.mxu0 %v956
        %2558 = vmatprep.subr.bf16.mxu0 0
        %2559 = vmatpush1.bf16.msra.mxu0 %v957
        %2560 = vmatprep.mubr.bf16.mxu0 %v2525
        %2561 = vmatmul.mubr.bf16.gmra.mrb[0].mxu0 %v2524
        %v2562 = vpop.f32.mrb[0].mxu0
        %v2563 = vadd.f32 0.0, %v2562
        %v2564 = vpop.f32.mrb[0].mxu0
        %v2565 = vpop.f32.mrb[0].mxu0
        %v2566 = vadd.f32 0.0, %v2565
        %v2567 = vpop.f32.mrb[0].mxu0
        %2568 = vdwg.mxu0
        %v2569 = vpack.c.bf16 %v2566, %v2563
        %v2571 = vlaneseq
        %v2572 = vshrl.u32 %v2571, 7
        %v2573 = vsub.s32 0, %v2572
        %v2574 = vrot.slane %v2501, %v2573
        %v2592 = vunpack.c.l.b16 %v2485
        %v2593 = vunpack.c.l.b16 %v2486
        %v2594 = vunpack.c.l.b16 %v2487
        %v2595 = vunpack.c.l.b16 %v2488
        %v2596 = vunpack.c.l.b16 %v2489
        %v2597 = vunpack.c.l.b16 %v2490
        %v2598 = vunpack.c.l.b16 %v2491
        %v2599 = vunpack.c.l.b16 %v2492
        %v2600 = vunpack.c.l.b16 %v2493
        %v2601 = vunpack.c.l.b16 %v2494
        %v2602 = vunpack.c.l.b16 %v2495
        %v2603 = vunpack.c.l.b16 %v2496
        %v2604 = vunpack.c.l.b16 %v2497
        %v2605 = vunpack.c.l.b16 %v2498
        %v2606 = vunpack.c.l.b16 %v2499
        %v2607 = vunpack.c.l.b16 %v2500
        %v2608 = vpack.c.b16 %v2593, %v2592
        %v2609 = vpack.c.b16 %v2595, %v2594
        %v2610 = vpack.c.b16 %v2597, %v2596
        %v2611 = vpack.c.b16 %v2599, %v2598
        %v2612 = vpack.c.b16 %v2601, %v2600
        %v2613 = vpack.c.b16 %v2603, %v2602
        %v2614 = vpack.c.b16 %v2605, %v2604
        %v2615 = vpack.c.b16 %v2607, %v2606
        %2624 = vmatprep.subr.bf16.mxu0 0
        %2625 = vmatpush1.bf16.msra.mxu0 %v2608
        %2626 = vmatprep.subr.bf16.mxu0 0
        %2627 = vmatpush1.bf16.msra.mxu0 %v2609
        %2628 = vmatprep.subr.bf16.mxu0 0
        %2629 = vmatpush1.bf16.msra.mxu0 %v2610
        %2630 = vmatprep.subr.bf16.mxu0 0
        %2631 = vmatpush1.bf16.msra.mxu0 %v2611
        %2632 = vmatprep.subr.bf16.mxu0 0
        %2633 = vmatpush1.bf16.msra.mxu0 %v2612
        %2634 = vmatprep.subr.bf16.mxu0 0
        %2635 = vmatpush1.bf16.msra.mxu0 %v2613
        %2636 = vmatprep.subr.bf16.mxu0 0
        %2637 = vmatpush1.bf16.msra.mxu0 %v2614
        %2638 = vmatprep.subr.bf16.mxu0 0
        %2639 = vmatpush1.bf16.msra.mxu0 %v2615
        %2640 = vmatprep.subr.bf16.mxu0 0
        %2641 = vmatpush1.bf16.msra.mxu0 0
        %2642 = vmatprep.subr.bf16.mxu0 0
        %2643 = vmatpush1.bf16.msra.mxu0 0
        %2644 = vmatprep.subr.bf16.mxu0 0
        %2645 = vmatpush1.bf16.msra.mxu0 0
        %2646 = vmatprep.subr.bf16.mxu0 0
        %2647 = vmatpush1.bf16.msra.mxu0 0
        %2648 = vmatprep.subr.bf16.mxu0 0
        %2649 = vmatpush1.bf16.msra.mxu0 0
        %2650 = vmatprep.subr.bf16.mxu0 0
        %2651 = vmatpush1.bf16.msra.mxu0 0
        %2652 = vmatprep.subr.bf16.mxu0 0
        %2653 = vmatpush1.bf16.msra.mxu0 0
        %2654 = vmatprep.subr.bf16.mxu0 0
        %2655 = vmatpush1.bf16.msra.mxu0 0
        %2656 = vmatprep.mubr.bf16.mxu0 0
        %2657 = vmatmul.mubr.bf16.gmra.mrb[0].mxu0 %v2569
        %v2658 = vpop.f32.mrb[0].mxu0
        %v2659 = vadd.f32 %v2574, %v2658
        %v2660 = vpop.f32.mrb[0].mxu0
        %v2661 = vpop.f32.mrb[0].mxu0
        %v2662 = vadd.f32 %v2574, %v2661
        %v2663 = vpop.f32.mrb[0].mxu0
        %2664 = vdwg.mxu0
        %v2665 = vmax.f32 %v2659, 0.0
        %v2666 = vmax.f32 %v2662, 0.0
        %v2667 = vpack.c.bf16 %v2666, %v2665
        %v2684 = vunpack.c.l.b16 %v2502
        %v2685 = vunpack.c.l.b16 %v2503
        %v2686 = vunpack.c.l.b16 %v2504
        %v2687 = vunpack.c.l.b16 %v2505
        %v2688 = vunpack.c.l.b16 %v2506
        %v2689 = vunpack.c.l.b16 %v2507
        %v2690 = vunpack.c.l.b16 %v2508
        %v2691 = vunpack.c.l.b16 %v2509
        %v2692 = vunpack.c.l.b16 %v2510
        %v2693 = vunpack.c.l.b16 %v2511
        %v2694 = vunpack.c.l.b16 %v2512
        %v2695 = vunpack.c.l.b16 %v2513
        %v2696 = vunpack.c.l.b16 %v2514
        %v2697 = vunpack.c.l.b16 %v2515
        %v2698 = vunpack.c.l.b16 %v2516
        %v2699 = vunpack.c.l.b16 %v2517
        %v2700 = vpack.c.b16 %v2685, %v2684
        %v2701 = vpack.c.b16 %v2687, %v2686
        %v2702 = vpack.c.b16 %v2689, %v2688
        %v2703 = vpack.c.b16 %v2691, %v2690
        %v2704 = vpack.c.b16 %v2693, %v2692
        %v2705 = vpack.c.b16 %v2695, %v2694
        %v2706 = vpack.c.b16 %v2697, %v2696
        %v2707 = vpack.c.b16 %v2699, %v2698
        %2716 = vmatprep.subr.bf16.mxu0 0
        %2717 = vmatpush1.bf16.msra.mxu0 %v2700
        %2718 = vmatprep.subr.bf16.mxu0 0
        %2719 = vmatpush1.bf16.msra.mxu0 %v2701
        %2720 = vmatprep.subr.bf16.mxu0 0
        %2721 = vmatpush1.bf16.msra.mxu0 %v2702
        %2722 = vmatprep.subr.bf16.mxu0 0
        %2723 = vmatpush1.bf16.msra.mxu0 %v2703
        %2724 = vmatprep.subr.bf16.mxu0 0
        %2725 = vmatpush1.bf16.msra.mxu0 %v2704
        %2726 = vmatprep.subr.bf16.mxu0 0
        %2727 = vmatpush1.bf16.msra.mxu0 %v2705
        %2728 = vmatprep.subr.bf16.mxu0 0
        %2729 = vmatpush1.bf16.msra.mxu0 %v2706
        %2730 = vmatprep.subr.bf16.mxu0 0
        %2731 = vmatpush1.bf16.msra.mxu0 %v2707
        %2732 = vmatprep.subr.bf16.mxu0 0
        %2733 = vmatpush1.bf16.msra.mxu0 0
        %2734 = vmatprep.subr.bf16.mxu0 0
        %2735 = vmatpush1.bf16.msra.mxu0 0
        %2736 = vmatprep.subr.bf16.mxu0 0
        %2737 = vmatpush1.bf16.msra.mxu0 0
        %2738 = vmatprep.subr.bf16.mxu0 0
        %2739 = vmatpush1.bf16.msra.mxu0 0
        %2740 = vmatprep.subr.bf16.mxu0 0
        %2741 = vmatpush1.bf16.msra.mxu0 0
        %2742 = vmatprep.subr.bf16.mxu0 0
        %2743 = vmatpush1.bf16.msra.mxu0 0
        %2744 = vmatprep.subr.bf16.mxu0 0
        %2745 = vmatpush1.bf16.msra.mxu0 0
        %2746 = vmatprep.subr.bf16.mxu0 0
        %2747 = vmatpush1.bf16.msra.mxu0 0
        %2748 = vmatprep.mubr.bf16.mxu0 0
        %2749 = vmatmul.mubr.bf16.gmra.mrb[0].mxu0 %v2667
        %v2750 = vpop.f32.mrb[0].mxu0
        %v2751 = vadd.f32 0.0, %v2750
        %v2752 = vpop.f32.mrb[0].mxu0
        %v2753 = vpop.f32.mrb[0].mxu0
        %v2754 = vadd.f32 0.0, %v2753
        %v2755 = vpop.f32.mrb[0].mxu0
        %2756 = vdwg.mxu0
        %v2757 = vpack.c.bf16 %v2754, %v2751
        %v2790 = vunpack.c.l.b16 %v2453
        %v2791 = vunpack.c.l.b16 %v2454
        %v2792 = vunpack.c.l.b16 %v2455
        %v2793 = vunpack.c.l.b16 %v2456
        %v2794 = vunpack.c.l.b16 %v2457
        %v2795 = vunpack.c.l.b16 %v2458
        %v2796 = vunpack.c.l.b16 %v2459
        %v2797 = vunpack.c.l.b16 %v2460
        %v2798 = vunpack.c.l.b16 %v2461
        %v2799 = vunpack.c.l.b16 %v2462
        %v2800 = vunpack.c.l.b16 %v2463
        %v2801 = vunpack.c.l.b16 %v2464
        %v2802 = vunpack.c.l.b16 %v2465
        %v2803 = vunpack.c.l.b16 %v2466
        %v2804 = vunpack.c.l.b16 %v2467
        %v2805 = vunpack.c.l.b16 %v2468
        %v2806 = vunpack.c.l.b16 %v2469
        %v2807 = vunpack.c.l.b16 %v2470
        %v2808 = vunpack.c.l.b16 %v2471
        %v2809 = vunpack.c.l.b16 %v2472
        %v2810 = vunpack.c.l.b16 %v2473
        %v2811 = vunpack.c.l.b16 %v2474
        %v2812 = vunpack.c.l.b16 %v2475
        %v2813 = vunpack.c.l.b16 %v2476
        %v2814 = vunpack.c.l.b16 %v2477
        %v2815 = vunpack.c.l.b16 %v2478
        %v2816 = vunpack.c.l.b16 %v2479
        %v2817 = vunpack.c.l.b16 %v2480
        %v2818 = vunpack.c.l.b16 %v2481
        %v2819 = vunpack.c.l.b16 %v2482
        %v2820 = vunpack.c.l.b16 %v2483
        %v2821 = vunpack.c.l.b16 %v2484
        %v2822 = vpack.c.b16 %v2791, %v2790
        %v2823 = vpack.c.b16 %v2793, %v2792
        %v2824 = vpack.c.b16 %v2795, %v2794
        %v2825 = vpack.c.b16 %v2797, %v2796
        %v2826 = vpack.c.b16 %v2799, %v2798
        %v2827 = vpack.c.b16 %v2801, %v2800
        %v2828 = vpack.c.b16 %v2803, %v2802
        %v2829 = vpack.c.b16 %v2805, %v2804
        %v2830 = vpack.c.b16 %v2807, %v2806
        %v2831 = vpack.c.b16 %v2809, %v2808
        %v2832 = vpack.c.b16 %v2811, %v2810
        %v2833 = vpack.c.b16 %v2813, %v2812
        %v2834 = vpack.c.b16 %v2815, %v2814
        %v2835 = vpack.c.b16 %v2817, %v2816
        %v2836 = vpack.c.b16 %v2819, %v2818
        %v2837 = vpack.c.b16 %v2821, %v2820
        %vm2838 = vcmask 130048
        %v2840 = vsel %vm2838, %v2822, 0
        %v2843 = vsel %vm2838, %v2823, 0
        %v2846 = vsel %vm2838, %v2824, 0
        %v2849 = vsel %vm2838, %v2825, 0
        %v2852 = vsel %vm2838, %v2826, 0
        %v2855 = vsel %vm2838, %v2827, 0
        %v2858 = vsel %vm2838, %v2828, 0
        %v2861 = vsel %vm2838, %v2829, 0
        %v2864 = vsel %vm2838, %v2830, 0
        %v2867 = vsel %vm2838, %v2831, 0
        %v2870 = vsel %vm2838, %v2832, 0
        %v2873 = vsel %vm2838, %v2833, 0
        %v2876 = vsel %vm2838, %v2834, 0
        %v2879 = vsel %vm2838, %v2835, 0
        %v2882 = vsel %vm2838, %v2836, 0
        %v2885 = vsel %vm2838, %v2837, 0
        %2887 = vmatprep.subr.bf16.mxu0 0
        %2888 = vmatpush1.bf16.msra.mxu0 %v2757
        %2889 = vmatprep.subr.bf16.mxu0 0
        %2890 = vmatpush1.bf16.msra.mxu0 0
        %2891 = vmatprep.subr.bf16.mxu0 0
        %2892 = vmatpush1.bf16.msra.mxu0 0
        %2893 = vmatprep.subr.bf16.mxu0 0
        %2894 = vmatpush1.bf16.msra.mxu0 0
        %2895 = vmatprep.subr.bf16.mxu0 0
        %2896 = vmatpush1.bf16.msra.mxu0 0
        %2897 = vmatprep.subr.bf16.mxu0 0
        %2898 = vmatpush1.bf16.msra.mxu0 0
        %2899 = vmatprep.subr.bf16.mxu0 0
        %2900 = vmatpush1.bf16.msra.mxu0 0
        %2901 = vmatprep.subr.bf16.mxu0 0
        %2902 = vmatpush1.bf16.msra.mxu0 0
        %2903 = vmatprep.subr.bf16.mxu0 0
        %2904 = vmatpush1.bf16.msra.mxu0 0
        %2905 = vmatprep.subr.bf16.mxu0 0
        %2906 = vmatpush1.bf16.msra.mxu0 0
        %2907 = vmatprep.subr.bf16.mxu0 0
        %2908 = vmatpush1.bf16.msra.mxu0 0
        %2909 = vmatprep.subr.bf16.mxu0 0
        %2910 = vmatpush1.bf16.msra.mxu0 0
        %2911 = vmatprep.subr.bf16.mxu0 0
        %2912 = vmatpush1.bf16.msra.mxu0 0
        %2913 = vmatprep.subr.bf16.mxu0 0
        %2914 = vmatpush1.bf16.msra.mxu0 0
        %2915 = vmatprep.subr.bf16.mxu0 0
        %2916 = vmatpush1.bf16.msra.mxu0 0
        %2917 = vmatprep.subr.bf16.mxu0 0
        %2918 = vmatpush1.bf16.msra.mxu0 0
        %2919 = vmatprep.mubr.bf16.mxu0 0
        %2920 = vmatmul.mubr.bf16.gmra.mrb[0].mxu0 %v2840
        %v2921 = vpop.f32.mrb[0].mxu0
        %v2922 = vadd.f32 0.0, %v2921
        %v2923 = vpop.f32.mrb[0].mxu0
        %v2924 = vpop.f32.mrb[0].mxu0
        %v2925 = vadd.f32 0.0, %v2924
        %v2926 = vpop.f32.mrb[0].mxu0
        %2927 = vmatprep.mubr.bf16.mxu0 0
        %2928 = vmatmul.mubr.bf16.gmra.mrb[0].mxu0 %v2843
        %v2929 = vpop.f32.mrb[0].mxu0
        %v2930 = vadd.f32 0.0, %v2929
        %v2931 = vpop.f32.mrb[0].mxu0
        %v2932 = vpop.f32.mrb[0].mxu0
        %v2933 = vadd.f32 0.0, %v2932
        %v2934 = vpop.f32.mrb[0].mxu0
        %2935 = vmatprep.mubr.bf16.mxu0 0
        %2936 = vmatmul.mubr.bf16.gmra.mrb[0].mxu0 %v2846
        %v2937 = vpop.f32.mrb[0].mxu0
        %v2938 = vadd.f32 0.0, %v2937
        %v2939 = vpop.f32.mrb[0].mxu0
        %v2940 = vpop.f32.mrb[0].mxu0
        %v2941 = vadd.f32 0.0, %v2940
        %v2942 = vpop.f32.mrb[0].mxu0
        %2943 = vmatprep.mubr.bf16.mxu0 0
        %2944 = vmatmul.mubr.bf16.gmra.mrb[0].mxu0 %v2849
        %v2945 = vpop.f32.mrb[0].mxu0
        %v2946 = vadd.f32 0.0, %v2945
        %v2947 = vpop.f32.mrb[0].mxu0
        %v2948 = vpop.f32.mrb[0].mxu0
        %v2949 = vadd.f32 0.0, %v2948
        %v2950 = vpop.f32.mrb[0].mxu0
        %2951 = vmatprep.mubr.bf16.mxu0 0
        %2952 = vmatmul.mubr.bf16.gmra.mrb[0].mxu0 %v2852
        %v2953 = vpop.f32.mrb[0].mxu0
        %v2954 = vadd.f32 0.0, %v2953
        %v2955 = vpop.f32.mrb[0].mxu0
        %v2956 = vpop.f32.mrb[0].mxu0
        %v2957 = vadd.f32 0.0, %v2956
        %v2958 = vpop.f32.mrb[0].mxu0
        %2959 = vmatprep.mubr.bf16.mxu0 0
        %2960 = vmatmul.mubr.bf16.gmra.mrb[0].mxu0 %v2855
        %v2961 = vpop.f32.mrb[0].mxu0
        %v2962 = vadd.f32 0.0, %v2961
        %v2963 = vpop.f32.mrb[0].mxu0
        %v2964 = vpop.f32.mrb[0].mxu0
        %v2965 = vadd.f32 0.0, %v2964
        %v2966 = vpop.f32.mrb[0].mxu0
        %2967 = vmatprep.mubr.bf16.mxu0 0
        %2968 = vmatmul.mubr.bf16.gmra.mrb[0].mxu0 %v2858
        %v2969 = vpop.f32.mrb[0].mxu0
        %v2970 = vadd.f32 0.0, %v2969
        %v2971 = vpop.f32.mrb[0].mxu0
        %v2972 = vpop.f32.mrb[0].mxu0
        %v2973 = vadd.f32 0.0, %v2972
        %v2974 = vpop.f32.mrb[0].mxu0
        %2975 = vmatprep.mubr.bf16.mxu0 0
        %2976 = vmatmul.mubr.bf16.gmra.mrb[0].mxu0 %v2861
        %v2977 = vpop.f32.mrb[0].mxu0
        %v2978 = vadd.f32 0.0, %v2977
        %v2979 = vpop.f32.mrb[0].mxu0
        %v2980 = vpop.f32.mrb[0].mxu0
        %v2981 = vadd.f32 0.0, %v2980
        %v2982 = vpop.f32.mrb[0].mxu0
        %2983 = vmatprep.mubr.bf16.mxu0 0
        %2984 = vmatmul.mubr.bf16.gmra.mrb[0].mxu0 %v2864
        %v2985 = vpop.f32.mrb[0].mxu0
        %v2986 = vadd.f32 0.0, %v2985
        %v2987 = vpop.f32.mrb[0].mxu0
        %v2988 = vpop.f32.mrb[0].mxu0
        %v2989 = vadd.f32 0.0, %v2988
        %v2990 = vpop.f32.mrb[0].mxu0
        %2991 = vmatprep.mubr.bf16.mxu0 0
        %2992 = vmatmul.mubr.bf16.gmra.mrb[0].mxu0 %v2867
        %v2993 = vpop.f32.mrb[0].mxu0
        %v2994 = vadd.f32 0.0, %v2993
        %v2995 = vpop.f32.mrb[0].mxu0
        %v2996 = vpop.f32.mrb[0].mxu0
        %v2997 = vadd.f32 0.0, %v2996
        %v2998 = vpop.f32.mrb[0].mxu0
        %2999 = vmatprep.mubr.bf16.mxu0 0
        %3000 = vmatmul.mubr.bf16.gmra.mrb[0].mxu0 %v2870
        %v3001 = vpop.f32.mrb[0].mxu0
        %v3002 = vadd.f32 0.0, %v3001
        %v3003 = vpop.f32.mrb[0].mxu0
        %v3004 = vpop.f32.mrb[0].mxu0
        %v3005 = vadd.f32 0.0, %v3004
        %v3006 = vpop.f32.mrb[0].mxu0
        %3007 = vmatprep.mubr.bf16.mxu0 0
        %3008 = vmatmul.mubr.bf16.gmra.mrb[0].mxu0 %v2873
        %v3009 = vpop.f32.mrb[0].mxu0
        %v3010 = vadd.f32 0.0, %v3009
        %v3011 = vpop.f32.mrb[0].mxu0
        %v3012 = vpop.f32.mrb[0].mxu0
        %v3013 = vadd.f32 0.0, %v3012
        %v3014 = vpop.f32.mrb[0].mxu0
        %3015 = vmatprep.mubr.bf16.mxu0 0
        %3016 = vmatmul.mubr.bf16.gmra.mrb[0].mxu0 %v2876
        %v3017 = vpop.f32.mrb[0].mxu0
        %v3018 = vadd.f32 0.0, %v3017
        %v3019 = vpop.f32.mrb[0].mxu0
        %v3020 = vpop.f32.mrb[0].mxu0
        %v3021 = vadd.f32 0.0, %v3020
        %v3022 = vpop.f32.mrb[0].mxu0
        %3023 = vmatprep.mubr.bf16.mxu0 0
        %3024 = vmatmul.mubr.bf16.gmra.mrb[0].mxu0 %v2879
        %v3025 = vpop.f32.mrb[0].mxu0
        %v3026 = vadd.f32 0.0, %v3025
        %v3027 = vpop.f32.mrb[0].mxu0
        %v3028 = vpop.f32.mrb[0].mxu0
        %v3029 = vadd.f32 0.0, %v3028
        %v3030 = vpop.f32.mrb[0].mxu0
        %3031 = vmatprep.mubr.bf16.mxu0 0
        %3032 = vmatmul.mubr.bf16.gmra.mrb[0].mxu0 %v2882
        %v3033 = vpop.f32.mrb[0].mxu0
        %v3034 = vadd.f32 0.0, %v3033
        %v3035 = vpop.f32.mrb[0].mxu0
        %v3036 = vpop.f32.mrb[0].mxu0
        %v3037 = vadd.f32 0.0, %v3036
        %v3038 = vpop.f32.mrb[0].mxu0
        %3039 = vmatprep.mubr.bf16.mxu0 0
        %3040 = vmatmul.mubr.bf16.gmra.mrb[0].mxu0 %v2885
        %v3041 = vpop.f32.mrb[0].mxu0
        %v3042 = vadd.f32 0.0, %v3041
        %v3043 = vpop.f32.mrb[0].mxu0
        %v3044 = vpop.f32.mrb[0].mxu0
        %v3045 = vadd.f32 0.0, %v3044
        %v3046 = vpop.f32.mrb[0].mxu0
        %3047 = vdwg.mxu0
        %v3048 = vadd.f32 %v2419, %v2922
        %v3049 = vadd.f32 %v2420, %v2925
        %v3050 = vadd.f32 %v2421, %v2930
        %v3051 = vadd.f32 %v2422, %v2933
        %v3052 = vadd.f32 %v2423, %v2938
        %v3053 = vadd.f32 %v2424, %v2941
        %v3054 = vadd.f32 %v2425, %v2946
        %v3055 = vadd.f32 %v2426, %v2949
        %v3056 = vadd.f32 %v2427, %v2954
        %v3057 = vadd.f32 %v2428, %v2957
        %v3058 = vadd.f32 %v2429, %v2962
        %v3059 = vadd.f32 %v2430, %v2965
        %v3060 = vadd.f32 %v2431, %v2970
        %v3061 = vadd.f32 %v2432, %v2973
        %v3062 = vadd.f32 %v2433, %v2978
        %v3063 = vadd.f32 %v2434, %v2981
        %v3064 = vadd.f32 %v2435, %v2986
        %v3065 = vadd.f32 %v2436, %v2989
        %v3066 = vadd.f32 %v2437, %v2994
        %v3067 = vadd.f32 %v2438, %v2997
        %v3068 = vadd.f32 %v2439, %v3002
        %v3069 = vadd.f32 %v2440, %v3005
        %v3070 = vadd.f32 %v2441, %v3010
        %v3071 = vadd.f32 %v2442, %v3013
        %v3072 = vadd.f32 %v2443, %v3018
        %v3073 = vadd.f32 %v2444, %v3021
        %v3074 = vadd.f32 %v2445, %v3026
        %v3075 = vadd.f32 %v2446, %v3029
        %v3076 = vadd.f32 %v2447, %v3034
        %v3077 = vadd.f32 %v2448, %v3037
        %v3078 = vadd.f32 %v2449, %v3042
        %v3079 = vadd.f32 %v2450, %v3045
        %v3080 = vld [vmem:[#allocation10] sm:$0xff]
        %v3081 = vld [vmem:[#allocation10 + $0x8] sm:$0xff]
        %v3082 = vld [vmem:[#allocation10 + $0x10] sm:$0xff]
        %v3083 = vld [vmem:[#allocation10 + $0x18] sm:$0xff]
        %v3084 = vld [vmem:[#allocation10 + $0x20] sm:$0xff]
        %v3085 = vld [vmem:[#allocation10 + $0x28] sm:$0xff]
        %v3086 = vld [vmem:[#allocation10 + $0x30] sm:$0xff]
        %v3087 = vld [vmem:[#allocation10 + $0x38] sm:$0xff]
        %v3088 = vld [vmem:[%s17] sm:$0xf]
        %v3089 = vld [vmem:[%s17 + $0x4] sm:$0xf]
        %v3090 = vld [vmem:[%s17 + $0x8] sm:$0xf]
        %v3091 = vld [vmem:[%s17 + $0xc] sm:$0xf]
        %v3092 = vld [vmem:[%s17 + $0x10] sm:$0xf]
        %v3093 = vld [vmem:[%s17 + $0x14] sm:$0xf]
        %v3094 = vld [vmem:[%s17 + $0x18] sm:$0xf]
        %v3095 = vld [vmem:[%s17 + $0x1c] sm:$0xf]
        %v3096 = vld [vmem:[%s17 + $0x20] sm:$0xf]
        %v3097 = vld [vmem:[%s17 + $0x24] sm:$0xf]
        %v3098 = vld [vmem:[%s17 + $0x28] sm:$0xf]
        %v3099 = vld [vmem:[%s17 + $0x2c] sm:$0xf]
        %v3100 = vld [vmem:[%s17 + $0x30] sm:$0xf]
        %v3101 = vld [vmem:[%s17 + $0x34] sm:$0xf]
        %v3102 = vld [vmem:[%s17 + $0x38] sm:$0xf]
        %v3103 = vld [vmem:[%s17 + $0x3c] sm:$0xf]
        %v3104 = vld [vmem:[%s17 + $0x40] sm:$0xf]
        %v3105 = vld [vmem:[%s17 + $0x44] sm:$0xf]
        %v3106 = vld [vmem:[%s17 + $0x48] sm:$0xf]
        %v3107 = vld [vmem:[%s17 + $0x4c] sm:$0xf]
        %v3108 = vld [vmem:[%s17 + $0x50] sm:$0xf]
        %v3109 = vld [vmem:[%s17 + $0x54] sm:$0xf]
        %v3110 = vld [vmem:[%s17 + $0x58] sm:$0xf]
        %v3111 = vld [vmem:[%s17 + $0x5c] sm:$0xf]
        %v3112 = vld [vmem:[%s17 + $0x60] sm:$0xf]
        %v3113 = vld [vmem:[%s17 + $0x64] sm:$0xf]
        %v3114 = vld [vmem:[%s17 + $0x68] sm:$0xf]
        %v3115 = vld [vmem:[%s17 + $0x6c] sm:$0xf]
        %v3116 = vld [vmem:[%s17 + $0x70] sm:$0xf]
        %v3117 = vld [vmem:[%s17 + $0x74] sm:$0xf]
        %v3118 = vld [vmem:[%s17 + $0x78] sm:$0xf]
        %v3119 = vld [vmem:[%s17 + $0x7c] sm:$0xf]
        %v3120 = vld [vmem:[#allocation11] sm:$0xf]
        %v3121 = vld [vmem:[#allocation11 + $0x4] sm:$0xf]
        %v3122 = vld [vmem:[#allocation11 + $0x8] sm:$0xf]
        %v3123 = vld [vmem:[#allocation11 + $0xc] sm:$0xf]
        %v3124 = vld [vmem:[#allocation11 + $0x10] sm:$0xf]
        %v3125 = vld [vmem:[#allocation11 + $0x14] sm:$0xf]
        %v3126 = vld [vmem:[#allocation11 + $0x18] sm:$0xf]
        %v3127 = vld [vmem:[#allocation11 + $0x1c] sm:$0xf]
        %v3128 = vld [vmem:[#allocation11 + $0x20] sm:$0xf]
        %v3129 = vld [vmem:[#allocation11 + $0x24] sm:$0xf]
        %v3130 = vld [vmem:[#allocation11 + $0x28] sm:$0xf]
        %v3131 = vld [vmem:[#allocation11 + $0x2c] sm:$0xf]
        %v3132 = vld [vmem:[#allocation11 + $0x30] sm:$0xf]
        %v3133 = vld [vmem:[#allocation11 + $0x34] sm:$0xf]
        %v3134 = vld [vmem:[#allocation11 + $0x38] sm:$0xf]
        %v3135 = vld [vmem:[#allocation11 + $0x3c] sm:$0xf]
        %v3136 = vld [vmem:[%s19] sm:$0x1]
        %v3137 = vld [vmem:[#allocation13] sm:$0xf]
        %v3138 = vld [vmem:[#allocation13 + $0x4] sm:$0xf]
        %v3139 = vld [vmem:[#allocation13 + $0x8] sm:$0xf]
        %v3140 = vld [vmem:[#allocation13 + $0xc] sm:$0xf]
        %v3141 = vld [vmem:[#allocation13 + $0x10] sm:$0xf]
        %v3142 = vld [vmem:[#allocation13 + $0x14] sm:$0xf]
        %v3143 = vld [vmem:[#allocation13 + $0x18] sm:$0xf]
        %v3144 = vld [vmem:[#allocation13 + $0x1c] sm:$0xf]
        %v3145 = vld [vmem:[#allocation13 + $0x20] sm:$0xf]
        %v3146 = vld [vmem:[#allocation13 + $0x24] sm:$0xf]
        %v3147 = vld [vmem:[#allocation13 + $0x28] sm:$0xf]
        %v3148 = vld [vmem:[#allocation13 + $0x2c] sm:$0xf]
        %v3149 = vld [vmem:[#allocation13 + $0x30] sm:$0xf]
        %v3150 = vld [vmem:[#allocation13 + $0x34] sm:$0xf]
        %v3151 = vld [vmem:[#allocation13 + $0x38] sm:$0xf]
        %v3152 = vld [vmem:[#allocation13 + $0x3c] sm:$0xf]
        %v3161 = vunpack.c.l.b16 %v3080
        %v3162 = vunpack.c.h.b16 %v3080
        %v3163 = vunpack.c.l.b16 %v3081
        %v3164 = vunpack.c.h.b16 %v3081
        %v3165 = vunpack.c.l.b16 %v3082
        %v3166 = vunpack.c.h.b16 %v3082
        %v3167 = vunpack.c.l.b16 %v3083
        %v3168 = vunpack.c.h.b16 %v3083
        %v3169 = vunpack.c.l.b16 %v3084
        %v3170 = vunpack.c.h.b16 %v3084
        %v3171 = vunpack.c.l.b16 %v3085
        %v3172 = vunpack.c.h.b16 %v3085
        %v3173 = vunpack.c.l.b16 %v3086
        %v3174 = vunpack.c.h.b16 %v3086
        %v3175 = vunpack.c.l.b16 %v3087
        %v3176 = vunpack.c.h.b16 %v3087
        %v3177 = vpack.c.b16 %v3163, %v3161
        %v3178 = vpack.c.b16 %v3164, %v3162
        %v3179 = vpack.c.b16 %v3167, %v3165
        %v3180 = vpack.c.b16 %v3168, %v3166
        %v3181 = vpack.c.b16 %v3171, %v3169
        %v3182 = vpack.c.b16 %v3172, %v3170
        %v3183 = vpack.c.b16 %v3175, %v3173
        %v3184 = vpack.c.b16 %v3176, %v3174
        %3193 = vmatprep.subr.bf16.mxu0 0
        %3194 = vmatpush1.bf16.msra.mxu0 %v942
        %3195 = vmatprep.subr.bf16.mxu0 0
        %3196 = vmatpush1.bf16.msra.mxu0 %v943
        %3197 = vmatprep.subr.bf16.mxu0 0
        %3198 = vmatpush1.bf16.msra.mxu0 %v944
        %3199 = vmatprep.subr.bf16.mxu0 0
        %3200 = vmatpush1.bf16.msra.mxu0 %v945
        %3201 = vmatprep.subr.bf16.mxu0 0
        %3202 = vmatpush1.bf16.msra.mxu0 %v946
        %3203 = vmatprep.subr.bf16.mxu0 0
        %3204 = vmatpush1.bf16.msra.mxu0 %v947
        %3205 = vmatprep.subr.bf16.mxu0 0
        %3206 = vmatpush1.bf16.msra.mxu0 %v948
        %3207 = vmatprep.subr.bf16.mxu0 0
        %3208 = vmatpush1.bf16.msra.mxu0 %v949
        %3209 = vmatprep.subr.bf16.mxu0 0
        %3210 = vmatpush1.bf16.msra.mxu0 %v950
        %3211 = vmatprep.subr.bf16.mxu0 0
        %3212 = vmatpush1.bf16.msra.mxu0 %v951
        %3213 = vmatprep.subr.bf16.mxu0 0
        %3214 = vmatpush1.bf16.msra.mxu0 %v952
        %3215 = vmatprep.subr.bf16.mxu0 0
        %3216 = vmatpush1.bf16.msra.mxu0 %v953
        %3217 = vmatprep.subr.bf16.mxu0 0
        %3218 = vmatpush1.bf16.msra.mxu0 %v954
        %3219 = vmatprep.subr.bf16.mxu0 0
        %3220 = vmatpush1.bf16.msra.mxu0 %v955
        %3221 = vmatprep.subr.bf16.mxu0 0
        %3222 = vmatpush1.bf16.msra.mxu0 %v956
        %3223 = vmatprep.subr.bf16.mxu0 0
        %3224 = vmatpush1.bf16.msra.mxu0 %v957
        %3225 = vmatprep.mubr.bf16.mxu0 %v3178
        %3226 = vmatmul.mubr.bf16.gmra.mrb[0].mxu0 %v3177
        %v3227 = vpop.f32.mrb[0].mxu0
        %v3228 = vadd.f32 0.0, %v3227
        %v3229 = vpop.f32.mrb[0].mxu0
        %v3230 = vpop.f32.mrb[0].mxu0
        %v3231 = vadd.f32 0.0, %v3230
        %v3232 = vpop.f32.mrb[0].mxu0
        %3233 = vmatprep.mubr.bf16.mxu0 %v3180
        %3234 = vmatmul.mubr.bf16.gmra.mrb[0].mxu0 %v3179
        %v3235 = vpop.f32.mrb[0].mxu0
        %v3236 = vadd.f32 0.0, %v3235
        %v3237 = vpop.f32.mrb[0].mxu0
        %v3238 = vpop.f32.mrb[0].mxu0
        %v3239 = vadd.f32 0.0, %v3238
        %v3240 = vpop.f32.mrb[0].mxu0
        %3241 = vmatprep.mubr.bf16.mxu0 %v3182
        %3242 = vmatmul.mubr.bf16.gmra.mrb[0].mxu0 %v3181
        %v3243 = vpop.f32.mrb[0].mxu0
        %v3244 = vadd.f32 0.0, %v3243
        %v3245 = vpop.f32.mrb[0].mxu0
        %v3246 = vpop.f32.mrb[0].mxu0
        %v3247 = vadd.f32 0.0, %v3246
        %v3248 = vpop.f32.mrb[0].mxu0
        %3249 = vmatprep.mubr.bf16.mxu0 %v3184
        %3250 = vmatmul.mubr.bf16.gmra.mrb[0].mxu0 %v3183
        %v3251 = vpop.f32.mrb[0].mxu0
        %v3252 = vadd.f32 0.0, %v3251
        %v3253 = vpop.f32.mrb[0].mxu0
        %v3254 = vpop.f32.mrb[0].mxu0
        %v3255 = vadd.f32 0.0, %v3254
        %v3256 = vpop.f32.mrb[0].mxu0
        %3257 = vdwg.mxu0
        %v3258 = vpack.c.bf16 %v3231, %v3228
        %v3259 = vpack.c.bf16 %v3239, %v3236
        %v3260 = vpack.c.bf16 %v3247, %v3244
        %v3261 = vpack.c.bf16 %v3255, %v3252
        %v3263 = vlaneseq
        %v3264 = vshrl.u32 %v3263, 7
        %v3265 = vsub.s32 0, %v3264
        %v3266 = vrot.slane %v3136, %v3265
        %v3284 = vunpack.c.l.b16 %v3120
        %v3285 = vunpack.c.l.b16 %v3121
        %v3286 = vunpack.c.l.b16 %v3122
        %v3287 = vunpack.c.l.b16 %v3123
        %v3288 = vunpack.c.l.b16 %v3124
        %v3289 = vunpack.c.l.b16 %v3125
        %v3290 = vunpack.c.l.b16 %v3126
        %v3291 = vunpack.c.l.b16 %v3127
        %v3292 = vunpack.c.l.b16 %v3128
        %v3293 = vunpack.c.l.b16 %v3129
        %v3294 = vunpack.c.l.b16 %v3130
        %v3295 = vunpack.c.l.b16 %v3131
        %v3296 = vunpack.c.l.b16 %v3132
        %v3297 = vunpack.c.l.b16 %v3133
        %v3298 = vunpack.c.l.b16 %v3134
        %v3299 = vunpack.c.l.b16 %v3135
        %v3300 = vpack.c.b16 %v3285, %v3284
        %v3301 = vpack.c.b16 %v3287, %v3286
        %v3302 = vpack.c.b16 %v3289, %v3288
        %v3303 = vpack.c.b16 %v3291, %v3290
        %v3304 = vpack.c.b16 %v3293, %v3292
        %v3305 = vpack.c.b16 %v3295, %v3294
        %v3306 = vpack.c.b16 %v3297, %v3296
        %v3307 = vpack.c.b16 %v3299, %v3298
        %3316 = vmatprep.subr.bf16.mxu0 0
        %3317 = vmatpush1.bf16.msra.mxu0 %v3300
        %3318 = vmatprep.subr.bf16.mxu0 0
        %3319 = vmatpush1.bf16.msra.mxu0 %v3301
        %3320 = vmatprep.subr.bf16.mxu0 0
        %3321 = vmatpush1.bf16.msra.mxu0 %v3302
        %3322 = vmatprep.subr.bf16.mxu0 0
        %3323 = vmatpush1.bf16.msra.mxu0 %v3303
        %3324 = vmatprep.subr.bf16.mxu0 0
        %3325 = vmatpush1.bf16.msra.mxu0 %v3304
        %3326 = vmatprep.subr.bf16.mxu0 0
        %3327 = vmatpush1.bf16.msra.mxu0 %v3305
        %3328 = vmatprep.subr.bf16.mxu0 0
        %3329 = vmatpush1.bf16.msra.mxu0 %v3306
        %3330 = vmatprep.subr.bf16.mxu0 0
        %3331 = vmatpush1.bf16.msra.mxu0 %v3307
        %3332 = vmatprep.subr.bf16.mxu0 0
        %3333 = vmatpush1.bf16.msra.mxu0 0
        %3334 = vmatprep.subr.bf16.mxu0 0
        %3335 = vmatpush1.bf16.msra.mxu0 0
        %3336 = vmatprep.subr.bf16.mxu0 0
        %3337 = vmatpush1.bf16.msra.mxu0 0
        %3338 = vmatprep.subr.bf16.mxu0 0
        %3339 = vmatpush1.bf16.msra.mxu0 0
        %3340 = vmatprep.subr.bf16.mxu0 0
        %3341 = vmatpush1.bf16.msra.mxu0 0
        %3342 = vmatprep.subr.bf16.mxu0 0
        %3343 = vmatpush1.bf16.msra.mxu0 0
        %3344 = vmatprep.subr.bf16.mxu0 0
        %3345 = vmatpush1.bf16.msra.mxu0 0
        %3346 = vmatprep.subr.bf16.mxu0 0
        %3347 = vmatpush1.bf16.msra.mxu0 0
        %3348 = vmatprep.mubr.bf16.mxu0 0
        %3349 = vmatmul.mubr.bf16.gmra.mrb[0].mxu0 %v3258
        %v3350 = vpop.f32.mrb[0].mxu0
        %v3351 = vadd.f32 %v3266, %v3350
        %v3352 = vpop.f32.mrb[0].mxu0
        %v3353 = vpop.f32.mrb[0].mxu0
        %v3354 = vadd.f32 %v3266, %v3353
        %v3355 = vpop.f32.mrb[0].mxu0
        %3356 = vmatprep.mubr.bf16.mxu0 0
        %3357 = vmatmul.mubr.bf16.gmra.mrb[0].mxu0 %v3259
        %v3358 = vpop.f32.mrb[0].mxu0
        %v3359 = vadd.f32 %v3266, %v3358
        %v3360 = vpop.f32.mrb[0].mxu0
        %v3361 = vpop.f32.mrb[0].mxu0
        %v3362 = vadd.f32 %v3266, %v3361
        %v3363 = vpop.f32.mrb[0].mxu0
        %3364 = vmatprep.mubr.bf16.mxu0 0
        %3365 = vmatmul.mubr.bf16.gmra.mrb[0].mxu0 %v3260
        %v3366 = vpop.f32.mrb[0].mxu0
        %v3367 = vadd.f32 %v3266, %v3366
        %v3368 = vpop.f32.mrb[0].mxu0
        %v3369 = vpop.f32.mrb[0].mxu0
        %v3370 = vadd.f32 %v3266, %v3369
        %v3371 = vpop.f32.mrb[0].mxu0
        %3372 = vmatprep.mubr.bf16.mxu0 0
        %3373 = vmatmul.mubr.bf16.gmra.mrb[0].mxu0 %v3261
        %v3374 = vpop.f32.mrb[0].mxu0
        %v3375 = vadd.f32 %v3266, %v3374
        %v3376 = vpop.f32.mrb[0].mxu0
        %v3377 = vpop.f32.mrb[0].mxu0
        %v3378 = vadd.f32 %v3266, %v3377
        %v3379 = vpop.f32.mrb[0].mxu0
        %3380 = vdwg.mxu0
        %v3381 = vmax.f32 %v3351, 0.0
        %v3382 = vmax.f32 %v3354, 0.0
        %v3383 = vmax.f32 %v3359, 0.0
        %v3384 = vmax.f32 %v3362, 0.0
        %v3385 = vmax.f32 %v3367, 0.0
        %v3386 = vmax.f32 %v3370, 0.0
        %v3387 = vmax.f32 %v3375, 0.0
        %v3388 = vmax.f32 %v3378, 0.0
        %v3389 = vpack.c.bf16 %v3382, %v3381
        %v3390 = vpack.c.bf16 %v3384, %v3383
        %v3391 = vpack.c.bf16 %v3386, %v3385
        %v3392 = vpack.c.bf16 %v3388, %v3387
        %v3409 = vunpack.c.l.b16 %v3137
        %v3410 = vunpack.c.l.b16 %v3138
        %v3411 = vunpack.c.l.b16 %v3139
        %v3412 = vunpack.c.l.b16 %v3140
        %v3413 = vunpack.c.l.b16 %v3141
        %v3414 = vunpack.c.l.b16 %v3142
        %v3415 = vunpack.c.l.b16 %v3143
        %v3416 = vunpack.c.l.b16 %v3144
        %v3417 = vunpack.c.l.b16 %v3145
        %v3418 = vunpack.c.l.b16 %v3146
        %v3419 = vunpack.c.l.b16 %v3147
        %v3420 = vunpack.c.l.b16 %v3148
        %v3421 = vunpack.c.l.b16 %v3149
        %v3422 = vunpack.c.l.b16 %v3150
        %v3423 = vunpack.c.l.b16 %v3151
        %v3424 = vunpack.c.l.b16 %v3152
        %v3425 = vpack.c.b16 %v3410, %v3409
        %v3426 = vpack.c.b16 %v3412, %v3411
        %v3427 = vpack.c.b16 %v3414, %v3413
        %v3428 = vpack.c.b16 %v3416, %v3415
        %v3429 = vpack.c.b16 %v3418, %v3417
        %v3430 = vpack.c.b16 %v3420, %v3419
        %v3431 = vpack.c.b16 %v3422, %v3421
        %v3432 = vpack.c.b16 %v3424, %v3423
        %3441 = vmatprep.subr.bf16.mxu0 0
        %3442 = vmatpush1.bf16.msra.mxu0 %v3425
        %3443 = vmatprep.subr.bf16.mxu0 0
        %3444 = vmatpush1.bf16.msra.mxu0 %v3426
        %3445 = vmatprep.subr.bf16.mxu0 0
        %3446 = vmatpush1.bf16.msra.mxu0 %v3427
        %3447 = vmatprep.subr.bf16.mxu0 0
        %3448 = vmatpush1.bf16.msra.mxu0 %v3428
        %3449 = vmatprep.subr.bf16.mxu0 0
        %3450 = vmatpush1.bf16.msra.mxu0 %v3429
        %3451 = vmatprep.subr.bf16.mxu0 0
        %3452 = vmatpush1.bf16.msra.mxu0 %v3430
        %3453 = vmatprep.subr.bf16.mxu0 0
        %3454 = vmatpush1.bf16.msra.mxu0 %v3431
        %3455 = vmatprep.subr.bf16.mxu0 0
        %3456 = vmatpush1.bf16.msra.mxu0 %v3432
        %3457 = vmatprep.subr.bf16.mxu0 0
        %3458 = vmatpush1.bf16.msra.mxu0 0
        %3459 = vmatprep.subr.bf16.mxu0 0
        %3460 = vmatpush1.bf16.msra.mxu0 0
        %3461 = vmatprep.subr.bf16.mxu0 0
        %3462 = vmatpush1.bf16.msra.mxu0 0
        %3463 = vmatprep.subr.bf16.mxu0 0
        %3464 = vmatpush1.bf16.msra.mxu0 0
        %3465 = vmatprep.subr.bf16.mxu0 0
        %3466 = vmatpush1.bf16.msra.mxu0 0
        %3467 = vmatprep.subr.bf16.mxu0 0
        %3468 = vmatpush1.bf16.msra.mxu0 0
        %3469 = vmatprep.subr.bf16.mxu0 0
        %3470 = vmatpush1.bf16.msra.mxu0 0
        %3471 = vmatprep.subr.bf16.mxu0 0
        %3472 = vmatpush1.bf16.msra.mxu0 0
        %3473 = vmatprep.mubr.bf16.mxu0 0
        %3474 = vmatmul.mubr.bf16.gmra.mrb[0].mxu0 %v3389
        %v3475 = vpop.f32.mrb[0].mxu0
        %v3476 = vadd.f32 0.0, %v3475
        %v3477 = vpop.f32.mrb[0].mxu0
        %v3478 = vpop.f32.mrb[0].mxu0
        %v3479 = vadd.f32 0.0, %v3478
        %v3480 = vpop.f32.mrb[0].mxu0
        %3481 = vmatprep.mubr.bf16.mxu0 0
        %3482 = vmatmul.mubr.bf16.gmra.mrb[0].mxu0 %v3390
        %v3483 = vpop.f32.mrb[0].mxu0
        %v3484 = vadd.f32 0.0, %v3483
        %v3485 = vpop.f32.mrb[0].mxu0
        %v3486 = vpop.f32.mrb[0].mxu0
        %v3487 = vadd.f32 0.0, %v3486
        %v3488 = vpop.f32.mrb[0].mxu0
        %3489 = vmatprep.mubr.bf16.mxu0 0
        %3490 = vmatmul.mubr.bf16.gmra.mrb[0].mxu0 %v3391
        %v3491 = vpop.f32.mrb[0].mxu0
        %v3492 = vadd.f32 0.0, %v3491
        %v3493 = vpop.f32.mrb[0].mxu0
        %v3494 = vpop.f32.mrb[0].mxu0
        %v3495 = vadd.f32 0.0, %v3494
        %v3496 = vpop.f32.mrb[0].mxu0
        %3497 = vmatprep.mubr.bf16.mxu0 0
        %3498 = vmatmul.mubr.bf16.gmra.mrb[0].mxu0 %v3392
        %v3499 = vpop.f32.mrb[0].mxu0
        %v3500 = vadd.f32 0.0, %v3499
        %v3501 = vpop.f32.mrb[0].mxu0
        %v3502 = vpop.f32.mrb[0].mxu0
        %v3503 = vadd.f32 0.0, %v3502
        %v3504 = vpop.f32.mrb[0].mxu0
        %3505 = vdwg.mxu0
        %v3506 = vpack.c.bf16 %v3479, %v3476
        %v3507 = vpack.c.bf16 %v3487, %v3484
        %v3508 = vpack.c.bf16 %v3495, %v3492
        %v3509 = vpack.c.bf16 %v3503, %v3500
        %v3542 = vunpack.c.l.b16 %v3088
        %v3543 = vunpack.c.l.b16 %v3089
        %v3544 = vunpack.c.l.b16 %v3090
        %v3545 = vunpack.c.l.b16 %v3091
        %v3546 = vunpack.c.l.b16 %v3092
        %v3547 = vunpack.c.l.b16 %v3093
        %v3548 = vunpack.c.l.b16 %v3094
        %v3549 = vunpack.c.l.b16 %v3095
        %v3550 = vunpack.c.l.b16 %v3096
        %v3551 = vunpack.c.l.b16 %v3097
        %v3552 = vunpack.c.l.b16 %v3098
        %v3553 = vunpack.c.l.b16 %v3099
        %v3554 = vunpack.c.l.b16 %v3100
        %v3555 = vunpack.c.l.b16 %v3101
        %v3556 = vunpack.c.l.b16 %v3102
        %v3557 = vunpack.c.l.b16 %v3103
        %v3558 = vunpack.c.l.b16 %v3104
        %v3559 = vunpack.c.l.b16 %v3105
        %v3560 = vunpack.c.l.b16 %v3106
        %v3561 = vunpack.c.l.b16 %v3107
        %v3562 = vunpack.c.l.b16 %v3108
        %v3563 = vunpack.c.l.b16 %v3109
        %v3564 = vunpack.c.l.b16 %v3110
        %v3565 = vunpack.c.l.b16 %v3111
        %v3566 = vunpack.c.l.b16 %v3112
        %v3567 = vunpack.c.l.b16 %v3113
        %v3568 = vunpack.c.l.b16 %v3114
        %v3569 = vunpack.c.l.b16 %v3115
        %v3570 = vunpack.c.l.b16 %v3116
        %v3571 = vunpack.c.l.b16 %v3117
        %v3572 = vunpack.c.l.b16 %v3118
        %v3573 = vunpack.c.l.b16 %v3119
        %v3574 = vpack.c.b16 %v3543, %v3542
        %v3575 = vpack.c.b16 %v3545, %v3544
        %v3576 = vpack.c.b16 %v3547, %v3546
        %v3577 = vpack.c.b16 %v3549, %v3548
        %v3578 = vpack.c.b16 %v3551, %v3550
        %v3579 = vpack.c.b16 %v3553, %v3552
        %v3580 = vpack.c.b16 %v3555, %v3554
        %v3581 = vpack.c.b16 %v3557, %v3556
        %v3582 = vpack.c.b16 %v3559, %v3558
        %v3583 = vpack.c.b16 %v3561, %v3560
        %v3584 = vpack.c.b16 %v3563, %v3562
        %v3585 = vpack.c.b16 %v3565, %v3564
        %v3586 = vpack.c.b16 %v3567, %v3566
        %v3587 = vpack.c.b16 %v3569, %v3568
        %v3588 = vpack.c.b16 %v3571, %v3570
        %v3589 = vpack.c.b16 %v3573, %v3572
        %vm3590 = vcmask 523264
        %v3592 = vsel %vm3590, %v3574, 0
        %v3595 = vsel %vm3590, %v3575, 0
        %v3598 = vsel %vm3590, %v3576, 0
        %v3601 = vsel %vm3590, %v3577, 0
        %v3604 = vsel %vm3590, %v3578, 0
        %v3607 = vsel %vm3590, %v3579, 0
        %v3610 = vsel %vm3590, %v3580, 0
        %v3613 = vsel %vm3590, %v3581, 0
        %v3616 = vsel %vm3590, %v3582, 0
        %v3619 = vsel %vm3590, %v3583, 0
        %v3622 = vsel %vm3590, %v3584, 0
        %v3625 = vsel %vm3590, %v3585, 0
        %v3628 = vsel %vm3590, %v3586, 0
        %v3631 = vsel %vm3590, %v3587, 0
        %v3634 = vsel %vm3590, %v3588, 0
        %v3637 = vsel %vm3590, %v3589, 0
        %3639 = vmatprep.subr.bf16.mxu0 0
        %3640 = vmatpush1.bf16.msra.mxu0 %v3506
        %3641 = vmatprep.subr.bf16.mxu0 0
        %3642 = vmatpush1.bf16.msra.mxu0 %v3507
        %3643 = vmatprep.subr.bf16.mxu0 0
        %3644 = vmatpush1.bf16.msra.mxu0 %v3508
        %3645 = vmatprep.subr.bf16.mxu0 0
        %3646 = vmatpush1.bf16.msra.mxu0 %v3509
        %3647 = vmatprep.subr.bf16.mxu0 0
        %3648 = vmatpush1.bf16.msra.mxu0 0
        %3649 = vmatprep.subr.bf16.mxu0 0
        %3650 = vmatpush1.bf16.msra.mxu0 0
        %3651 = vmatprep.subr.bf16.mxu0 0
        %3652 = vmatpush1.bf16.msra.mxu0 0
        %3653 = vmatprep.subr.bf16.mxu0 0
        %3654 = vmatpush1.bf16.msra.mxu0 0
        %3655 = vmatprep.subr.bf16.mxu0 0
        %3656 = vmatpush1.bf16.msra.mxu0 0
        %3657 = vmatprep.subr.bf16.mxu0 0
        %3658 = vmatpush1.bf16.msra.mxu0 0
        %3659 = vmatprep.subr.bf16.mxu0 0
        %3660 = vmatpush1.bf16.msra.mxu0 0
        %3661 = vmatprep.subr.bf16.mxu0 0
        %3662 = vmatpush1.bf16.msra.mxu0 0
        %3663 = vmatprep.subr.bf16.mxu0 0
        %3664 = vmatpush1.bf16.msra.mxu0 0
        %3665 = vmatprep.subr.bf16.mxu0 0
        %3666 = vmatpush1.bf16.msra.mxu0 0
        %3667 = vmatprep.subr.bf16.mxu0 0
        %3668 = vmatpush1.bf16.msra.mxu0 0
        %3669 = vmatprep.subr.bf16.mxu0 0
        %3670 = vmatpush1.bf16.msra.mxu0 0
        %3671 = vmatprep.mubr.bf16.mxu0 0
        %3672 = vmatmul.mubr.bf16.gmra.mrb[0].mxu0 %v3592
        %v3673 = vpop.f32.mrb[0].mxu0
        %v3674 = vadd.f32 0.0, %v3673
        %v3675 = vpop.f32.mrb[0].mxu0
        %v3676 = vpop.f32.mrb[0].mxu0
        %v3677 = vadd.f32 0.0, %v3676
        %v3678 = vpop.f32.mrb[0].mxu0
        %3679 = vmatprep.mubr.bf16.mxu0 0
        %3680 = vmatmul.mubr.bf16.gmra.mrb[0].mxu0 %v3595
        %v3681 = vpop.f32.mrb[0].mxu0
        %v3682 = vadd.f32 0.0, %v3681
        %v3683 = vpop.f32.mrb[0].mxu0
        %v3684 = vpop.f32.mrb[0].mxu0
        %v3685 = vadd.f32 0.0, %v3684
        %v3686 = vpop.f32.mrb[0].mxu0
        %3687 = vmatprep.mubr.bf16.mxu0 0
        %3688 = vmatmul.mubr.bf16.gmra.mrb[0].mxu0 %v3598
        %v3689 = vpop.f32.mrb[0].mxu0
        %v3690 = vadd.f32 0.0, %v3689
        %v3691 = vpop.f32.mrb[0].mxu0
        %v3692 = vpop.f32.mrb[0].mxu0
        %v3693 = vadd.f32 0.0, %v3692
        %v3694 = vpop.f32.mrb[0].mxu0
        %3695 = vmatprep.mubr.bf16.mxu0 0
        %3696 = vmatmul.mubr.bf16.gmra.mrb[0].mxu0 %v3601
        %v3697 = vpop.f32.mrb[0].mxu0
        %v3698 = vadd.f32 0.0, %v3697
        %v3699 = vpop.f32.mrb[0].mxu0
        %v3700 = vpop.f32.mrb[0].mxu0
        %v3701 = vadd.f32 0.0, %v3700
        %v3702 = vpop.f32.mrb[0].mxu0
        %3703 = vmatprep.mubr.bf16.mxu0 0
        %3704 = vmatmul.mubr.bf16.gmra.mrb[0].mxu0 %v3604
        %v3705 = vpop.f32.mrb[0].mxu0
        %v3706 = vadd.f32 0.0, %v3705
        %v3707 = vpop.f32.mrb[0].mxu0
        %v3708 = vpop.f32.mrb[0].mxu0
        %v3709 = vadd.f32 0.0, %v3708
        %v3710 = vpop.f32.mrb[0].mxu0
        %3711 = vmatprep.mubr.bf16.mxu0 0
        %3712 = vmatmul.mubr.bf16.gmra.mrb[0].mxu0 %v3607
        %v3713 = vpop.f32.mrb[0].mxu0
        %v3714 = vadd.f32 0.0, %v3713
        %v3715 = vpop.f32.mrb[0].mxu0
        %v3716 = vpop.f32.mrb[0].mxu0
        %v3717 = vadd.f32 0.0, %v3716
        %v3718 = vpop.f32.mrb[0].mxu0
        %3719 = vmatprep.mubr.bf16.mxu0 0
        %3720 = vmatmul.mubr.bf16.gmra.mrb[0].mxu0 %v3610
        %v3721 = vpop.f32.mrb[0].mxu0
        %v3722 = vadd.f32 0.0, %v3721
        %v3723 = vpop.f32.mrb[0].mxu0
        %v3724 = vpop.f32.mrb[0].mxu0
        %v3725 = vadd.f32 0.0, %v3724
        %v3726 = vpop.f32.mrb[0].mxu0
        %3727 = vmatprep.mubr.bf16.mxu0 0
        %3728 = vmatmul.mubr.bf16.gmra.mrb[0].mxu0 %v3613
        %v3729 = vpop.f32.mrb[0].mxu0
        %v3730 = vadd.f32 0.0, %v3729
        %v3731 = vpop.f32.mrb[0].mxu0
        %v3732 = vpop.f32.mrb[0].mxu0
        %v3733 = vadd.f32 0.0, %v3732
        %v3734 = vpop.f32.mrb[0].mxu0
        %3735 = vmatprep.mubr.bf16.mxu0 0
        %3736 = vmatmul.mubr.bf16.gmra.mrb[0].mxu0 %v3616
        %v3737 = vpop.f32.mrb[0].mxu0
        %v3738 = vadd.f32 0.0, %v3737
        %v3739 = vpop.f32.mrb[0].mxu0
        %v3740 = vpop.f32.mrb[0].mxu0
        %v3741 = vadd.f32 0.0, %v3740
        %v3742 = vpop.f32.mrb[0].mxu0
        %3743 = vmatprep.mubr.bf16.mxu0 0
        %3744 = vmatmul.mubr.bf16.gmra.mrb[0].mxu0 %v3619
        %v3745 = vpop.f32.mrb[0].mxu0
        %v3746 = vadd.f32 0.0, %v3745
        %v3747 = vpop.f32.mrb[0].mxu0
        %v3748 = vpop.f32.mrb[0].mxu0
        %v3749 = vadd.f32 0.0, %v3748
        %v3750 = vpop.f32.mrb[0].mxu0
        %3751 = vmatprep.mubr.bf16.mxu0 0
        %3752 = vmatmul.mubr.bf16.gmra.mrb[0].mxu0 %v3622
        %v3753 = vpop.f32.mrb[0].mxu0
        %v3754 = vadd.f32 0.0, %v3753
        %v3755 = vpop.f32.mrb[0].mxu0
        %v3756 = vpop.f32.mrb[0].mxu0
        %v3757 = vadd.f32 0.0, %v3756
        %v3758 = vpop.f32.mrb[0].mxu0
        %3759 = vmatprep.mubr.bf16.mxu0 0
        %3760 = vmatmul.mubr.bf16.gmra.mrb[0].mxu0 %v3625
        %v3761 = vpop.f32.mrb[0].mxu0
        %v3762 = vadd.f32 0.0, %v3761
        %v3763 = vpop.f32.mrb[0].mxu0
        %v3764 = vpop.f32.mrb[0].mxu0
        %v3765 = vadd.f32 0.0, %v3764
        %v3766 = vpop.f32.mrb[0].mxu0
        %3767 = vmatprep.mubr.bf16.mxu0 0
        %3768 = vmatmul.mubr.bf16.gmra.mrb[0].mxu0 %v3628
        %v3769 = vpop.f32.mrb[0].mxu0
        %v3770 = vadd.f32 0.0, %v3769
        %v3771 = vpop.f32.mrb[0].mxu0
        %v3772 = vpop.f32.mrb[0].mxu0
        %v3773 = vadd.f32 0.0, %v3772
        %v3774 = vpop.f32.mrb[0].mxu0
        %3775 = vmatprep.mubr.bf16.mxu0 0
        %3776 = vmatmul.mubr.bf16.gmra.mrb[0].mxu0 %v3631
        %v3777 = vpop.f32.mrb[0].mxu0
        %v3778 = vadd.f32 0.0, %v3777
        %v3779 = vpop.f32.mrb[0].mxu0
        %v3780 = vpop.f32.mrb[0].mxu0
        %v3781 = vadd.f32 0.0, %v3780
        %v3782 = vpop.f32.mrb[0].mxu0
        %3783 = vmatprep.mubr.bf16.mxu0 0
        %3784 = vmatmul.mubr.bf16.gmra.mrb[0].mxu0 %v3634
        %v3785 = vpop.f32.mrb[0].mxu0
        %v3786 = vadd.f32 0.0, %v3785
        %v3787 = vpop.f32.mrb[0].mxu0
        %v3788 = vpop.f32.mrb[0].mxu0
        %v3789 = vadd.f32 0.0, %v3788
        %v3790 = vpop.f32.mrb[0].mxu0
        %3791 = vmatprep.mubr.bf16.mxu0 0
        %3792 = vmatmul.mubr.bf16.gmra.mrb[0].mxu0 %v3637
        %v3793 = vpop.f32.mrb[0].mxu0
        %v3794 = vadd.f32 0.0, %v3793
        %v3795 = vpop.f32.mrb[0].mxu0
        %v3796 = vpop.f32.mrb[0].mxu0
        %v3797 = vadd.f32 0.0, %v3796
        %v3798 = vpop.f32.mrb[0].mxu0
        %3799 = vdwg.mxu0
        %v3800 = vadd.f32 %v3048, %v3674
        %v3801 = vadd.f32 %v3049, %v3677
        %v3802 = vadd.f32 %v3050, %v3682
        %v3803 = vadd.f32 %v3051, %v3685
        %v3804 = vadd.f32 %v3052, %v3690
        %v3805 = vadd.f32 %v3053, %v3693
        %v3806 = vadd.f32 %v3054, %v3698
        %v3807 = vadd.f32 %v3055, %v3701
        %v3808 = vadd.f32 %v3056, %v3706
        %v3809 = vadd.f32 %v3057, %v3709
        %v3810 = vadd.f32 %v3058, %v3714
        %v3811 = vadd.f32 %v3059, %v3717
        %v3812 = vadd.f32 %v3060, %v3722
        %v3813 = vadd.f32 %v3061, %v3725
        %v3814 = vadd.f32 %v3062, %v3730
        %v3815 = vadd.f32 %v3063, %v3733
        %v3816 = vadd.f32 %v3064, %v3738
        %v3817 = vadd.f32 %v3065, %v3741
        %v3818 = vadd.f32 %v3066, %v3746
        %v3819 = vadd.f32 %v3067, %v3749
        %v3820 = vadd.f32 %v3068, %v3754
        %v3821 = vadd.f32 %v3069, %v3757
        %v3822 = vadd.f32 %v3070, %v3762
        %v3823 = vadd.f32 %v3071, %v3765
        %v3824 = vadd.f32 %v3072, %v3770
        %v3825 = vadd.f32 %v3073, %v3773
        %v3826 = vadd.f32 %v3074, %v3778
        %v3827 = vadd.f32 %v3075, %v3781
        %v3828 = vadd.f32 %v3076, %v3786
        %v3829 = vadd.f32 %v3077, %v3789
        %v3830 = vadd.f32 %v3078, %v3794
        %v3831 = vadd.f32 %v3079, %v3797
        %3832 = vst [vmem:[%s816] sm:$0xff] %v3800
        %3833 = vst [vmem:[%s816 + $0x8] sm:$0xff] %v3801
        %3834 = vst [vmem:[%s816 + $0x10] sm:$0xff] %v3802
        %3835 = vst [vmem:[%s816 + $0x18] sm:$0xff] %v3803
        %3836 = vst [vmem:[%s816 + $0x20] sm:$0xff] %v3804
        %3837 = vst [vmem:[%s816 + $0x28] sm:$0xff] %v3805
        %3838 = vst [vmem:[%s816 + $0x30] sm:$0xff] %v3806
        %3839 = vst [vmem:[%s816 + $0x38] sm:$0xff] %v3807
        %3840 = vst [vmem:[%s816 + $0x40] sm:$0xff] %v3808
        %3841 = vst [vmem:[%s816 + $0x48] sm:$0xff] %v3809
        %3842 = vst [vmem:[%s816 + $0x50] sm:$0xff] %v3810
        %3843 = vst [vmem:[%s816 + $0x58] sm:$0xff] %v3811
        %3844 = vst [vmem:[%s816 + $0x60] sm:$0xff] %v3812
        %3845 = vst [vmem:[%s816 + $0x68] sm:$0xff] %v3813
        %3846 = vst [vmem:[%s816 + $0x70] sm:$0xff] %v3814
        %3847 = vst [vmem:[%s816 + $0x78] sm:$0xff] %v3815
        %3848 = vst [vmem:[%s816 + $0x80] sm:$0xff] %v3816
        %3849 = vst [vmem:[%s816 + $0x88] sm:$0xff] %v3817
        %3850 = vst [vmem:[%s816 + $0x90] sm:$0xff] %v3818
        %3851 = vst [vmem:[%s816 + $0x98] sm:$0xff] %v3819
        %3852 = vst [vmem:[%s816 + $0xa0] sm:$0xff] %v3820
        %3853 = vst [vmem:[%s816 + $0xa8] sm:$0xff] %v3821
        %3854 = vst [vmem:[%s816 + $0xb0] sm:$0xff] %v3822
        %3855 = vst [vmem:[%s816 + $0xb8] sm:$0xff] %v3823
        %3856 = vst [vmem:[%s816 + $0xc0] sm:$0xff] %v3824
        %3857 = vst [vmem:[%s816 + $0xc8] sm:$0xff] %v3825
        %3858 = vst [vmem:[%s816 + $0xd0] sm:$0xff] %v3826
        %3859 = vst [vmem:[%s816 + $0xd8] sm:$0xff] %v3827
        %3860 = vst [vmem:[%s816 + $0xe0] sm:$0xff] %v3828
        %3861 = vst [vmem:[%s816 + $0xe8] sm:$0xff] %v3829
        %3862 = vst [vmem:[%s816 + $0xf0] sm:$0xff] %v3830
        %3863 = vst [vmem:[%s816 + $0xf8] sm:$0xff] %v3831
        %s3864 = sand.u32 %s538, 1
        %s3865 = scalar_lea.sflag [#allocation4], %s3864
        %s3866 = sand.u32 %s538, 1
        %s3867 = smul.addr %s3866, 256
        %s3868 = scalar_lea.vmem [#allocation16], %s3867
        // Predicated region
        $region145: #{tpu_custom_call.1} parent=111 // pred_check
          %p3869 = pneg %p548
        $region146: #{tpu_custom_call.1} parent=111 // pred_check_branch
          %3871 = sbr.rel (%p3869) target = $region148
        $region147: #{tpu_custom_call.1} parent=111 // pred_region
          %s3873 = ssub.s32 4096, 4096
          %3874 = vsyncadd %s3865, %s3873
          %s3875 = smul.addr %s42, 32
          %s3876 = smul.addr %s3875, 128
          %s3877 = scalar_lea.hbm %s23, %s3876
          %s3878 = sshll.u32 %s3868, 4
          %s3879 = int_to_ptr.vmem [resolvable:$true] %s3878
          %3884 = dma.vmem_to_hbm [thread:$0]  %s3879, 4096, %s3877, %s3865, 128, 128, 8
        $region148: #{tpu_custom_call.1} parent=111 // pred_fallthru
          _
      $region112: #{tpu_custom_call.1} parent=5 // pred_fallthru
        _
      %p3885 = scmp.le.s32.totalorder 2, %s37
      // Predicated region
      $region149: #{tpu_custom_call.1} parent=5 // pred_check
        %p3886 = pneg %p3885
      $region150: #{tpu_custom_call.1} parent=5 // pred_check_branch
        %3888 = sbr.rel (%p3886) target = $region152
      $region151: #{tpu_custom_call.1} parent=5 // pred_region
        %s3889 = ssub.s32 %s37, 2
        // Predicated region
        $region153: #{tpu_custom_call.1} parent=151 // pred_check
          %p3890 = pneg %p554
        $region154: #{tpu_custom_call.1} parent=151 // pred_check_branch
          %3892 = sbr.rel (%p3890) target = $region156
        $region155: #{tpu_custom_call.1} parent=151 // pred_region
          %s3893 = sand.u32 %s539, 1
          %s3894 = scalar_lea.sflag [#allocation4], %s3893
          %s3895 = sand.u32 %s539, 1
          %s3896 = smul.addr %s3895, 256
          %s3897 = scalar_lea.vmem [#allocation16], %s3896
          %3898 = dma.done %s3894, 4096
        $region156: #{tpu_custom_call.1} parent=151 // pred_fallthru
          _
      $region152: #{tpu_custom_call.1} parent=5 // pred_fallthru
        _
    $region6: #{tpu_custom_call.1} parent=1 // loop_footer
      %s41 = sadd.s32 1, %s37
    $region7: #{tpu_custom_call.1} parent=1 // loop_footer_branch
      %36 = sbr.rel target = $region3
    $region8: #{tpu_custom_call.1} parent=1 // loop_exit
      _
    %3899 = vsyncpa [#allocation3], 1
    %s3900 = scalar_lea.sflag [#allocation3], 1
    %3901 = vsyncpa %s3900, 1
    %3902 = vsyncpa [#allocation6], 1
    %3903 = vsyncpa [#allocation9], 1
    %3904 = vsyncpa [#allocation12], 1
    %3905 = vsyncpa [#allocation15], 1
    %3906 = vsyncpa [#allocation4], 1
    %s3907 = scalar_lea.sflag [#allocation4], 1
    %3908 = vsyncpa %s3907, 1

</llo_original>
